<compile_context>
chip_gen: v5e
topology: v5e:2x2
jax: 0.10.0
libtpu: 0.0.40
codegen_flags: <defaults>
</compile_context>

<pallas_src>
import functools

import jax
import jax.numpy as jnp
from jax.experimental import pallas as pl
from jax.experimental.pallas import tpu as pltpu


# -----------------------------------------------------------------------------
# Pallas kernel: PCGroupEncoder hot path (mini-PointNet), gb groups per step.
#   first_conv : Conv1d(C_in,128,1) -> BN -> ReLU -> Conv1d(128,256,1)
#   per-group max-pool, concat [global, local] (512 ch)
#   second_conv: Conv1d(512,512,1) -> BN -> ReLU -> Conv1d(512,hidden,1)
#   per-group max-pool -> (hidden,)
# BN / b2 / b4 are folded into the weights & biases outside the kernel.
# -----------------------------------------------------------------------------
def _encoder_kernel(x_ref, w1_ref, b1_ref, w2_ref, w3g_ref, w3l_ref, b3_ref,
                    w4_ref, b4_ref, o_ref, *, gb, m):
    wdt = w1_ref.dtype                                   # bf16 (or f32) matmul dtype

    x = x_ref[...].astype(wdt)                                          # (gb*m, C)
    h = jnp.dot(x, w1_ref[...], preferred_element_type=jnp.float32) + b1_ref[...]
    h = jnp.maximum(h, 0.0)                                             # (gb*m, 128)

    u = jnp.dot(h.astype(wdt), w2_ref[...],
                preferred_element_type=jnp.float32)                     # (gb*m, 256)

    # per-group global feature: max over the M points of each group
    g = jnp.max(u.reshape(gb, m, u.shape[-1]), axis=1)                  # (gb, 256)

    # concat([global, local], ch) @ W3  ==  global @ W3g + local @ W3l
    # b3 folded into the small (gb, 512) global term instead of (gb*m, 512).
    gw = jnp.dot(g.astype(wdt), w3g_ref[...],
                 preferred_element_type=jnp.float32) + b3_ref[...]      # (gb, 512)
    hl = jnp.dot(u.astype(wdt), w3l_ref[...],
                 preferred_element_type=jnp.float32)                    # (gb*m, 512)

    # Single (rows, 512) materialization: global broadcast + ReLU + bf16 cast
    # fused into the operand of the w4 matmul.
    h2 = jnp.maximum(hl.reshape(gb, m, hl.shape[-1]) + gw[:, None, :], 0.0
                     ).astype(wdt).reshape(gb * m, hl.shape[-1])
    h = jnp.dot(h2, w4_ref[...],
                preferred_element_type=jnp.float32)                     # (gb*m, hid_pad)

    # b4 added once after the per-group max (per-channel bias commutes with max)
    o_ref[...] = jnp.max(h.reshape(gb, m, h.shape[-1]), axis=1) + b4_ref[...]


# -----------------------------------------------------------------------------
# Generation-aware tile budget + group-block picker.
# -----------------------------------------------------------------------------
def _tpu_budget():
    """Tile targets + explicit scoped-VMEM limit per TPU generation."""
    try:
        cap = int(pltpu.get_tpu_info().vmem_capacity_bytes)
    except Exception:
        cap = 64 << 20
    if cap >= (96 << 20):
        # v5e / v6e: 128 MiB physical VMEM. Big tiles; explicit limit well
        # above the 16 MiB (v5e) / 32 MiB (v6e) scoped defaults.
        return dict(target_rows=1024, max_rows=4096, min_steps=2,
                    even_steps=False, vmem_limit=96 << 20)
    # v7x: 64 MiB per TensorCore, dual-TC "parallel" grid. Moderate tiles,
    # even step count, explicit limit with headroom over the 32 MiB default.
    return dict(target_rows=512, max_rows=2048, min_steps=2,
                even_steps=True, vmem_limit=48 << 20)


def _pick_group_block(total, m, *, target_rows, max_rows, min_steps, even_steps):
    """Pick (gb, steps): gb groups per grid step (gb*m rows per tile).

    The group count is zero-padded up to steps*gb by the caller, so `total`
    does not need to divide evenly (robust to prime / awkward B*G).
    """
    cap = max(1, max_rows // m)                 # VMEM cap on groups per step
    tgt = max(1, -(-target_rows // m))          # MXU-occupancy target
    gb = max(1, min(total, cap, tgt))
    align = 8 if (total >= 8 and cap >= 8) else 1
    if align == 1:                              # tiny totals: full-dim blocks
        gb = max(1, min(total, cap))
        return gb, -(-total // gb)
    gb = max(align, (gb // align) * align)      # sublane-aligned x / out blocks
    steps = -(-total // gb)
    want = max(steps, min_steps)                # >=2 steps (pipeline / dual TC)
    if even_steps and want > 1 and want % 2:    # v7x: even step count
        want += 1
    if want > steps and total >= want * align:
        gb = max(align, ((-(-total // want) + align - 1) // align) * align)
        gb = min(gb, max(align, (cap // align) * align))
        steps = -(-total // gb)
    return gb, steps


# -----------------------------------------------------------------------------
# Parameter folding (eval-mode BN, b2, w3 split) — done once, outside the kernel.
# -----------------------------------------------------------------------------
def _bn_scale_shift(gamma, beta, mean, var, eps=1e-5):
    s = gamma / jnp.sqrt(var + eps)
    return s, beta - s * mean


def fold_params(params, use_bf16=True, eps=1e-5):
    """Fold eval-mode BN (gamma/beta/running stats) and b2 into adjacent
    weights/biases, pre-split w3, and (optionally) cast matmul weights to bf16."""
    # TODO(synk): PyTorch train-mode batch statistics are not reproduced; this
    # is the eval-mode (running-stats) BatchNorm forward.
    p = {k: jnp.asarray(v, jnp.float32) for k, v in params.items()}
    s1, t1 = _bn_scale_shift(p["bn1_gamma"], p["bn1_beta"],
                             p["bn1_mean"], p["bn1_var"], eps)
    s2, t2 = _bn_scale_shift(p["bn2_gamma"], p["bn2_beta"],
                             p["bn2_mean"], p["bn2_var"], eps)
    w3a, w3b = p["w3"][:256], p["w3"][256:]          # [global ; local] halves
    fw = dict(
        w1=p["w1"] * s1,
        b1=p["b1"] * s1 + t1,
        w2=p["w2"],
        w3g=w3a * s2,
        w3l=w3b * s2,
        b3=(p["b2"] @ (w3a + w3b) + p["b3"]) * s2 + t2,
        w4=p["w4"],
        b4=p["b4"],
    )
    if use_bf16:
        for k in ("w1", "w2", "w3g", "w3l", "w4"):
            fw[k] = fw[k].astype(jnp.bfloat16)
    return fw


# -----------------------------------------------------------------------------
# Wrapper: tiling, padding, BlockSpecs, cost estimate, pallas_call.
# -----------------------------------------------------------------------------
def pc_group_encoder(neighborhoods, fw):
    """neighborhoods: (B, G, M, C) float32 -> (B, G, hidden) float32."""
    B, G, M, C = neighborhoods.shape
    hidden = fw["w4"].shape[1]
    hid_pad = hidden if hidden % 128 == 0 else (-(-hidden // 128)) * 128
    total = B * G

    budget = _tpu_budget()
    gb, steps = _pick_group_block(
        total, M, target_rows=budget["target_rows"], max_rows=budget["max_rows"],
        min_steps=budget["min_steps"], even_steps=budget["even_steps"])
    rows = gb * M
    total_pad = gb * steps

    # Lane-dense output: pad w4/b4 output channels to a multiple of 128 so the
    # final matmul + output store are unmasked full-lane ops (slice afterwards).
    w4, b4 = fw["w4"], fw["b4"]
    if hid_pad != hidden:
        w4 = jnp.pad(w4, ((0, 0), (0, hid_pad - hidden)))
        b4 = jnp.pad(b4, ((0, 0), (0, hid_pad - hidden)))

    # TODO(synk): the (rows, C=6) f32 x block lane-pads to 128 lanes in VMEM
    # (~21x inflation); acceptable within the explicit vmem_limit below.
    x = neighborhoods.reshape(total * M, C).astype(jnp.float32)
    if total_pad != total:                       # zero-pad awkward group counts
        x = jnp.pad(x, ((0, (total_pad - total) * M), (0, 0)))

    weights = [fw["w1"], fw["b1"], fw["w2"], fw["w3g"], fw["w3l"], fw["b3"], w4, b4]

    flops = 2 * total_pad * M * (C * 128 + 128 * 256 + 256 * 512 + 512 * hid_pad) \
        + 2 * total_pad * 256 * 512
    bytes_accessed = int(x.size) * 4 \
        + sum(int(w.size) * w.dtype.itemsize for w in weights) \
        + total_pad * hid_pad * 4
    cost = pl.CostEstimate(flops=int(flops), transcendentals=0,
                           bytes_accessed=int(bytes_accessed))

    def build(single_buffer_weights):
        def wspec(a):                            # resident, grid-invariant weight
            nd = a.ndim
            kwargs = ({"pipeline_mode": pl.Buffered(1)}
                      if single_buffer_weights else {})
            return pl.BlockSpec(a.shape, lambda i, nd=nd: (0,) * nd, **kwargs)
        return pl.pallas_call(
            functools.partial(_encoder_kernel, gb=gb, m=M),
            out_shape=jax.ShapeDtypeStruct((total_pad, hid_pad), jnp.float32),
            grid=(steps,),
            in_specs=[pl.BlockSpec((rows, C), lambda i: (i, 0))]
            + [wspec(w) for w in weights],
            out_specs=pl.BlockSpec((gb, hid_pad), lambda i: (i, 0)),
            compiler_params=pltpu.CompilerParams(
                dimension_semantics=("parallel",),
                vmem_limit_bytes=budget["vmem_limit"]),
            cost_estimate=cost,
        )

    try:
        out = build(True)(x, *weights)           # single-buffered weights
    except Exception:
        # TODO(synk): pipeline_mode=pl.Buffered(1) unsupported on this jax
        # build; fall back to default (double-buffered) weight blocks.
        out = build(False)(x, *weights)

    return out[:total, :hidden].reshape(B, G, hidden)


# -----------------------------------------------------------------------------
# PointGroup (FPS + KNN grouping) — plain-JAX glue.
# TODO(synk): FPS is an inherently sequential argmax loop and KNN needs top-k;
# neither has a clean Pallas equivalent, so they stay as JAX glue around the
# Pallas encoder hot path.  Longer term the KNN gather + re-centering could be
# fused into the kernel via PrefetchScalarGridSpec-indexed gathers.
# -----------------------------------------------------------------------------
def farthest_point_sample(xyz, npoint):
    """xyz: (B, N, 3) -> int32 indices (B, npoint). Starts at index 0 (CUDA impl)."""
    B, N, _ = xyz.shape

    def body(i, carry):
        idxs, dist, farthest = carry
        idxs = idxs.at[:, i].set(farthest)
        centroid = jnp.take_along_axis(
            xyz, jnp.broadcast_to(farthest[:, None, None], (B, 1, 3)), axis=1)
        d = jnp.sum((xyz - centroid) ** 2, axis=-1)
        dist = jnp.minimum(dist, d)
        farthest = jnp.argmax(dist, axis=-1).astype(jnp.int32)
        return idxs, dist, farthest

    idxs = jnp.zeros((B, npoint), dtype=jnp.int32)
    dist = jnp.full((B, N), 1e10, dtype=xyz.dtype)
    farthest = jnp.zeros((B,), dtype=jnp.int32)
    idxs, _, _ = jax.lax.fori_loop(0, npoint, body, (idxs, dist, farthest))
    return idxs


def point_group(pcd, num_groups, group_size):
    """pcd: (B, N, C>=3) -> neighborhoods (B, G, M, C), centers (B, G, 3)."""
    B, N, C = pcd.shape
    xyz = pcd[..., :3]
    fps_idx = farthest_point_sample(xyz, num_groups)                     # (B, G)
    centers = jnp.take_along_axis(
        xyz, jnp.broadcast_to(fps_idx[..., None], (B, num_groups, 3)), axis=1)
    sqrdists = jnp.sum(
        (centers[:, :, None, :] - xyz[:, None, :, :]) ** 2, axis=-1)     # (B, G, N)
    _, knn_idx = jax.lax.top_k(-sqrdists, group_size)                    # (B, G, M)
    neigh = jax.vmap(lambda p, i: p[i])(pcd, knn_idx)                    # (B, G, M, C)
    neigh = neigh.at[..., :3].add(-centers[:, :, None, :])               # center xyz only
    return neigh, centers


# -----------------------------------------------------------------------------
# Parameter init (deterministic, synthetic) + pure-JAX references for checking.
# -----------------------------------------------------------------------------
def init_params(key, input_size, hidden_size):
    ks = jax.random.split(key, 16)

    def w(k, shape):
        return (0.05 * jax.random.normal(k, shape)).astype(jnp.float32)

    return dict(
        w1=w(ks[0], (input_size, 128)), b1=w(ks[1], (1, 128)),
        w2=w(ks[2], (128, 256)),        b2=w(ks[3], (1, 256)),
        w3=w(ks[4], (512, 512)),        b3=w(ks[5], (1, 512)),
        w4=w(ks[6], (512, hidden_size)), b4=w(ks[7], (1, hidden_size)),
        # eval-mode BatchNorm1d parameters + running stats (non-trivial so the
        # fold is actually exercised)
        bn1_gamma=(1.0 + 0.05 * jax.random.normal(ks[8], (1, 128))).astype(jnp.float32),
        bn1_beta=(0.05 * jax.random.normal(ks[9], (1, 128))).astype(jnp.float32),
        bn1_mean=(0.05 * jax.random.normal(ks[10], (1, 128))).astype(jnp.float32),
        bn1_var=(1.0 + 0.2 * jax.random.uniform(ks[11], (1, 128))).astype(jnp.float32),
        bn2_gamma=(1.0 + 0.05 * jax.random.normal(ks[12], (1, 512))).astype(jnp.float32),
        bn2_beta=(0.05 * jax.random.normal(ks[13], (1, 512))).astype(jnp.float32),
        bn2_mean=(0.05 * jax.random.normal(ks[14], (1, 512))).astype(jnp.float32),
        bn2_var=(1.0 + 0.2 * jax.random.uniform(ks[15], (1, 512))).astype(jnp.float32),
    )


def encoder_reference_original(neigh, params, eps=1e-5):
    """Original (unfolded, f32) math: conv -> BN -> ReLU -> conv -> max ->
    concat([global, local]) -> conv -> BN -> ReLU -> conv -> max."""
    B, G, M, C = neigh.shape
    p = {k: jnp.asarray(v, jnp.float32) for k, v in params.items()}
    s1, t1 = _bn_scale_shift(p["bn1_gamma"], p["bn1_beta"],
                             p["bn1_mean"], p["bn1_var"], eps)
    s2, t2 = _bn_scale_shift(p["bn2_gamma"], p["bn2_beta"],
                             p["bn2_mean"], p["bn2_var"], eps)
    x = neigh.reshape(B * G, M, C).astype(jnp.float32)
    h = jnp.einsum("gmc,cd->gmd", x, p["w1"]) + p["b1"]
    h = jnp.maximum(h * s1 + t1, 0.0)
    h = jnp.einsum("gmc,cd->gmd", h, p["w2"]) + p["b2"]
    g = jnp.max(h, axis=1, keepdims=True)
    feat = jnp.concatenate([jnp.broadcast_to(g, h.shape), h], axis=-1)
    h = jnp.einsum("gmc,cd->gmd", feat, p["w3"]) + p["b3"]
    h = jnp.maximum(h * s2 + t2, 0.0)
    h = jnp.einsum("gmc,cd->gmd", h, p["w4"]) + p["b4"]
    return jnp.max(h, axis=1).reshape(B, G, -1)


def encoder_reference_folded(neigh, fw):
    """Mirrors the folded / split / bf16-cast math used by the Pallas kernel."""
    B, G, M, C = neigh.shape
    wdt = fw["w1"].dtype
    x = neigh.reshape(B * G, M, C).astype(jnp.float32)

    def mm(a, w):
        return jnp.einsum("gmc,cd->gmd", a.astype(wdt), w,
                          preferred_element_type=jnp.float32)

    h = jnp.maximum(mm(x, fw["w1"]) + fw["b1"], 0.0)
    u = mm(h, fw["w2"])
    g = jnp.max(u, axis=1)
    gw = jnp.einsum("gc,cd->gd", g.astype(wdt), fw["w3g"],
                    preferred_element_type=jnp.float32) + fw["b3"]
    hl = mm(u, fw["w3l"])
    h = jnp.maximum(hl + gw[:, None, :], 0.0)
    h = mm(h, fw["w4"])
    return (jnp.max(h, axis=1) + fw["b4"]).reshape(B, G, -1)


def pcd_knn_group_encoder(pcd_obs, params, num_groups, group_size, use_bf16=True):
    """Full forward: dict of (B, C, H, W) -> group tokens (B, G, hidden)."""
    B = next(iter(pcd_obs.values())).shape[0]
    # b c h w -> b (h w) c, concat over channels
    pcd = jnp.concatenate(
        [v.transpose(0, 2, 3, 1).reshape(B, -1, v.shape[1]) for v in pcd_obs.values()],
        axis=-1).astype(jnp.float32)
    neighborhoods, _centers = point_group(pcd, num_groups, group_size)
    fw = fold_params(params, use_bf16=use_bf16)
    return pc_group_encoder(neighborhoods, fw), neighborhoods, fw


if __name__ == "__main__":
    B, H, W = 2, 8, 8
    input_size, hidden_size = 6, 32
    num_groups, group_size = 8, 8

    key = jax.random.PRNGKey(0)
    k_pos, k_rgb, k_par = jax.random.split(key, 3)
    pcd_obs = {
        "pos": jax.random.normal(k_pos, (B, 3, H, W), jnp.float32),
        "rgb": jax.random.uniform(k_rgb, (B, 3, H, W), jnp.float32),
    }
    params = init_params(k_par, input_size, hidden_size)

    tokens, neigh, fw = pcd_knn_group_encoder(
        pcd_obs, params, num_groups, group_size, use_bf16=True)
    tokens = jax.block_until_ready(tokens)
    assert tokens.shape == (B, num_groups, hidden_size), tokens.shape

    # 1) the BN / b2 / b4 fold + w3 split rewrite is exact at f32
    fw_f32 = fold_params(params, use_bf16=False)
    ref_orig = encoder_reference_original(neigh, params)
    ref_fold = encoder_reference_folded(neigh, fw_f32)
    assert jnp.allclose(ref_fold, ref_orig, atol=1e-4, rtol=1e-4), \
        float(jnp.max(jnp.abs(ref_fold - ref_orig)))

    # 2) the Pallas kernel matches the same (bf16-cast) math
    ref_mirror = encoder_reference_folded(neigh, fw)
    assert jnp.allclose(tokens, ref_mirror, atol=1e-3, rtol=1e-3), \
        float(jnp.max(jnp.abs(tokens - ref_mirror)))

    print("KERNEL_OK")
</pallas_src>

<mosaic_0001>
module attributes {stable_mosaic.version = 11 : i64} {
  func.func @_encoder_kernel(%arg0: i32, %arg1: memref<64x6xf32, #tpu.memory_space<vmem>>, %arg2: memref<6x128xbf16, #tpu.memory_space<vmem>>, %arg3: memref<1x128xf32, #tpu.memory_space<vmem>>, %arg4: memref<128x256xbf16, #tpu.memory_space<vmem>>, %arg5: memref<256x512xbf16, #tpu.memory_space<vmem>>, %arg6: memref<256x512xbf16, #tpu.memory_space<vmem>>, %arg7: memref<1x512xf32, #tpu.memory_space<vmem>>, %arg8: memref<512x128xbf16, #tpu.memory_space<vmem>>, %arg9: memref<1x128xf32, #tpu.memory_space<vmem>>, %arg10: memref<8x128xf32, #tpu.memory_space<vmem>>) attributes {dimension_semantics = [#tpu.dimension_semantics<parallel>], iteration_bounds = array<i64: 2>, scalar_prefetch = 0 : i64, scratch_operands = 0 : i64, tpu.core_type = #tpu.core_type<tc>, window_params = [{transform_indices = @transform_0, window_bounds = array<i64: 64, 6>}, {pipeline_mode = #tpu.pipeline_mode<synchronous>, transform_indices = @transform_1, window_bounds = array<i64: 6, 128>}, {pipeline_mode = #tpu.pipeline_mode<synchronous>, transform_indices = @transform_2, window_bounds = array<i64: 1, 128>}, {pipeline_mode = #tpu.pipeline_mode<synchronous>, transform_indices = @transform_3, window_bounds = array<i64: 128, 256>}, {pipeline_mode = #tpu.pipeline_mode<synchronous>, transform_indices = @transform_4, window_bounds = array<i64: 256, 512>}, {pipeline_mode = #tpu.pipeline_mode<synchronous>, transform_indices = @transform_5, window_bounds = array<i64: 256, 512>}, {pipeline_mode = #tpu.pipeline_mode<synchronous>, transform_indices = @transform_6, window_bounds = array<i64: 1, 512>}, {pipeline_mode = #tpu.pipeline_mode<synchronous>, transform_indices = @transform_7, window_bounds = array<i64: 512, 128>}, {pipeline_mode = #tpu.pipeline_mode<synchronous>, transform_indices = @transform_8, window_bounds = array<i64: 1, 128>}, {transform_indices = @transform_9, window_bounds = array<i64: 8, 128>}]} {
    %c0 = arith.constant 0 : index
    %c0_0 = arith.constant 0 : index
    %0 = vector.load %arg1[%c0, %c0_0] : memref<64x6xf32, #tpu.memory_space<vmem>>, vector<64x6xf32>
    %1 = arith.truncf %0 : vector<64x6xf32> to vector<64x6xbf16>
    %c0_1 = arith.constant 0 : index
    %c0_2 = arith.constant 0 : index
    %2 = vector.load %arg2[%c0_1, %c0_2] : memref<6x128xbf16, #tpu.memory_space<vmem>>, vector<6x128xbf16>
    %cst = arith.constant dense<0.000000e+00> : vector<64x128xf32>
    %3 = tpu.matmul %1, %2, %cst {dimension_numbers = #tpu.dot_dimension_numbers<[1], [0], [0], [1], [0, 0, 1, 1], [], []>} : vector<64x6xbf16>, vector<6x128xbf16>, vector<64x128xf32> -> vector<64x128xf32>
    %c0_3 = arith.constant 0 : index
    %c0_4 = arith.constant 0 : index
    %4 = vector.load %arg3[%c0_3, %c0_4] : memref<1x128xf32, #tpu.memory_space<vmem>>, vector<1x128xf32>
    %5 = vector.broadcast %4 : vector<1x128xf32> to vector<64x128xf32>
    %6 = arith.addf %3, %5 : vector<64x128xf32>
    %cst_5 = arith.constant 0.000000e+00 : f32
    %7 = vector.broadcast %cst_5 : f32 to vector<64x128xf32>
    %8 = arith.maximumf %6, %7 : vector<64x128xf32>
    %9 = arith.truncf %8 : vector<64x128xf32> to vector<64x128xbf16>
    %c0_6 = arith.constant 0 : index
    %c0_7 = arith.constant 0 : index
    %10 = vector.load %arg4[%c0_6, %c0_7] : memref<128x256xbf16, #tpu.memory_space<vmem>>, vector<128x256xbf16>
    %cst_8 = arith.constant dense<0.000000e+00> : vector<64x256xf32>
    %11 = tpu.matmul %9, %10, %cst_8 {dimension_numbers = #tpu.dot_dimension_numbers<[1], [0], [0], [1], [0, 0, 1, 1], [], []>} : vector<64x128xbf16>, vector<128x256xbf16>, vector<64x256xf32> -> vector<64x256xf32>
    %12 = vector.shape_cast %11 : vector<64x256xf32> to vector<8x8x256xf32>
    %cst_9 = arith.constant dense<0xFF800000> : vector<8x256xf32>
    %13 = vector.multi_reduction <maximumf>, %12, %cst_9 [1] : vector<8x8x256xf32> to vector<8x256xf32>
    %14 = arith.truncf %13 : vector<8x256xf32> to vector<8x256xbf16>
    %c0_10 = arith.constant 0 : index
    %c0_11 = arith.constant 0 : index
    %15 = vector.load %arg5[%c0_10, %c0_11] : memref<256x512xbf16, #tpu.memory_space<vmem>>, vector<256x512xbf16>
    %cst_12 = arith.constant dense<0.000000e+00> : vector<8x512xf32>
    %16 = tpu.matmul %14, %15, %cst_12 {dimension_numbers = #tpu.dot_dimension_numbers<[1], [0], [0], [1], [0, 0, 1, 1], [], []>} : vector<8x256xbf16>, vector<256x512xbf16>, vector<8x512xf32> -> vector<8x512xf32>
    %c0_13 = arith.constant 0 : index
    %c0_14 = arith.constant 0 : index
    %17 = vector.load %arg7[%c0_13, %c0_14] : memref<1x512xf32, #tpu.memory_space<vmem>>, vector<1x512xf32>
    %18 = vector.broadcast %17 : vector<1x512xf32> to vector<8x512xf32>
    %19 = arith.addf %16, %18 : vector<8x512xf32>
    %20 = arith.truncf %11 : vector<64x256xf32> to vector<64x256xbf16>
    %c0_15 = arith.constant 0 : index
    %c0_16 = arith.constant 0 : index
    %21 = vector.load %arg6[%c0_15, %c0_16] : memref<256x512xbf16, #tpu.memory_space<vmem>>, vector<256x512xbf16>
    %cst_17 = arith.constant dense<0.000000e+00> : vector<64x512xf32>
    %22 = tpu.matmul %20, %21, %cst_17 {dimension_numbers = #tpu.dot_dimension_numbers<[1], [0], [0], [1], [0, 0, 1, 1], [], []>} : vector<64x256xbf16>, vector<256x512xbf16>, vector<64x512xf32> -> vector<64x512xf32>
    %23 = vector.shape_cast %22 : vector<64x512xf32> to vector<8x8x512xf32>
    %24 = vector.shape_cast %19 : vector<8x512xf32> to vector<8x1x512xf32>
    %25 = vector.broadcast %24 : vector<8x1x512xf32> to vector<8x8x512xf32>
    %26 = arith.addf %23, %25 : vector<8x8x512xf32>
    %cst_18 = arith.constant 0.000000e+00 : f32
    %27 = vector.broadcast %cst_18 : f32 to vector<8x8x512xf32>
    %28 = arith.maximumf %26, %27 : vector<8x8x512xf32>
    %29 = arith.truncf %28 : vector<8x8x512xf32> to vector<8x8x512xbf16>
    %30 = vector.shape_cast %29 : vector<8x8x512xbf16> to vector<64x512xbf16>
    %c0_19 = arith.constant 0 : index
    %c0_20 = arith.constant 0 : index
    %31 = vector.load %arg8[%c0_19, %c0_20] : memref<512x128xbf16, #tpu.memory_space<vmem>>, vector<512x128xbf16>
    %cst_21 = arith.constant dense<0.000000e+00> : vector<64x128xf32>
    %32 = tpu.matmul %30, %31, %cst_21 {dimension_numbers = #tpu.dot_dimension_numbers<[1], [0], [0], [1], [0, 0, 1, 1], [], []>} : vector<64x512xbf16>, vector<512x128xbf16>, vector<64x128xf32> -> vector<64x128xf32>
    %33 = vector.shape_cast %32 : vector<64x128xf32> to vector<8x8x128xf32>
    %cst_22 = arith.constant dense<0xFF800000> : vector<8x128xf32>
    %34 = vector.multi_reduction <maximumf>, %33, %cst_22 [1] : vector<8x8x128xf32> to vector<8x128xf32>
    %c0_23 = arith.constant 0 : index
    %c0_24 = arith.constant 0 : index
    %35 = vector.load %arg9[%c0_23, %c0_24] : memref<1x128xf32, #tpu.memory_space<vmem>>, vector<1x128xf32>
    %36 = vector.broadcast %35 : vector<1x128xf32> to vector<8x128xf32>
    %37 = arith.addf %34, %36 : vector<8x128xf32>
    %c0_25 = arith.constant 0 : index
    %c0_26 = arith.constant 0 : index
    %38 = vector.load %arg10[%c0_25, %c0_26] : memref<8x128xf32, #tpu.memory_space<vmem>>, vector<8x128xf32>
    tpu.vector_store %arg10[%c0_25, %c0_26], %37 {strides = array<i32>} : memref<8x128xf32, #tpu.memory_space<vmem>>, vector<8x128xf32>,
    return
  }
  func.func @transform_0(%arg0: i32) -> (i32, i32) {
    %c0_i32 = arith.constant 0 : i32
    %c0_i32_0 = arith.constant 0 : i32
    return %arg0, %c0_i32 : i32, i32
  }
  func.func @transform_1(%arg0: i32) -> (i32, i32) {
    %c0_i32 = arith.constant 0 : i32
    %c0_i32_0 = arith.constant 0 : i32
    %c0_i32_1 = arith.constant 0 : i32
    return %c0_i32, %c0_i32_0 : i32, i32
  }
  func.func @transform_2(%arg0: i32) -> (i32, i32) {
    %c0_i32 = arith.constant 0 : i32
    %c0_i32_0 = arith.constant 0 : i32
    %c0_i32_1 = arith.constant 0 : i32
    return %c0_i32, %c0_i32_0 : i32, i32
  }
  func.func @transform_3(%arg0: i32) -> (i32, i32) {
    %c0_i32 = arith.constant 0 : i32
    %c0_i32_0 = arith.constant 0 : i32
    %c0_i32_1 = arith.constant 0 : i32
    return %c0_i32, %c0_i32_0 : i32, i32
  }
  func.func @transform_4(%arg0: i32) -> (i32, i32) {
    %c0_i32 = arith.constant 0 : i32
    %c0_i32_0 = arith.constant 0 : i32
    %c0_i32_1 = arith.constant 0 : i32
    return %c0_i32, %c0_i32_0 : i32, i32
  }
  func.func @transform_5(%arg0: i32) -> (i32, i32) {
    %c0_i32 = arith.constant 0 : i32
    %c0_i32_0 = arith.constant 0 : i32
    %c0_i32_1 = arith.constant 0 : i32
    return %c0_i32, %c0_i32_0 : i32, i32
  }
  func.func @transform_6(%arg0: i32) -> (i32, i32) {
    %c0_i32 = arith.constant 0 : i32
    %c0_i32_0 = arith.constant 0 : i32
    %c0_i32_1 = arith.constant 0 : i32
    return %c0_i32, %c0_i32_0 : i32, i32
  }
  func.func @transform_7(%arg0: i32) -> (i32, i32) {
    %c0_i32 = arith.constant 0 : i32
    %c0_i32_0 = arith.constant 0 : i32
    %c0_i32_1 = arith.constant 0 : i32
    return %c0_i32, %c0_i32_0 : i32, i32
  }
  func.func @transform_8(%arg0: i32) -> (i32, i32) {
    %c0_i32 = arith.constant 0 : i32
    %c0_i32_0 = arith.constant 0 : i32
    %c0_i32_1 = arith.constant 0 : i32
    return %c0_i32, %c0_i32_0 : i32, i32
  }
  func.func @transform_9(%arg0: i32) -> (i32, i32) {
    %c0_i32 = arith.constant 0 : i32
    %c0_i32_0 = arith.constant 0 : i32
    return %arg0, %c0_i32 : i32, i32
  }
}

module attributes {stable_mosaic.version = 11 : i64} {
  func.func @_encoder_kernel(%arg0: i32, %arg1: memref<64x6xf32, #tpu.memory_space<vmem>>, %arg2: memref<6x128xbf16, #tpu.memory_space<vmem>>, %arg3: memref<1x128xf32, #tpu.memory_space<vmem>>, %arg4: memref<128x256xbf16, #tpu.memory_space<vmem>>, %arg5: memref<256x512xbf16, #tpu.memory_space<vmem>>, %arg6: memref<256x512xbf16, #tpu.memory_space<vmem>>, %arg7: memref<1x512xf32, #tpu.memory_space<vmem>>, %arg8: memref<512x128xbf16, #tpu.memory_space<vmem>>, %arg9: memref<1x128xf32, #tpu.memory_space<vmem>>, %arg10: memref<8x128xf32, #tpu.memory_space<vmem>>) attributes {dimension_semantics = [#tpu.dimension_semantics<parallel>], iteration_bounds = array<i64: 2>, scalar_prefetch = 0 : i64, scratch_operands = 0 : i64, tpu.core_type = #tpu.core_type<tc>, window_params = [{transform_indices = @transform_0, window_bounds = array<i64: 64, 6>}, {pipeline_mode = #tpu.pipeline_mode<synchronous>, transform_indices = @transform_1, window_bounds = array<i64: 6, 128>}, {pipeline_mode = #tpu.pipeline_mode<synchronous>, transform_indices = @transform_2, window_bounds = array<i64: 1, 128>}, {pipeline_mode = #tpu.pipeline_mode<synchronous>, transform_indices = @transform_3, window_bounds = array<i64: 128, 256>}, {pipeline_mode = #tpu.pipeline_mode<synchronous>, transform_indices = @transform_4, window_bounds = array<i64: 256, 512>}, {pipeline_mode = #tpu.pipeline_mode<synchronous>, transform_indices = @transform_5, window_bounds = array<i64: 256, 512>}, {pipeline_mode = #tpu.pipeline_mode<synchronous>, transform_indices = @transform_6, window_bounds = array<i64: 1, 512>}, {pipeline_mode = #tpu.pipeline_mode<synchronous>, transform_indices = @transform_7, window_bounds = array<i64: 512, 128>}, {pipeline_mode = #tpu.pipeline_mode<synchronous>, transform_indices = @transform_8, window_bounds = array<i64: 1, 128>}, {transform_indices = @transform_9, window_bounds = array<i64: 8, 128>}]} {
    %c0 = arith.constant 0 : index
    %c0_0 = arith.constant 0 : index
    %0 = vector.load %arg1[%c0, %c0_0] : memref<64x6xf32, #tpu.memory_space<vmem>>, vector<64x6xf32>
    %1 = arith.truncf %0 : vector<64x6xf32> to vector<64x6xbf16>
    %c0_1 = arith.constant 0 : index
    %c0_2 = arith.constant 0 : index
    %2 = vector.load %arg2[%c0_1, %c0_2] : memref<6x128xbf16, #tpu.memory_space<vmem>>, vector<6x128xbf16>
    %cst = arith.constant dense<0.000000e+00> : vector<64x128xf32>
    %3 = tpu.matmul %1, %2, %cst {dimension_numbers = #tpu.dot_dimension_numbers<[1], [0], [0], [1], [0, 0, 1, 1], [], []>} : vector<64x6xbf16>, vector<6x128xbf16>, vector<64x128xf32> -> vector<64x128xf32>
    %c0_3 = arith.constant 0 : index
    %c0_4 = arith.constant 0 : index
    %4 = vector.load %arg3[%c0_3, %c0_4] : memref<1x128xf32, #tpu.memory_space<vmem>>, vector<1x128xf32>
    %5 = vector.broadcast %4 : vector<1x128xf32> to vector<64x128xf32>
    %6 = arith.addf %3, %5 : vector<64x128xf32>
    %cst_5 = arith.constant 0.000000e+00 : f32
    %7 = vector.broadcast %cst_5 : f32 to vector<64x128xf32>
    %8 = arith.maximumf %6, %7 : vector<64x128xf32>
    %9 = arith.truncf %8 : vector<64x128xf32> to vector<64x128xbf16>
    %c0_6 = arith.constant 0 : index
    %c0_7 = arith.constant 0 : index
    %10 = vector.load %arg4[%c0_6, %c0_7] : memref<128x256xbf16, #tpu.memory_space<vmem>>, vector<128x256xbf16>
    %cst_8 = arith.constant dense<0.000000e+00> : vector<64x256xf32>
    %11 = tpu.matmul %9, %10, %cst_8 {dimension_numbers = #tpu.dot_dimension_numbers<[1], [0], [0], [1], [0, 0, 1, 1], [], []>} : vector<64x128xbf16>, vector<128x256xbf16>, vector<64x256xf32> -> vector<64x256xf32>
    %12 = vector.shape_cast %11 : vector<64x256xf32> to vector<8x8x256xf32>
    %cst_9 = arith.constant dense<0xFF800000> : vector<8x256xf32>
    %13 = vector.multi_reduction <maximumf>, %12, %cst_9 [1] : vector<8x8x256xf32> to vector<8x256xf32>
    %14 = arith.truncf %13 : vector<8x256xf32> to vector<8x256xbf16>
    %c0_10 = arith.constant 0 : index
    %c0_11 = arith.constant 0 : index
    %15 = vector.load %arg5[%c0_10, %c0_11] : memref<256x512xbf16, #tpu.memory_space<vmem>>, vector<256x512xbf16>
    %cst_12 = arith.constant dense<0.000000e+00> : vector<8x512xf32>
    %16 = tpu.matmul %14, %15, %cst_12 {dimension_numbers = #tpu.dot_dimension_numbers<[1], [0], [0], [1], [0, 0, 1, 1], [], []>} : vector<8x256xbf16>, vector<256x512xbf16>, vector<8x512xf32> -> vector<8x512xf32>
    %c0_13 = arith.constant 0 : index
    %c0_14 = arith.constant 0 : index
    %17 = vector.load %arg7[%c0_13, %c0_14] : memref<1x512xf32, #tpu.memory_space<vmem>>, vector<1x512xf32>
    %18 = vector.broadcast %17 : vector<1x512xf32> to vector<8x512xf32>
    %19 = arith.addf %16, %18 : vector<8x512xf32>
    %20 = arith.truncf %11 : vector<64x256xf32> to vector<64x256xbf16>
    %c0_15 = arith.constant 0 : index
    %c0_16 = arith.constant 0 : index
    %21 = vector.load %arg6[%c0_15, %c0_16] : memref<256x512xbf16, #tpu.memory_space<vmem>>, vector<256x512xbf16>
    %cst_17 = arith.constant dense<0.000000e+00> : vector<64x512xf32>
    %22 = tpu.matmul %20, %21, %cst_17 {dimension_numbers = #tpu.dot_dimension_numbers<[1], [0], [0], [1], [0, 0, 1, 1], [], []>} : vector<64x256xbf16>, vector<256x512xbf16>, vector<64x512xf32> -> vector<64x512xf32>
    %23 = vector.shape_cast %22 : vector<64x512xf32> to vector<8x8x512xf32>
    %24 = vector.shape_cast %19 : vector<8x512xf32> to vector<8x1x512xf32>
    %25 = vector.broadcast %24 : vector<8x1x512xf32> to vector<8x8x512xf32>
    %26 = arith.addf %23, %25 : vector<8x8x512xf32>
    %cst_18 = arith.constant 0.000000e+00 : f32
    %27 = vector.broadcast %cst_18 : f32 to vector<8x8x512xf32>
    %28 = arith.maximumf %26, %27 : vector<8x8x512xf32>
    %29 = arith.truncf %28 : vector<8x8x512xf32> to vector<8x8x512xbf16>
    %30 = vector.shape_cast %29 : vector<8x8x512xbf16> to vector<64x512xbf16>
    %c0_19 = arith.constant 0 : index
    %c0_20 = arith.constant 0 : index
    %31 = vector.load %arg8[%c0_19, %c0_20] : memref<512x128xbf16, #tpu.memory_space<vmem>>, vector<512x128xbf16>
    %cst_21 = arith.constant dense<0.000000e+00> : vector<64x128xf32>
    %32 = tpu.matmul %30, %31, %cst_21 {dimension_numbers = #tpu.dot_dimension_numbers<[1], [0], [0], [1], [0, 0, 1, 1], [], []>} : vector<64x512xbf16>, vector<512x128xbf16>, vector<64x128xf32> -> vector<64x128xf32>
    %33 = vector.shape_cast %32 : vector<64x128xf32> to vector<8x8x128xf32>
    %cst_22 = arith.constant dense<0xFF800000> : vector<8x128xf32>
    %34 = vector.multi_reduction <maximumf>, %33, %cst_22 [1] : vector<8x8x128xf32> to vector<8x128xf32>
    %c0_23 = arith.constant 0 : index
    %c0_24 = arith.constant 0 : index
    %35 = vector.load %arg9[%c0_23, %c0_24] : memref<1x128xf32, #tpu.memory_space<vmem>>, vector<1x128xf32>
    %36 = vector.broadcast %35 : vector<1x128xf32> to vector<8x128xf32>
    %37 = arith.addf %34, %36 : vector<8x128xf32>
    %c0_25 = arith.constant 0 : index
    %c0_26 = arith.constant 0 : index
    %38 = vector.load %arg10[%c0_25, %c0_26] : memref<8x128xf32, #tpu.memory_space<vmem>>, vector<8x128xf32>
    tpu.vector_store %arg10[%c0_25, %c0_26], %37 {strides = array<i32>} : memref<8x128xf32, #tpu.memory_space<vmem>>, vector<8x128xf32>,
    return
  }
  func.func @transform_0(%arg0: i32) -> (i32, i32) {
    %c0_i32 = arith.constant 0 : i32
    %c0_i32_0 = arith.constant 0 : i32
    return %arg0, %c0_i32 : i32, i32
  }
  func.func @transform_1(%arg0: i32) -> (i32, i32) {
    %c0_i32 = arith.constant 0 : i32
    %c0_i32_0 = arith.constant 0 : i32
    %c0_i32_1 = arith.constant 0 : i32
    return %c0_i32, %c0_i32_0 : i32, i32
  }
  func.func @transform_2(%arg0: i32) -> (i32, i32) {
    %c0_i32 = arith.constant 0 : i32
    %c0_i32_0 = arith.constant 0 : i32
    %c0_i32_1 = arith.constant 0 : i32
    return %c0_i32, %c0_i32_0 : i32, i32
  }
  func.func @transform_3(%arg0: i32) -> (i32, i32) {
    %c0_i32 = arith.constant 0 : i32
    %c0_i32_0 = arith.constant 0 : i32
    %c0_i32_1 = arith.constant 0 : i32
    return %c0_i32, %c0_i32_0 : i32, i32
  }
  func.func @transform_4(%arg0: i32) -> (i32, i32) {
    %c0_i32 = arith.constant 0 : i32
    %c0_i32_0 = arith.constant 0 : i32
    %c0_i32_1 = arith.constant 0 : i32
    return %c0_i32, %c0_i32_0 : i32, i32
  }
  func.func @transform_5(%arg0: i32) -> (i32, i32) {
    %c0_i32 = arith.constant 0 : i32
    %c0_i32_0 = arith.constant 0 : i32
    %c0_i32_1 = arith.constant 0 : i32
    return %c0_i32, %c0_i32_0 : i32, i32
  }
  func.func @transform_6(%arg0: i32) -> (i32, i32) {
    %c0_i32 = arith.constant 0 : i32
    %c0_i32_0 = arith.constant 0 : i32
    %c0_i32_1 = arith.constant 0 : i32
    return %c0_i32, %c0_i32_0 : i32, i32
  }
  func.func @transform_7(%arg0: i32) -> (i32, i32) {
    %c0_i32 = arith.constant 0 : i32
    %c0_i32_0 = arith.constant 0 : i32
    %c0_i32_1 = arith.constant 0 : i32
    return %c0_i32, %c0_i32_0 : i32, i32
  }
  func.func @transform_8(%arg0: i32) -> (i32, i32) {
    %c0_i32 = arith.constant 0 : i32
    %c0_i32_0 = arith.constant 0 : i32
    %c0_i32_1 = arith.constant 0 : i32
    return %c0_i32, %c0_i32_0 : i32, i32
  }
  func.func @transform_9(%arg0: i32) -> (i32, i32) {
    %c0_i32 = arith.constant 0 : i32
    %c0_i32_0 = arith.constant 0 : i32
    return %arg0, %c0_i32 : i32, i32
  }
}

</mosaic_0001>

<llo_original>
// kernel: tpu_custom_call.1
$region0: #{tpu_custom_call.1}
  #allocation0 [shape = 'u32[]', space=smem, size = 0x4, offset = 0x4, fixed_abs, tag = 'smem constant byte address 0x4 - core index']
  #allocation1 [shape = 'u32[72,128]{1,0:T(1,128)}', space=vmem, size = 0x9000, scoped, tag = 'internal scratch']
  %s0 = inlined_call_operand.vmem [shape: f32[128,6], index: 0, kind: input, shape index: {}]
  %s1 = inlined_call_operand.vmem [shape: bf16[6,128], index: 1, kind: input, shape index: {}]
  %s2 = inlined_call_operand.vmem [shape: f32[1,128], index: 2, kind: input, shape index: {}]
  %s3 = inlined_call_operand.vmem [shape: bf16[128,256], index: 3, kind: input, shape index: {}]
  %s4 = inlined_call_operand.hbm [shape: bf16[256,512], index: 4, kind: input, shape index: {}]
  %s5 = inlined_call_operand.hbm [shape: bf16[256,512], index: 5, kind: input, shape index: {}]
  %s6 = inlined_call_operand.vmem [shape: f32[1,512], index: 6, kind: input, shape index: {}]
  %s7 = inlined_call_operand.hbm [shape: bf16[512,128], index: 7, kind: input, shape index: {}]
  %s8 = inlined_call_operand.vmem [shape: f32[1,128], index: 8, kind: input, shape index: {}]
  %s9 = inlined_call_operand.hbm [shape: f32[16,128], index: 9, kind: output, shape index: {}]
  %s10 = sld [smem:[#allocation0]]
  $region81: #{tpu_custom_call.1} parent=0
    _
  %s12 = ssub.s32 1, %s10
  %s13 = scalar_select 0, %s12, %s10
  $region1: #{tpu_custom_call.1} parent=0
    #allocation2 [shape = 'u8[262144]{0}', space=vmem, size = 0x40000, scoped, tag = 'input window, operand 4, single buffered']
    #allocation3 [shape = 's32[2]{0}', space=sflag, size = 0x8, scoped, tag = 'scoped memory for tpu_custom_call.1']
    #allocation4 [shape = 's32[2]{0}', space=sflag, size = 0x8, scoped, tag = 'scoped memory for tpu_custom_call.1']
    #allocation5 [shape = 'u8[262144]{0}', space=vmem, size = 0x40000, scoped, tag = 'input window, operand 5, single buffered']
    #allocation6 [shape = 's32[1]{0}', space=sflag, size = 0x4, scoped, tag = 'scoped memory for tpu_custom_call.1']
    #allocation7 [shape = 'u8[131072]{0}', space=vmem, size = 0x20000, scoped, tag = 'input window, operand 7, single buffered']
    #allocation8 [shape = 'u8[8192]{0}', space=vmem, size = 0x2000, scoped, tag = 'output window, operand 0']
    %14 = vsyncpa [#allocation3], 0
    %15 = vsyncpa [#allocation6], 0
    %16 = vsyncpa [#allocation4], 0
    %s17 = scalar_lea.sflag [#allocation4], 1
    %18 = vsyncpa %s17, 0
    loop: start=0, step=1, limit=4
    $region2: #{tpu_custom_call.1} parent=1 // loop_pre_header
      _
    $region3: #{tpu_custom_call.1} parent=1 // loop_header
      %s20 = sphi 0, %s24
      %p21 = scmp.ge.s32.totalorder %s20, 4
      %s30 = sphi 0, %s32
      %s33 = sphi 0, %s30
      %s34 = sphi 0, %s33
      %s50 = sphi 0, %s34
      %s54 = sphi 0, %s54
      %s56 = sphi 0, %s54
      %s57 = sphi 0, %s56
      %s71 = sphi 0, %s57
      %s75 = sphi 0, %s75
      %s77 = sphi 0, %s75
      %s78 = sphi 0, %s77
      %s92 = sphi 0, %s78
      %s96 = sphi 0, %s96
      %s98 = sphi 0, %s96
      %s99 = sphi 0, %s98
      %s113 = sphi 0, %s99
      %s117 = sphi 0, %s117
      %s119 = sphi 0, %s117
      %s120 = sphi 0, %s119
      %s134 = sphi 0, %s120
      %s138 = sphi 0, %s138
      %s140 = sphi 0, %s138
      %s141 = sphi 0, %s140
      %s155 = sphi 0, %s141
      %s159 = sphi 0, %s159
      %s161 = sphi 0, %s159
      %s162 = sphi 0, %s161
      %s176 = sphi 0, %s162
      %s180 = sphi 0, %s180
      %s182 = sphi 0, %s180
      %s183 = sphi 0, %s182
      %s197 = sphi 0, %s183
      %s201 = sphi 0, %s201
      %s203 = sphi 0, %s201
      %s204 = sphi 0, %s203
      %s218 = sphi 0, %s204
      %s224 = sphi 0, %s226
      %s227 = sphi 0, %s224
      %s228 = sphi 0, %s227
      %s244 = sphi 0, %s228
    $region4: #{tpu_custom_call.1} parent=1 // loop_header_branch
      %23 = sbr.rel (%p21) target = $region8
    $region5: #{tpu_custom_call.1} parent=1 // loop_body
      %s25 = ssub.s32 %s20, 1
      %s26 = ssub.s32 %s20, 2
      %s27 = sadd.s32 %s20, 1
      %s28 = ssub.s32 %s20, %s27
      %p29 = scmp.eq.s32.totalorder %s28, 0
      %s31 = sadd.s32 %s30, 1
      %s32 = scalar_select %p29, %s30, %s31
      %p35 = pneg %p29
      %p36 = scmp.eq.s32.totalorder %s20, 1
      %p37 = por %p35, %p36
      %p38 = scmp.ne.s32.totalorder %s30, %s33
      %p39 = scmp.eq.s32.totalorder %s20, 0
      %p40 = por %p38, %p39
      %p41 = scmp.ne.s32.totalorder %s30, %s33
      %p42 = scmp.eq.s32.totalorder %s25, 1
      %p43 = por %p41, %p42
      %p44 = scmp.ne.s32.totalorder %s33, %s34
      %p45 = scmp.eq.s32.totalorder %s25, 0
      %p46 = por %p44, %p45
      %p47 = scmp.ne.s32.totalorder %s33, %s34
      %p48 = scmp.eq.s32.totalorder %s26, 1
      %p49 = por %p47, %p48
      %p51 = scmp.ne.s32.totalorder %s34, %s50
      %p52 = scmp.eq.s32.totalorder %s26, 0
      %p53 = por %p51, %p52
      %s55 = sadd.s32 %s54, 1
      %p58 = scmp.eq.s32.totalorder %s20, 1
      %p59 = scmp.ne.s32.totalorder %s54, %s56
      %p60 = scmp.eq.s32.totalorder %s20, 0
      %p61 = por %p59, %p60
      %p62 = scmp.ne.s32.totalorder %s54, %s56
      %p63 = scmp.eq.s32.totalorder %s25, 1
      %p64 = por %p62, %p63
      %p65 = scmp.ne.s32.totalorder %s56, %s57
      %p66 = scmp.eq.s32.totalorder %s25, 0
      %p67 = por %p65, %p66
      %p68 = scmp.ne.s32.totalorder %s56, %s57
      %p69 = scmp.eq.s32.totalorder %s26, 1
      %p70 = por %p68, %p69
      %p72 = scmp.ne.s32.totalorder %s57, %s71
      %p73 = scmp.eq.s32.totalorder %s26, 0
      %p74 = por %p72, %p73
      %s76 = sadd.s32 %s75, 1
      %p79 = scmp.eq.s32.totalorder %s20, 1
      %p80 = scmp.ne.s32.totalorder %s75, %s77
      %p81 = scmp.eq.s32.totalorder %s20, 0
      %p82 = por %p80, %p81
      %p83 = scmp.ne.s32.totalorder %s75, %s77
      %p84 = scmp.eq.s32.totalorder %s25, 1
      %p85 = por %p83, %p84
      %p86 = scmp.ne.s32.totalorder %s77, %s78
      %p87 = scmp.eq.s32.totalorder %s25, 0
      %p88 = por %p86, %p87
      %p89 = scmp.ne.s32.totalorder %s77, %s78
      %p90 = scmp.eq.s32.totalorder %s26, 1
      %p91 = por %p89, %p90
      %p93 = scmp.ne.s32.totalorder %s78, %s92
      %p94 = scmp.eq.s32.totalorder %s26, 0
      %p95 = por %p93, %p94
      %s97 = sadd.s32 %s96, 1
      %p100 = scmp.eq.s32.totalorder %s20, 1
      %p101 = scmp.ne.s32.totalorder %s96, %s98
      %p102 = scmp.eq.s32.totalorder %s20, 0
      %p103 = por %p101, %p102
      %p104 = scmp.ne.s32.totalorder %s96, %s98
      %p105 = scmp.eq.s32.totalorder %s25, 1
      %p106 = por %p104, %p105
      %p107 = scmp.ne.s32.totalorder %s98, %s99
      %p108 = scmp.eq.s32.totalorder %s25, 0
      %p109 = por %p107, %p108
      %p110 = scmp.ne.s32.totalorder %s98, %s99
      %p111 = scmp.eq.s32.totalorder %s26, 1
      %p112 = por %p110, %p111
      %p114 = scmp.ne.s32.totalorder %s99, %s113
      %p115 = scmp.eq.s32.totalorder %s26, 0
      %p116 = por %p114, %p115
      %s118 = sadd.s32 %s117, 1
      %p121 = scmp.eq.s32.totalorder %s20, 1
      %p122 = scmp.ne.s32.totalorder %s117, %s119
      %p123 = scmp.eq.s32.totalorder %s20, 0
      %p124 = por %p122, %p123
      %p125 = scmp.ne.s32.totalorder %s117, %s119
      %p126 = scmp.eq.s32.totalorder %s25, 1
      %p127 = por %p125, %p126
      %p128 = scmp.ne.s32.totalorder %s119, %s120
      %p129 = scmp.eq.s32.totalorder %s25, 0
      %p130 = por %p128, %p129
      %p131 = scmp.ne.s32.totalorder %s119, %s120
      %p132 = scmp.eq.s32.totalorder %s26, 1
      %p133 = por %p131, %p132
      %p135 = scmp.ne.s32.totalorder %s120, %s134
      %p136 = scmp.eq.s32.totalorder %s26, 0
      %p137 = por %p135, %p136
      %s139 = sadd.s32 %s138, 1
      %p142 = scmp.eq.s32.totalorder %s20, 1
      %p143 = scmp.ne.s32.totalorder %s138, %s140
      %p144 = scmp.eq.s32.totalorder %s20, 0
      %p145 = por %p143, %p144
      %p146 = scmp.ne.s32.totalorder %s138, %s140
      %p147 = scmp.eq.s32.totalorder %s25, 1
      %p148 = por %p146, %p147
      %p149 = scmp.ne.s32.totalorder %s140, %s141
      %p150 = scmp.eq.s32.totalorder %s25, 0
      %p151 = por %p149, %p150
      %p152 = scmp.ne.s32.totalorder %s140, %s141
      %p153 = scmp.eq.s32.totalorder %s26, 1
      %p154 = por %p152, %p153
      %p156 = scmp.ne.s32.totalorder %s141, %s155
      %p157 = scmp.eq.s32.totalorder %s26, 0
      %p158 = por %p156, %p157
      %s160 = sadd.s32 %s159, 1
      %p163 = scmp.eq.s32.totalorder %s20, 1
      %p164 = scmp.ne.s32.totalorder %s159, %s161
      %p165 = scmp.eq.s32.totalorder %s20, 0
      %p166 = por %p164, %p165
      %p167 = scmp.ne.s32.totalorder %s159, %s161
      %p168 = scmp.eq.s32.totalorder %s25, 1
      %p169 = por %p167, %p168
      %p170 = scmp.ne.s32.totalorder %s161, %s162
      %p171 = scmp.eq.s32.totalorder %s25, 0
      %p172 = por %p170, %p171
      %p173 = scmp.ne.s32.totalorder %s161, %s162
      %p174 = scmp.eq.s32.totalorder %s26, 1
      %p175 = por %p173, %p174
      %p177 = scmp.ne.s32.totalorder %s162, %s176
      %p178 = scmp.eq.s32.totalorder %s26, 0
      %p179 = por %p177, %p178
      %s181 = sadd.s32 %s180, 1
      %p184 = scmp.eq.s32.totalorder %s20, 1
      %p185 = scmp.ne.s32.totalorder %s180, %s182
      %p186 = scmp.eq.s32.totalorder %s20, 0
      %p187 = por %p185, %p186
      %p188 = scmp.ne.s32.totalorder %s180, %s182
      %p189 = scmp.eq.s32.totalorder %s25, 1
      %p190 = por %p188, %p189
      %p191 = scmp.ne.s32.totalorder %s182, %s183
      %p192 = scmp.eq.s32.totalorder %s25, 0
      %p193 = por %p191, %p192
      %p194 = scmp.ne.s32.totalorder %s182, %s183
      %p195 = scmp.eq.s32.totalorder %s26, 1
      %p196 = por %p194, %p195
      %p198 = scmp.ne.s32.totalorder %s183, %s197
      %p199 = scmp.eq.s32.totalorder %s26, 0
      %p200 = por %p198, %p199
      %s202 = sadd.s32 %s201, 1
      %p205 = scmp.eq.s32.totalorder %s20, 1
      %p206 = scmp.ne.s32.totalorder %s201, %s203
      %p207 = scmp.eq.s32.totalorder %s20, 0
      %p208 = por %p206, %p207
      %p209 = scmp.ne.s32.totalorder %s201, %s203
      %p210 = scmp.eq.s32.totalorder %s25, 1
      %p211 = por %p209, %p210
      %p212 = scmp.ne.s32.totalorder %s203, %s204
      %p213 = scmp.eq.s32.totalorder %s25, 0
      %p214 = por %p212, %p213
      %p215 = scmp.ne.s32.totalorder %s203, %s204
      %p216 = scmp.eq.s32.totalorder %s26, 1
      %p217 = por %p215, %p216
      %p219 = scmp.ne.s32.totalorder %s204, %s218
      %p220 = scmp.eq.s32.totalorder %s26, 0
      %p221 = por %p219, %p220
      %s222 = ssub.s32 %s20, %s27
      %p223 = scmp.eq.s32.totalorder %s222, 0
      %s225 = sadd.s32 %s224, 1
      %s226 = scalar_select %p223, %s224, %s225
      %p229 = pneg %p223
      %p230 = scmp.eq.s32.totalorder %s20, 1
      %p231 = por %p229, %p230
      %p232 = scmp.ne.s32.totalorder %s224, %s227
      %p233 = scmp.eq.s32.totalorder %s20, 0
      %p234 = por %p232, %p233
      %p235 = scmp.ne.s32.totalorder %s224, %s227
      %p236 = scmp.eq.s32.totalorder %s25, 1
      %p237 = por %p235, %p236
      %p238 = scmp.ne.s32.totalorder %s227, %s228
      %p239 = scmp.eq.s32.totalorder %s25, 0
      %p240 = por %p238, %p239
      %p241 = scmp.ne.s32.totalorder %s227, %s228
      %p242 = scmp.eq.s32.totalorder %s26, 1
      %p243 = por %p241, %p242
      %p245 = scmp.ne.s32.totalorder %s228, %s244
      %p246 = scmp.eq.s32.totalorder %s26, 0
      %p247 = por %p245, %p246
      %p248 = scmp.le.s32.totalorder 1, %s20
      %p249 = scmp.lt.s32.totalorder %s20, 3
      %p250 = pnand %p248, %p249
      %p251 = pneg %p250
      // Predicated region
      $region9: #{tpu_custom_call.1} parent=5 // pred_check
        _
      $region10: #{tpu_custom_call.1} parent=5 // pred_check_branch
        %253 = sbr.rel (%p250) target = $region12
      $region11: #{tpu_custom_call.1} parent=5 // pred_region
        %s254 = ssub.s32 %s20, 1
        // Predicated region
        $region13: #{tpu_custom_call.1} parent=11 // pred_check
          %p255 = pneg %p67
        $region14: #{tpu_custom_call.1} parent=11 // pred_check_branch
          %257 = sbr.rel (%p255) target = $region16
        $region15: #{tpu_custom_call.1} parent=11 // pred_region
          _
        $region16: #{tpu_custom_call.1} parent=11 // pred_fallthru
          _
        // Predicated region
        $region17: #{tpu_custom_call.1} parent=11 // pred_check
          %p258 = pneg %p88
        $region18: #{tpu_custom_call.1} parent=11 // pred_check_branch
          %260 = sbr.rel (%p258) target = $region20
        $region19: #{tpu_custom_call.1} parent=11 // pred_region
          _
        $region20: #{tpu_custom_call.1} parent=11 // pred_fallthru
          _
        // Predicated region
        $region21: #{tpu_custom_call.1} parent=11 // pred_check
          %p261 = pneg %p109
        $region22: #{tpu_custom_call.1} parent=11 // pred_check_branch
          %263 = sbr.rel (%p261) target = $region24
        $region23: #{tpu_custom_call.1} parent=11 // pred_region
          _
        $region24: #{tpu_custom_call.1} parent=11 // pred_fallthru
          _
        // Predicated region
        $region25: #{tpu_custom_call.1} parent=11 // pred_check
          %p264 = pneg %p130
        $region26: #{tpu_custom_call.1} parent=11 // pred_check_branch
          %266 = sbr.rel (%p264) target = $region28
        $region27: #{tpu_custom_call.1} parent=11 // pred_region
          %268 = vsyncadd [#allocation3], 0
          %s269 = sshll.u32 %s4, 4
          %s270 = int_to_ptr.hbm [resolvable:$true] %s269
          %s271 = sshll.u32 [#allocation2], 4
          %s272 = int_to_ptr.vmem [resolvable:$true] %s271
          %277 = dma.hbm_to_vmem [thread:$0]  %s270, 8192, %s272, [#allocation3], 256, 256, 16
        $region28: #{tpu_custom_call.1} parent=11 // pred_fallthru
          _
        // Predicated region
        $region29: #{tpu_custom_call.1} parent=11 // pred_check
          %p278 = pneg %p151
        $region30: #{tpu_custom_call.1} parent=11 // pred_check_branch
          %280 = sbr.rel (%p278) target = $region32
        $region31: #{tpu_custom_call.1} parent=11 // pred_region
          %282 = vsyncadd [#allocation6], 0
          %s283 = sshll.u32 %s5, 4
          %s284 = int_to_ptr.hbm [resolvable:$true] %s283
          %s285 = sshll.u32 [#allocation5], 4
          %s286 = int_to_ptr.vmem [resolvable:$true] %s285
          %291 = dma.hbm_to_vmem [thread:$0]  %s284, 8192, %s286, [#allocation6], 256, 256, 16
        $region32: #{tpu_custom_call.1} parent=11 // pred_fallthru
          _
        // Predicated region
        $region33: #{tpu_custom_call.1} parent=11 // pred_check
          %p292 = pneg %p172
        $region34: #{tpu_custom_call.1} parent=11 // pred_check_branch
          %294 = sbr.rel (%p292) target = $region36
        $region35: #{tpu_custom_call.1} parent=11 // pred_region
          _
        $region36: #{tpu_custom_call.1} parent=11 // pred_fallthru
          _
        // Predicated region
        $region37: #{tpu_custom_call.1} parent=11 // pred_check
          %p295 = pneg %p193
        $region38: #{tpu_custom_call.1} parent=11 // pred_check_branch
          %297 = sbr.rel (%p295) target = $region40
        $region39: #{tpu_custom_call.1} parent=11 // pred_region
          %299 = vsyncadd [#allocation6], 0
          %s300 = sshll.u32 %s7, 4
          %s301 = int_to_ptr.hbm [resolvable:$true] %s300
          %s302 = sshll.u32 [#allocation7], 4
          %s303 = int_to_ptr.vmem [resolvable:$true] %s302
          %308 = dma.hbm_to_vmem [thread:$0]  %s301, 4096, %s303, [#allocation6], 64, 64, 4
        $region40: #{tpu_custom_call.1} parent=11 // pred_fallthru
          _
        // Predicated region
        $region41: #{tpu_custom_call.1} parent=11 // pred_check
          %p309 = pneg %p214
        $region42: #{tpu_custom_call.1} parent=11 // pred_check_branch
          %311 = sbr.rel (%p309) target = $region44
        $region43: #{tpu_custom_call.1} parent=11 // pred_region
          _
        $region44: #{tpu_custom_call.1} parent=11 // pred_fallthru
          _
      $region12: #{tpu_custom_call.1} parent=5 // pred_fallthru
        _
      %p312 = scmp.lt.s32.totalorder %s20, 2
      // Predicated region
      $region45: #{tpu_custom_call.1} parent=5 // pred_check
        %p313 = pneg %p312
      $region46: #{tpu_custom_call.1} parent=5 // pred_check_branch
        %315 = sbr.rel (%p313) target = $region48
      $region47: #{tpu_custom_call.1} parent=5 // pred_region
        // Predicated region
        $region49: #{tpu_custom_call.1} parent=47 // pred_check
          %p316 = pneg %p40
        $region50: #{tpu_custom_call.1} parent=47 // pred_check_branch
          %318 = sbr.rel (%p316) target = $region52
        $region51: #{tpu_custom_call.1} parent=47 // pred_region
          %s319 = smul.u32 8, %s20
          %p320 = scmp.lt.s32.totalorder %s319, 15
          %s321 = scalar_select %p320, %s319, 15
          %s322 = smul.addr %s321, 8
          %s323 = scalar_lea.vmem %s0, %s322
          %s324 = smul.u32 8, %s20
        $region52: #{tpu_custom_call.1} parent=47 // pred_fallthru
          _
      $region48: #{tpu_custom_call.1} parent=5 // pred_fallthru
        _
      %p325 = scmp.le.s32.totalorder 1, %s20
      %p326 = scmp.lt.s32.totalorder %s20, 3
      %p327 = pnand %p325, %p326
      %p328 = pneg %p327
      // Predicated region
      $region53: #{tpu_custom_call.1} parent=5 // pred_check
        _
      $region54: #{tpu_custom_call.1} parent=5 // pred_check_branch
        %330 = sbr.rel (%p327) target = $region56
      $region55: #{tpu_custom_call.1} parent=5 // pred_region
        %s331 = ssub.s32 %s20, 1
        // Predicated region
        $region57: #{tpu_custom_call.1} parent=55 // pred_check
          %p332 = pneg %p130
        $region58: #{tpu_custom_call.1} parent=55 // pred_check_branch
          %334 = sbr.rel (%p332) target = $region60
        $region59: #{tpu_custom_call.1} parent=55 // pred_region
          %336 = dma.done [#allocation3], 8192
        $region60: #{tpu_custom_call.1} parent=55 // pred_fallthru
          _
        // Predicated region
        $region61: #{tpu_custom_call.1} parent=55 // pred_check
          %p337 = pneg %p151
        $region62: #{tpu_custom_call.1} parent=55 // pred_check_branch
          %339 = sbr.rel (%p337) target = $region64
        $region63: #{tpu_custom_call.1} parent=55 // pred_region
          %341 = dma.done [#allocation6], 8192
        $region64: #{tpu_custom_call.1} parent=55 // pred_fallthru
          _
        // Predicated region
        $region65: #{tpu_custom_call.1} parent=55 // pred_check
          %p342 = pneg %p193
        $region66: #{tpu_custom_call.1} parent=55 // pred_check_branch
          %344 = sbr.rel (%p342) target = $region68
        $region67: #{tpu_custom_call.1} parent=55 // pred_region
          %346 = dma.done [#allocation6], 4096
        $region68: #{tpu_custom_call.1} parent=55 // pred_fallthru
          _
        %s347 = smul.u32 8, %s25
        %p348 = scmp.lt.s32.totalorder %s347, 15
        %s349 = scalar_select %p348, %s347, 15
        %s350 = smul.addr %s349, 8
        %s351 = scalar_lea.vmem %s0, %s350
        %p352 = pneg %p46
        %p353 = pneg %p43
        %p354 = pneg %p67
        %p355 = pneg %p64
        %p356 = pneg %p88
        %p357 = pneg %p85
        %p358 = pneg %p109
        %p359 = pneg %p106
        %p360 = pneg %p130
        %p361 = pneg %p127
        %p362 = pneg %p151
        %p363 = pneg %p148
        %p364 = pneg %p172
        %p365 = pneg %p169
        %p366 = pneg %p193
        %p367 = pneg %p190
        %p368 = pneg %p214
        %p369 = pneg %p211
        %p370 = pneg %p240
        %p371 = pneg %p237
        %s372 = sand.u32 %s227, 1
        %s373 = scalar_lea.sflag [#allocation4], %s372
        %s374 = sand.u32 %s227, 1
        %s375 = smul.addr %s374, 8
        %s376 = scalar_lea.vmem [#allocation8], %s375
        %s377 = smul.u32 8, %s25
        %p378 = scmp.lt.s32.totalorder %s377, 15
        %s379 = scalar_select %p378, %s377, 15
        %s380 = smul.addr %s379, 8
        %s381 = scalar_lea.vmem %s0, %s380
        %s382 = smul.u32 8, %s25
        %v384 = vld [vmem:[%s381] sm:$0xff]
        %v385 = vld [vmem:[%s381 + $0x8] sm:$0xff]
        %v386 = vld [vmem:[%s381 + $0x10] sm:$0xff]
        %v387 = vld [vmem:[%s381 + $0x18] sm:$0xff]
        %v388 = vld [vmem:[%s381 + $0x20] sm:$0xff]
        %v389 = vld [vmem:[%s381 + $0x28] sm:$0xff]
        %v390 = vld [vmem:[%s381 + $0x30] sm:$0xff]
        %v391 = vld [vmem:[%s381 + $0x38] sm:$0xff]
        %v392 = vpack.c.bf16 %v385, %v384
        %v393 = vpack.c.bf16 %v387, %v386
        %v394 = vpack.c.bf16 %v389, %v388
        %v395 = vpack.c.bf16 %v391, %v390
        %v396 = vld [vmem:[%s1] sm:$0x7]
        %v397 = vld [vmem:[%s2] sm:$0x1]
        %v399 = vperm.slane %v397, 0
        %vm401 = vcmask 48128
        %v403 = vsel %vm401, %v392, 0
        %v406 = vsel %vm401, %v393, 0
        %v409 = vsel %vm401, %v394, 0
        %v412 = vsel %vm401, %v395, 0
        %vm414 = vcmask 1042432
        %v416 = vsel %vm414, %v396, 0
        %418 = vmatpush.bf16.msra.mxu0 0
        %419 = vmatpush.bf16.msra.mxu0 0
        %420 = vmatpush.bf16.msra.mxu0 0
        %421 = vmatpush.bf16.msra.mxu0 0
        %422 = vmatpush.bf16.msra.mxu0 0
        %423 = vmatpush.bf16.msra.mxu0 0
        %424 = vmatpush.bf16.msra.mxu0 0
        %425 = vmatpush.bf16.msra.mxu0 %v416
        %426 = vmatmul.bf16.gmra.mxu0 %v403
        %v427 = vpop.f32.mrf.mxu0
        %v428 = vadd.f32 %v399, %v427
        %v429 = vpop.f32.mrf.mxu0
        %v430 = vadd.f32 %v399, %v429
        %431 = vmatmul.bf16.gmra.mxu0 %v406
        %v432 = vpop.f32.mrf.mxu0
        %v433 = vadd.f32 %v399, %v432
        %v434 = vpop.f32.mrf.mxu0
        %v435 = vadd.f32 %v399, %v434
        %436 = vmatmul.bf16.gmra.mxu0 %v409
        %v437 = vpop.f32.mrf.mxu0
        %v438 = vadd.f32 %v399, %v437
        %v439 = vpop.f32.mrf.mxu0
        %v440 = vadd.f32 %v399, %v439
        %441 = vmatmul.bf16.gmra.mxu0 %v412
        %v442 = vpop.f32.mrf.mxu0
        %v443 = vadd.f32 %v399, %v442
        %v444 = vpop.f32.mrf.mxu0
        %v445 = vadd.f32 %v399, %v444
        %446 = vdwg.mxu0
        %v447 = vmax.f32 %v428, 0.0
        %v448 = vmax.f32 %v430, 0.0
        %v449 = vmax.f32 %v433, 0.0
        %v450 = vmax.f32 %v435, 0.0
        %v451 = vmax.f32 %v438, 0.0
        %v452 = vmax.f32 %v440, 0.0
        %v453 = vmax.f32 %v443, 0.0
        %v454 = vmax.f32 %v445, 0.0
        %v455 = vpack.c.bf16 %v448, %v447
        %v456 = vpack.c.bf16 %v450, %v449
        %v457 = vpack.c.bf16 %v452, %v451
        %v458 = vpack.c.bf16 %v454, %v453
        %v459 = vld [vmem:[%s3] sm:$0xff]
        %v460 = vld [vmem:[%s3 + $0x8] sm:$0xff]
        %v461 = vld [vmem:[%s3 + $0x10] sm:$0xff]
        %v462 = vld [vmem:[%s3 + $0x18] sm:$0xff]
        %v463 = vld [vmem:[%s3 + $0x20] sm:$0xff]
        %v464 = vld [vmem:[%s3 + $0x28] sm:$0xff]
        %v465 = vld [vmem:[%s3 + $0x30] sm:$0xff]
        %v466 = vld [vmem:[%s3 + $0x38] sm:$0xff]
        %v467 = vld [vmem:[%s3 + $0x40] sm:$0xff]
        %v468 = vld [vmem:[%s3 + $0x48] sm:$0xff]
        %v469 = vld [vmem:[%s3 + $0x50] sm:$0xff]
        %v470 = vld [vmem:[%s3 + $0x58] sm:$0xff]
        %v471 = vld [vmem:[%s3 + $0x60] sm:$0xff]
        %v472 = vld [vmem:[%s3 + $0x68] sm:$0xff]
        %v473 = vld [vmem:[%s3 + $0x70] sm:$0xff]
        %v474 = vld [vmem:[%s3 + $0x78] sm:$0xff]
        %v491 = vunpack.c.l.b16 %v459
        %v492 = vunpack.c.h.b16 %v459
        %v493 = vunpack.c.l.b16 %v460
        %v494 = vunpack.c.h.b16 %v460
        %v495 = vunpack.c.l.b16 %v461
        %v496 = vunpack.c.h.b16 %v461
        %v497 = vunpack.c.l.b16 %v462
        %v498 = vunpack.c.h.b16 %v462
        %v499 = vunpack.c.l.b16 %v463
        %v500 = vunpack.c.h.b16 %v463
        %v501 = vunpack.c.l.b16 %v464
        %v502 = vunpack.c.h.b16 %v464
        %v503 = vunpack.c.l.b16 %v465
        %v504 = vunpack.c.h.b16 %v465
        %v505 = vunpack.c.l.b16 %v466
        %v506 = vunpack.c.h.b16 %v466
        %v507 = vunpack.c.l.b16 %v467
        %v508 = vunpack.c.h.b16 %v467
        %v509 = vunpack.c.l.b16 %v468
        %v510 = vunpack.c.h.b16 %v468
        %v511 = vunpack.c.l.b16 %v469
        %v512 = vunpack.c.h.b16 %v469
        %v513 = vunpack.c.l.b16 %v470
        %v514 = vunpack.c.h.b16 %v470
        %v515 = vunpack.c.l.b16 %v471
        %v516 = vunpack.c.h.b16 %v471
        %v517 = vunpack.c.l.b16 %v472
        %v518 = vunpack.c.h.b16 %v472
        %v519 = vunpack.c.l.b16 %v473
        %v520 = vunpack.c.h.b16 %v473
        %v521 = vunpack.c.l.b16 %v474
        %v522 = vunpack.c.h.b16 %v474
        %v523 = vpack.c.b16 %v493, %v491
        %v524 = vpack.c.b16 %v494, %v492
        %v525 = vpack.c.b16 %v497, %v495
        %v526 = vpack.c.b16 %v498, %v496
        %v527 = vpack.c.b16 %v501, %v499
        %v528 = vpack.c.b16 %v502, %v500
        %v529 = vpack.c.b16 %v505, %v503
        %v530 = vpack.c.b16 %v506, %v504
        %v531 = vpack.c.b16 %v509, %v507
        %v532 = vpack.c.b16 %v510, %v508
        %v533 = vpack.c.b16 %v513, %v511
        %v534 = vpack.c.b16 %v514, %v512
        %v535 = vpack.c.b16 %v517, %v515
        %v536 = vpack.c.b16 %v518, %v516
        %v537 = vpack.c.b16 %v521, %v519
        %v538 = vpack.c.b16 %v522, %v520
        %555 = vmatpush.bf16.msra.mxu0 %v537
        %556 = vmatpush.bf16.msra.mxu0 %v535
        %557 = vmatpush.bf16.msra.mxu0 %v533
        %558 = vmatpush.bf16.msra.mxu0 %v531
        %559 = vmatpush.bf16.msra.mxu0 %v529
        %560 = vmatpush.bf16.msra.mxu0 %v527
        %561 = vmatpush.bf16.msra.mxu0 %v525
        %562 = vmatpush.bf16.msra.mxu0 %v523
        %563 = vmatmul.bf16.gmra.mxu0 %v455
        %v564 = vpop.f32.mrf.mxu0
        %v565 = vadd.f32 0.0, %v564
        %v566 = vpop.f32.mrf.mxu0
        %v567 = vadd.f32 0.0, %v566
        %568 = vmatmul.bf16.gmra.mxu0 %v456
        %v569 = vpop.f32.mrf.mxu0
        %v570 = vadd.f32 0.0, %v569
        %v571 = vpop.f32.mrf.mxu0
        %v572 = vadd.f32 0.0, %v571
        %573 = vmatmul.bf16.gmra.mxu0 %v457
        %v574 = vpop.f32.mrf.mxu0
        %v575 = vadd.f32 0.0, %v574
        %v576 = vpop.f32.mrf.mxu0
        %v577 = vadd.f32 0.0, %v576
        %578 = vmatmul.bf16.gmra.mxu0 %v458
        %v579 = vpop.f32.mrf.mxu0
        %v580 = vadd.f32 0.0, %v579
        %v581 = vpop.f32.mrf.mxu0
        %v582 = vadd.f32 0.0, %v581
        %583 = vdwg.mxu0
        %584 = vmatpush.bf16.msra.mxu0 %v538
        %585 = vmatpush.bf16.msra.mxu0 %v536
        %586 = vmatpush.bf16.msra.mxu0 %v534
        %587 = vmatpush.bf16.msra.mxu0 %v532
        %588 = vmatpush.bf16.msra.mxu0 %v530
        %589 = vmatpush.bf16.msra.mxu0 %v528
        %590 = vmatpush.bf16.msra.mxu0 %v526
        %591 = vmatpush.bf16.msra.mxu0 %v524
        %592 = vmatmul.bf16.gmra.mxu0 %v455
        %v593 = vpop.f32.mrf.mxu0
        %v594 = vadd.f32 0.0, %v593
        %v595 = vpop.f32.mrf.mxu0
        %v596 = vadd.f32 0.0, %v595
        %597 = vmatmul.bf16.gmra.mxu0 %v456
        %v598 = vpop.f32.mrf.mxu0
        %v599 = vadd.f32 0.0, %v598
        %v600 = vpop.f32.mrf.mxu0
        %v601 = vadd.f32 0.0, %v600
        %602 = vmatmul.bf16.gmra.mxu0 %v457
        %v603 = vpop.f32.mrf.mxu0
        %v604 = vadd.f32 0.0, %v603
        %v605 = vpop.f32.mrf.mxu0
        %v606 = vadd.f32 0.0, %v605
        %607 = vmatmul.bf16.gmra.mxu0 %v458
        %v608 = vpop.f32.mrf.mxu0
        %v609 = vadd.f32 0.0, %v608
        %v610 = vpop.f32.mrf.mxu0
        %v611 = vadd.f32 0.0, %v610
        %612 = vdwg.mxu0
        %v613 = vrot.slane %v565, 4
        %v614 = vmax.f32 %v565, %v613
        %v615 = vrot.slane %v614, 2
        %v616 = vmax.f32 %v614, %v615
        %v617 = vrot.slane %v616, 1
        %v618 = vmax.f32 %v616, %v617
        %v619 = vrot.slane %v594, 4
        %v620 = vmax.f32 %v594, %v619
        %v621 = vrot.slane %v620, 2
        %v622 = vmax.f32 %v620, %v621
        %v623 = vrot.slane %v622, 1
        %v624 = vmax.f32 %v622, %v623
        %v625 = vrot.slane %v567, 4
        %v626 = vmax.f32 %v567, %v625
        %v627 = vrot.slane %v626, 2
        %v628 = vmax.f32 %v626, %v627
        %v629 = vrot.slane %v628, 1
        %v630 = vmax.f32 %v628, %v629
        %v631 = vrot.slane %v596, 4
        %v632 = vmax.f32 %v596, %v631
        %v633 = vrot.slane %v632, 2
        %v634 = vmax.f32 %v632, %v633
        %v635 = vrot.slane %v634, 1
        %v636 = vmax.f32 %v634, %v635
        %v637 = vrot.slane %v570, 4
        %v638 = vmax.f32 %v570, %v637
        %v639 = vrot.slane %v638, 2
        %v640 = vmax.f32 %v638, %v639
        %v641 = vrot.slane %v640, 1
        %v642 = vmax.f32 %v640, %v641
        %v643 = vrot.slane %v599, 4
        %v644 = vmax.f32 %v599, %v643
        %v645 = vrot.slane %v644, 2
        %v646 = vmax.f32 %v644, %v645
        %v647 = vrot.slane %v646, 1
        %v648 = vmax.f32 %v646, %v647
        %v649 = vrot.slane %v572, 4
        %v650 = vmax.f32 %v572, %v649
        %v651 = vrot.slane %v650, 2
        %v652 = vmax.f32 %v650, %v651
        %v653 = vrot.slane %v652, 1
        %v654 = vmax.f32 %v652, %v653
        %v655 = vrot.slane %v601, 4
        %v656 = vmax.f32 %v601, %v655
        %v657 = vrot.slane %v656, 2
        %v658 = vmax.f32 %v656, %v657
        %v659 = vrot.slane %v658, 1
        %v660 = vmax.f32 %v658, %v659
        %v661 = vrot.slane %v575, 4
        %v662 = vmax.f32 %v575, %v661
        %v663 = vrot.slane %v662, 2
        %v664 = vmax.f32 %v662, %v663
        %v665 = vrot.slane %v664, 1
        %v666 = vmax.f32 %v664, %v665
        %v667 = vrot.slane %v604, 4
        %v668 = vmax.f32 %v604, %v667
        %v669 = vrot.slane %v668, 2
        %v670 = vmax.f32 %v668, %v669
        %v671 = vrot.slane %v670, 1
        %v672 = vmax.f32 %v670, %v671
        %v673 = vrot.slane %v577, 4
        %v674 = vmax.f32 %v577, %v673
        %v675 = vrot.slane %v674, 2
        %v676 = vmax.f32 %v674, %v675
        %v677 = vrot.slane %v676, 1
        %v678 = vmax.f32 %v676, %v677
        %v679 = vrot.slane %v606, 4
        %v680 = vmax.f32 %v606, %v679
        %v681 = vrot.slane %v680, 2
        %v682 = vmax.f32 %v680, %v681
        %v683 = vrot.slane %v682, 1
        %v684 = vmax.f32 %v682, %v683
        %v685 = vrot.slane %v580, 4
        %v686 = vmax.f32 %v580, %v685
        %v687 = vrot.slane %v686, 2
        %v688 = vmax.f32 %v686, %v687
        %v689 = vrot.slane %v688, 1
        %v690 = vmax.f32 %v688, %v689
        %v691 = vrot.slane %v609, 4
        %v692 = vmax.f32 %v609, %v691
        %v693 = vrot.slane %v692, 2
        %v694 = vmax.f32 %v692, %v693
        %v695 = vrot.slane %v694, 1
        %v696 = vmax.f32 %v694, %v695
        %v697 = vrot.slane %v582, 4
        %v698 = vmax.f32 %v582, %v697
        %v699 = vrot.slane %v698, 2
        %v700 = vmax.f32 %v698, %v699
        %v701 = vrot.slane %v700, 1
        %v702 = vmax.f32 %v700, %v701
        %v703 = vrot.slane %v611, 4
        %v704 = vmax.f32 %v611, %v703
        %v705 = vrot.slane %v704, 2
        %v706 = vmax.f32 %v704, %v705
        %v707 = vrot.slane %v706, 1
        %v708 = vmax.f32 %v706, %v707
        %v709 = vpack.c.bf16 %v618, %v618
        %v710 = vpack.c.bf16 %v624, %v624
        %v711 = vpack.c.bf16 %v630, %v630
        %v712 = vpack.c.bf16 %v636, %v636
        %v713 = vpack.c.bf16 %v642, %v642
        %v714 = vpack.c.bf16 %v648, %v648
        %v715 = vpack.c.bf16 %v654, %v654
        %v716 = vpack.c.bf16 %v660, %v660
        %v717 = vpack.c.bf16 %v666, %v666
        %v718 = vpack.c.bf16 %v672, %v672
        %v719 = vpack.c.bf16 %v678, %v678
        %v720 = vpack.c.bf16 %v684, %v684
        %v721 = vpack.c.bf16 %v690, %v690
        %v722 = vpack.c.bf16 %v696, %v696
        %v723 = vpack.c.bf16 %v702, %v702
        %v724 = vpack.c.bf16 %v708, %v708
        %v725 = vld [vmem:[#allocation2] sm:$0xff]
        %v726 = vld [vmem:[#allocation2 + $0x8] sm:$0xff]
        %v727 = vld [vmem:[#allocation2 + $0x10] sm:$0xff]
        %v728 = vld [vmem:[#allocation2 + $0x18] sm:$0xff]
        %v729 = vld [vmem:[#allocation2 + $0x20] sm:$0xff]
        %v730 = vld [vmem:[#allocation2 + $0x28] sm:$0xff]
        %v731 = vld [vmem:[#allocation2 + $0x30] sm:$0xff]
        %v732 = vld [vmem:[#allocation2 + $0x38] sm:$0xff]
        %v733 = vld [vmem:[#allocation2 + $0x40] sm:$0xff]
        %v734 = vld [vmem:[#allocation2 + $0x48] sm:$0xff]
        %v735 = vld [vmem:[#allocation2 + $0x50] sm:$0xff]
        %v736 = vld [vmem:[#allocation2 + $0x58] sm:$0xff]
        %v737 = vld [vmem:[#allocation2 + $0x60] sm:$0xff]
        %v738 = vld [vmem:[#allocation2 + $0x68] sm:$0xff]
        %v739 = vld [vmem:[#allocation2 + $0x70] sm:$0xff]
        %v740 = vld [vmem:[#allocation2 + $0x78] sm:$0xff]
        %v741 = vld [vmem:[#allocation2 + $0x80] sm:$0xff]
        %v742 = vld [vmem:[#allocation2 + $0x88] sm:$0xff]
        %v743 = vld [vmem:[#allocation2 + $0x90] sm:$0xff]
        %v744 = vld [vmem:[#allocation2 + $0x98] sm:$0xff]
        %v745 = vld [vmem:[#allocation2 + $0xa0] sm:$0xff]
        %v746 = vld [vmem:[#allocation2 + $0xa8] sm:$0xff]
        %v747 = vld [vmem:[#allocation2 + $0xb0] sm:$0xff]
        %v748 = vld [vmem:[#allocation2 + $0xb8] sm:$0xff]
        %v749 = vld [vmem:[#allocation2 + $0xc0] sm:$0xff]
        %v750 = vld [vmem:[#allocation2 + $0xc8] sm:$0xff]
        %v751 = vld [vmem:[#allocation2 + $0xd0] sm:$0xff]
        %v752 = vld [vmem:[#allocation2 + $0xd8] sm:$0xff]
        %v753 = vld [vmem:[#allocation2 + $0xe0] sm:$0xff]
        %v754 = vld [vmem:[#allocation2 + $0xe8] sm:$0xff]
        %v755 = vld [vmem:[#allocation2 + $0xf0] sm:$0xff]
        %v756 = vld [vmem:[#allocation2 + $0xf8] sm:$0xff]
        %v757 = vld [vmem:[#allocation2 + $0x100] sm:$0xff]
        %v758 = vld [vmem:[#allocation2 + $0x108] sm:$0xff]
        %v759 = vld [vmem:[#allocation2 + $0x110] sm:$0xff]
        %v760 = vld [vmem:[#allocation2 + $0x118] sm:$0xff]
        %v761 = vld [vmem:[#allocation2 + $0x120] sm:$0xff]
        %v762 = vld [vmem:[#allocation2 + $0x128] sm:$0xff]
        %v763 = vld [vmem:[#allocation2 + $0x130] sm:$0xff]
        %v764 = vld [vmem:[#allocation2 + $0x138] sm:$0xff]
        %v765 = vld [vmem:[#allocation2 + $0x140] sm:$0xff]
        %v766 = vld [vmem:[#allocation2 + $0x148] sm:$0xff]
        %v767 = vld [vmem:[#allocation2 + $0x150] sm:$0xff]
        %v768 = vld [vmem:[#allocation2 + $0x158] sm:$0xff]
        %v769 = vld [vmem:[#allocation2 + $0x160] sm:$0xff]
        %v770 = vld [vmem:[#allocation2 + $0x168] sm:$0xff]
        %v771 = vld [vmem:[#allocation2 + $0x170] sm:$0xff]
        %v772 = vld [vmem:[#allocation2 + $0x178] sm:$0xff]
        %v773 = vld [vmem:[#allocation2 + $0x180] sm:$0xff]
        %v774 = vld [vmem:[#allocation2 + $0x188] sm:$0xff]
        %v775 = vld [vmem:[#allocation2 + $0x190] sm:$0xff]
        %v776 = vld [vmem:[#allocation2 + $0x198] sm:$0xff]
        %v777 = vld [vmem:[#allocation2 + $0x1a0] sm:$0xff]
        %v778 = vld [vmem:[#allocation2 + $0x1a8] sm:$0xff]
        %v779 = vld [vmem:[#allocation2 + $0x1b0] sm:$0xff]
        %v780 = vld [vmem:[#allocation2 + $0x1b8] sm:$0xff]
        %v781 = vld [vmem:[#allocation2 + $0x1c0] sm:$0xff]
        %v782 = vld [vmem:[#allocation2 + $0x1c8] sm:$0xff]
        %v783 = vld [vmem:[#allocation2 + $0x1d0] sm:$0xff]
        %v784 = vld [vmem:[#allocation2 + $0x1d8] sm:$0xff]
        %v785 = vld [vmem:[#allocation2 + $0x1e0] sm:$0xff]
        %v786 = vld [vmem:[#allocation2 + $0x1e8] sm:$0xff]
        %v787 = vld [vmem:[#allocation2 + $0x1f0] sm:$0xff]
        %v788 = vld [vmem:[#allocation2 + $0x1f8] sm:$0xff]
        %v789 = vld [vmem:[%s6] sm:$0xf]
        %v791 = vperm.slane %v789, 0
        %v792 = vperm.slane %v789, 1
        %v793 = vperm.slane %v789, 2
        %v794 = vperm.slane %v789, 3
        %v815 = vunpack.c.l.b16 %v709
        %v816 = vunpack.c.l.b16 %v710
        %v817 = vunpack.c.l.b16 %v711
        %v818 = vunpack.c.l.b16 %v712
        %v819 = vunpack.c.l.b16 %v713
        %v820 = vunpack.c.l.b16 %v714
        %v821 = vunpack.c.l.b16 %v715
        %v822 = vunpack.c.l.b16 %v716
        %v823 = vunpack.c.l.b16 %v717
        %v824 = vunpack.c.l.b16 %v718
        %v825 = vunpack.c.l.b16 %v719
        %v826 = vunpack.c.l.b16 %v720
        %v827 = vunpack.c.l.b16 %v721
        %v828 = vunpack.c.l.b16 %v722
        %v829 = vunpack.c.l.b16 %v723
        %v830 = vunpack.c.l.b16 %v724
        %vm831 = vcmask 1041409
        %v832 = vsel %vm831, %v817, %v815
        %vm833 = vcmask 1042434
        %v834 = vsel %vm833, %v819, %v832
        %vm835 = vcmask 1043459
        %v836 = vsel %vm835, %v821, %v834
        %vm837 = vcmask 1044484
        %v838 = vsel %vm837, %v823, %v836
        %vm839 = vcmask 1045509
        %v840 = vsel %vm839, %v825, %v838
        %vm841 = vcmask 1046534
        %v842 = vsel %vm841, %v827, %v840
        %vm843 = vcmask 1047559
        %v844 = vsel %vm843, %v829, %v842
        %v845 = vsel %vm831, %v818, %v816
        %v846 = vsel %vm833, %v820, %v845
        %v847 = vsel %vm835, %v822, %v846
        %v848 = vsel %vm837, %v824, %v847
        %v849 = vsel %vm839, %v826, %v848
        %v850 = vsel %vm841, %v828, %v849
        %v851 = vsel %vm843, %v830, %v850
        %v852 = vpack.c.b16 %v844, %v844
        %v853 = vpack.c.b16 %v851, %v851
        %v920 = vunpack.c.l.b16 %v725
        %v921 = vunpack.c.h.b16 %v725
        %v922 = vunpack.c.l.b16 %v726
        %v923 = vunpack.c.h.b16 %v726
        %v924 = vunpack.c.l.b16 %v727
        %v925 = vunpack.c.h.b16 %v727
        %v926 = vunpack.c.l.b16 %v728
        %v927 = vunpack.c.h.b16 %v728
        %v928 = vunpack.c.l.b16 %v729
        %v929 = vunpack.c.h.b16 %v729
        %v930 = vunpack.c.l.b16 %v730
        %v931 = vunpack.c.h.b16 %v730
        %v932 = vunpack.c.l.b16 %v731
        %v933 = vunpack.c.h.b16 %v731
        %v934 = vunpack.c.l.b16 %v732
        %v935 = vunpack.c.h.b16 %v732
        %v936 = vunpack.c.l.b16 %v733
        %v937 = vunpack.c.h.b16 %v733
        %v938 = vunpack.c.l.b16 %v734
        %v939 = vunpack.c.h.b16 %v734
        %v940 = vunpack.c.l.b16 %v735
        %v941 = vunpack.c.h.b16 %v735
        %v942 = vunpack.c.l.b16 %v736
        %v943 = vunpack.c.h.b16 %v736
        %v944 = vunpack.c.l.b16 %v737
        %v945 = vunpack.c.h.b16 %v737
        %v946 = vunpack.c.l.b16 %v738
        %v947 = vunpack.c.h.b16 %v738
        %v948 = vunpack.c.l.b16 %v739
        %v949 = vunpack.c.h.b16 %v739
        %v950 = vunpack.c.l.b16 %v740
        %v951 = vunpack.c.h.b16 %v740
        %v952 = vunpack.c.l.b16 %v741
        %v953 = vunpack.c.h.b16 %v741
        %v954 = vunpack.c.l.b16 %v742
        %v955 = vunpack.c.h.b16 %v742
        %v956 = vunpack.c.l.b16 %v743
        %v957 = vunpack.c.h.b16 %v743
        %v958 = vunpack.c.l.b16 %v744
        %v959 = vunpack.c.h.b16 %v744
        %v960 = vunpack.c.l.b16 %v745
        %v961 = vunpack.c.h.b16 %v745
        %v962 = vunpack.c.l.b16 %v746
        %v963 = vunpack.c.h.b16 %v746
        %v964 = vunpack.c.l.b16 %v747
        %v965 = vunpack.c.h.b16 %v747
        %v966 = vunpack.c.l.b16 %v748
        %v967 = vunpack.c.h.b16 %v748
        %v968 = vunpack.c.l.b16 %v749
        %v969 = vunpack.c.h.b16 %v749
        %v970 = vunpack.c.l.b16 %v750
        %v971 = vunpack.c.h.b16 %v750
        %v972 = vunpack.c.l.b16 %v751
        %v973 = vunpack.c.h.b16 %v751
        %v974 = vunpack.c.l.b16 %v752
        %v975 = vunpack.c.h.b16 %v752
        %v976 = vunpack.c.l.b16 %v753
        %v977 = vunpack.c.h.b16 %v753
        %v978 = vunpack.c.l.b16 %v754
        %v979 = vunpack.c.h.b16 %v754
        %v980 = vunpack.c.l.b16 %v755
        %v981 = vunpack.c.h.b16 %v755
        %v982 = vunpack.c.l.b16 %v756
        %v983 = vunpack.c.h.b16 %v756
        %v984 = vunpack.c.l.b16 %v757
        %v985 = vunpack.c.h.b16 %v757
        %v986 = vunpack.c.l.b16 %v758
        %v987 = vunpack.c.h.b16 %v758
        %v988 = vunpack.c.l.b16 %v759
        %v989 = vunpack.c.h.b16 %v759
        %v990 = vunpack.c.l.b16 %v760
        %v991 = vunpack.c.h.b16 %v760
        %v992 = vunpack.c.l.b16 %v761
        %v993 = vunpack.c.h.b16 %v761
        %v994 = vunpack.c.l.b16 %v762
        %v995 = vunpack.c.h.b16 %v762
        %v996 = vunpack.c.l.b16 %v763
        %v997 = vunpack.c.h.b16 %v763
        %v998 = vunpack.c.l.b16 %v764
        %v999 = vunpack.c.h.b16 %v764
        %v1000 = vunpack.c.l.b16 %v765
        %v1001 = vunpack.c.h.b16 %v765
        %v1002 = vunpack.c.l.b16 %v766
        %v1003 = vunpack.c.h.b16 %v766
        %v1004 = vunpack.c.l.b16 %v767
        %v1005 = vunpack.c.h.b16 %v767
        %v1006 = vunpack.c.l.b16 %v768
        %v1007 = vunpack.c.h.b16 %v768
        %v1008 = vunpack.c.l.b16 %v769
        %v1009 = vunpack.c.h.b16 %v769
        %v1010 = vunpack.c.l.b16 %v770
        %v1011 = vunpack.c.h.b16 %v770
        %v1012 = vunpack.c.l.b16 %v771
        %v1013 = vunpack.c.h.b16 %v771
        %v1014 = vunpack.c.l.b16 %v772
        %v1015 = vunpack.c.h.b16 %v772
        %v1016 = vunpack.c.l.b16 %v773
        %v1017 = vunpack.c.h.b16 %v773
        %v1018 = vunpack.c.l.b16 %v774
        %v1019 = vunpack.c.h.b16 %v774
        %v1020 = vunpack.c.l.b16 %v775
        %v1021 = vunpack.c.h.b16 %v775
        %v1022 = vunpack.c.l.b16 %v776
        %v1023 = vunpack.c.h.b16 %v776
        %v1024 = vunpack.c.l.b16 %v777
        %v1025 = vunpack.c.h.b16 %v777
        %v1026 = vunpack.c.l.b16 %v778
        %v1027 = vunpack.c.h.b16 %v778
        %v1028 = vunpack.c.l.b16 %v779
        %v1029 = vunpack.c.h.b16 %v779
        %v1030 = vunpack.c.l.b16 %v780
        %v1031 = vunpack.c.h.b16 %v780
        %v1032 = vunpack.c.l.b16 %v781
        %v1033 = vunpack.c.h.b16 %v781
        %v1034 = vunpack.c.l.b16 %v782
        %v1035 = vunpack.c.h.b16 %v782
        %v1036 = vunpack.c.l.b16 %v783
        %v1037 = vunpack.c.h.b16 %v783
        %v1038 = vunpack.c.l.b16 %v784
        %v1039 = vunpack.c.h.b16 %v784
        %v1040 = vunpack.c.l.b16 %v785
        %v1041 = vunpack.c.h.b16 %v785
        %v1042 = vunpack.c.l.b16 %v786
        %v1043 = vunpack.c.h.b16 %v786
        %v1044 = vunpack.c.l.b16 %v787
        %v1045 = vunpack.c.h.b16 %v787
        %v1046 = vunpack.c.l.b16 %v788
        %v1047 = vunpack.c.h.b16 %v788
        %v1048 = vpack.c.b16 %v924, %v920
        %v1049 = vpack.c.b16 %v925, %v921
        %v1050 = vpack.c.b16 %v926, %v922
        %v1051 = vpack.c.b16 %v927, %v923
        %v1052 = vpack.c.b16 %v932, %v928
        %v1053 = vpack.c.b16 %v933, %v929
        %v1054 = vpack.c.b16 %v934, %v930
        %v1055 = vpack.c.b16 %v935, %v931
        %v1056 = vpack.c.b16 %v940, %v936
        %v1057 = vpack.c.b16 %v941, %v937
        %v1058 = vpack.c.b16 %v942, %v938
        %v1059 = vpack.c.b16 %v943, %v939
        %v1060 = vpack.c.b16 %v948, %v944
        %v1061 = vpack.c.b16 %v949, %v945
        %v1062 = vpack.c.b16 %v950, %v946
        %v1063 = vpack.c.b16 %v951, %v947
        %v1064 = vpack.c.b16 %v956, %v952
        %v1065 = vpack.c.b16 %v957, %v953
        %v1066 = vpack.c.b16 %v958, %v954
        %v1067 = vpack.c.b16 %v959, %v955
        %v1068 = vpack.c.b16 %v964, %v960
        %v1069 = vpack.c.b16 %v965, %v961
        %v1070 = vpack.c.b16 %v966, %v962
        %v1071 = vpack.c.b16 %v967, %v963
        %v1072 = vpack.c.b16 %v972, %v968
        %v1073 = vpack.c.b16 %v973, %v969
        %v1074 = vpack.c.b16 %v974, %v970
        %v1075 = vpack.c.b16 %v975, %v971
        %v1076 = vpack.c.b16 %v980, %v976
        %v1077 = vpack.c.b16 %v981, %v977
        %v1078 = vpack.c.b16 %v982, %v978
        %v1079 = vpack.c.b16 %v983, %v979
        %v1080 = vpack.c.b16 %v988, %v984
        %v1081 = vpack.c.b16 %v989, %v985
        %v1082 = vpack.c.b16 %v990, %v986
        %v1083 = vpack.c.b16 %v991, %v987
        %v1084 = vpack.c.b16 %v996, %v992
        %v1085 = vpack.c.b16 %v997, %v993
        %v1086 = vpack.c.b16 %v998, %v994
        %v1087 = vpack.c.b16 %v999, %v995
        %v1088 = vpack.c.b16 %v1004, %v1000
        %v1089 = vpack.c.b16 %v1005, %v1001
        %v1090 = vpack.c.b16 %v1006, %v1002
        %v1091 = vpack.c.b16 %v1007, %v1003
        %v1092 = vpack.c.b16 %v1012, %v1008
        %v1093 = vpack.c.b16 %v1013, %v1009
        %v1094 = vpack.c.b16 %v1014, %v1010
        %v1095 = vpack.c.b16 %v1015, %v1011
        %v1096 = vpack.c.b16 %v1020, %v1016
        %v1097 = vpack.c.b16 %v1021, %v1017
        %v1098 = vpack.c.b16 %v1022, %v1018
        %v1099 = vpack.c.b16 %v1023, %v1019
        %v1100 = vpack.c.b16 %v1028, %v1024
        %v1101 = vpack.c.b16 %v1029, %v1025
        %v1102 = vpack.c.b16 %v1030, %v1026
        %v1103 = vpack.c.b16 %v1031, %v1027
        %v1104 = vpack.c.b16 %v1036, %v1032
        %v1105 = vpack.c.b16 %v1037, %v1033
        %v1106 = vpack.c.b16 %v1038, %v1034
        %v1107 = vpack.c.b16 %v1039, %v1035
        %v1108 = vpack.c.b16 %v1044, %v1040
        %v1109 = vpack.c.b16 %v1045, %v1041
        %v1110 = vpack.c.b16 %v1046, %v1042
        %v1111 = vpack.c.b16 %v1047, %v1043
        %1176 = vmatpush.bf16.msra.mxu0 %v1076
        %1177 = vmatpush.bf16.msra.mxu0 %v1072
        %1178 = vmatpush.bf16.msra.mxu0 %v1068
        %1179 = vmatpush.bf16.msra.mxu0 %v1064
        %1180 = vmatpush.bf16.msra.mxu0 %v1060
        %1181 = vmatpush.bf16.msra.mxu0 %v1056
        %1182 = vmatpush.bf16.msra.mxu0 %v1052
        %1183 = vmatpush.bf16.msra.mxu0 %v1048
        %1184 = vmatmul.bf16.gmra.mxu0 %v852
        %v1185 = vpop.f32.mrf.mxu0
        %v1186 = vadd.f32 %v791, %v1185
        %v1187 = vpop.f32.mrf.mxu0
        %1188 = vdwg.mxu0
        %1189 = vmatpush.bf16.msra.mxu0 %v1108
        %1190 = vmatpush.bf16.msra.mxu0 %v1104
        %1191 = vmatpush.bf16.msra.mxu0 %v1100
        %1192 = vmatpush.bf16.msra.mxu0 %v1096
        %1193 = vmatpush.bf16.msra.mxu0 %v1092
        %1194 = vmatpush.bf16.msra.mxu0 %v1088
        %1195 = vmatpush.bf16.msra.mxu0 %v1084
        %1196 = vmatpush.bf16.msra.mxu0 %v1080
        %1197 = vmatmul.bf16.gmra.mxu0 %v853
        %v1198 = vpop.f32.mrf.mxu0
        %v1199 = vadd.f32 %v1186, %v1198
        %v1200 = vpop.f32.mrf.mxu0
        %1201 = vdwg.mxu0
        %1202 = vmatpush.bf16.msra.mxu0 %v1077
        %1203 = vmatpush.bf16.msra.mxu0 %v1073
        %1204 = vmatpush.bf16.msra.mxu0 %v1069
        %1205 = vmatpush.bf16.msra.mxu0 %v1065
        %1206 = vmatpush.bf16.msra.mxu0 %v1061
        %1207 = vmatpush.bf16.msra.mxu0 %v1057
        %1208 = vmatpush.bf16.msra.mxu0 %v1053
        %1209 = vmatpush.bf16.msra.mxu0 %v1049
        %1210 = vmatmul.bf16.gmra.mxu0 %v852
        %v1211 = vpop.f32.mrf.mxu0
        %v1212 = vadd.f32 %v792, %v1211
        %v1213 = vpop.f32.mrf.mxu0
        %1214 = vdwg.mxu0
        %1215 = vmatpush.bf16.msra.mxu0 %v1109
        %1216 = vmatpush.bf16.msra.mxu0 %v1105
        %1217 = vmatpush.bf16.msra.mxu0 %v1101
        %1218 = vmatpush.bf16.msra.mxu0 %v1097
        %1219 = vmatpush.bf16.msra.mxu0 %v1093
        %1220 = vmatpush.bf16.msra.mxu0 %v1089
        %1221 = vmatpush.bf16.msra.mxu0 %v1085
        %1222 = vmatpush.bf16.msra.mxu0 %v1081
        %1223 = vmatmul.bf16.gmra.mxu0 %v853
        %v1224 = vpop.f32.mrf.mxu0
        %v1225 = vadd.f32 %v1212, %v1224
        %v1226 = vpop.f32.mrf.mxu0
        %1227 = vdwg.mxu0
        %1228 = vmatpush.bf16.msra.mxu0 %v1078
        %1229 = vmatpush.bf16.msra.mxu0 %v1074
        %1230 = vmatpush.bf16.msra.mxu0 %v1070
        %1231 = vmatpush.bf16.msra.mxu0 %v1066
        %1232 = vmatpush.bf16.msra.mxu0 %v1062
        %1233 = vmatpush.bf16.msra.mxu0 %v1058
        %1234 = vmatpush.bf16.msra.mxu0 %v1054
        %1235 = vmatpush.bf16.msra.mxu0 %v1050
        %1236 = vmatmul.bf16.gmra.mxu0 %v852
        %v1237 = vpop.f32.mrf.mxu0
        %v1238 = vadd.f32 %v793, %v1237
        %v1239 = vpop.f32.mrf.mxu0
        %1240 = vdwg.mxu0
        %1241 = vmatpush.bf16.msra.mxu0 %v1110
        %1242 = vmatpush.bf16.msra.mxu0 %v1106
        %1243 = vmatpush.bf16.msra.mxu0 %v1102
        %1244 = vmatpush.bf16.msra.mxu0 %v1098
        %1245 = vmatpush.bf16.msra.mxu0 %v1094
        %1246 = vmatpush.bf16.msra.mxu0 %v1090
        %1247 = vmatpush.bf16.msra.mxu0 %v1086
        %1248 = vmatpush.bf16.msra.mxu0 %v1082
        %1249 = vmatmul.bf16.gmra.mxu0 %v853
        %v1250 = vpop.f32.mrf.mxu0
        %v1251 = vadd.f32 %v1238, %v1250
        %v1252 = vpop.f32.mrf.mxu0
        %1253 = vdwg.mxu0
        %1254 = vmatpush.bf16.msra.mxu0 %v1079
        %1255 = vmatpush.bf16.msra.mxu0 %v1075
        %1256 = vmatpush.bf16.msra.mxu0 %v1071
        %1257 = vmatpush.bf16.msra.mxu0 %v1067
        %1258 = vmatpush.bf16.msra.mxu0 %v1063
        %1259 = vmatpush.bf16.msra.mxu0 %v1059
        %1260 = vmatpush.bf16.msra.mxu0 %v1055
        %1261 = vmatpush.bf16.msra.mxu0 %v1051
        %1262 = vmatmul.bf16.gmra.mxu0 %v852
        %v1263 = vpop.f32.mrf.mxu0
        %v1264 = vadd.f32 %v794, %v1263
        %v1265 = vpop.f32.mrf.mxu0
        %1266 = vdwg.mxu0
        %1267 = vmatpush.bf16.msra.mxu0 %v1111
        %1268 = vmatpush.bf16.msra.mxu0 %v1107
        %1269 = vmatpush.bf16.msra.mxu0 %v1103
        %1270 = vmatpush.bf16.msra.mxu0 %v1099
        %1271 = vmatpush.bf16.msra.mxu0 %v1095
        %1272 = vmatpush.bf16.msra.mxu0 %v1091
        %1273 = vmatpush.bf16.msra.mxu0 %v1087
        %1274 = vmatpush.bf16.msra.mxu0 %v1083
        %1275 = vmatmul.bf16.gmra.mxu0 %v853
        %v1276 = vpop.f32.mrf.mxu0
        %v1277 = vadd.f32 %v1264, %v1276
        %v1278 = vpop.f32.mrf.mxu0
        %1279 = vdwg.mxu0
        %v1280 = vpack.c.bf16 %v567, %v565
        %v1281 = vpack.c.bf16 %v596, %v594
        %v1282 = vpack.c.bf16 %v572, %v570
        %v1283 = vpack.c.bf16 %v601, %v599
        %v1284 = vpack.c.bf16 %v577, %v575
        %v1285 = vpack.c.bf16 %v606, %v604
        %v1286 = vpack.c.bf16 %v582, %v580
        %v1287 = vpack.c.bf16 %v611, %v609
        %v1288 = vld [vmem:[#allocation5] sm:$0xff]
        %v1289 = vld [vmem:[#allocation5 + $0x8] sm:$0xff]
        %v1290 = vld [vmem:[#allocation5 + $0x10] sm:$0xff]
        %v1291 = vld [vmem:[#allocation5 + $0x18] sm:$0xff]
        %v1292 = vld [vmem:[#allocation5 + $0x20] sm:$0xff]
        %v1293 = vld [vmem:[#allocation5 + $0x28] sm:$0xff]
        %v1294 = vld [vmem:[#allocation5 + $0x30] sm:$0xff]
        %v1295 = vld [vmem:[#allocation5 + $0x38] sm:$0xff]
        %v1296 = vld [vmem:[#allocation5 + $0x40] sm:$0xff]
        %v1297 = vld [vmem:[#allocation5 + $0x48] sm:$0xff]
        %v1298 = vld [vmem:[#allocation5 + $0x50] sm:$0xff]
        %v1299 = vld [vmem:[#allocation5 + $0x58] sm:$0xff]
        %v1300 = vld [vmem:[#allocation5 + $0x60] sm:$0xff]
        %v1301 = vld [vmem:[#allocation5 + $0x68] sm:$0xff]
        %v1302 = vld [vmem:[#allocation5 + $0x70] sm:$0xff]
        %v1303 = vld [vmem:[#allocation5 + $0x78] sm:$0xff]
        %v1304 = vld [vmem:[#allocation5 + $0x80] sm:$0xff]
        %v1305 = vld [vmem:[#allocation5 + $0x88] sm:$0xff]
        %v1306 = vld [vmem:[#allocation5 + $0x90] sm:$0xff]
        %v1307 = vld [vmem:[#allocation5 + $0x98] sm:$0xff]
        %v1308 = vld [vmem:[#allocation5 + $0xa0] sm:$0xff]
        %v1309 = vld [vmem:[#allocation5 + $0xa8] sm:$0xff]
        %v1310 = vld [vmem:[#allocation5 + $0xb0] sm:$0xff]
        %v1311 = vld [vmem:[#allocation5 + $0xb8] sm:$0xff]
        %v1312 = vld [vmem:[#allocation5 + $0xc0] sm:$0xff]
        %v1313 = vld [vmem:[#allocation5 + $0xc8] sm:$0xff]
        %v1314 = vld [vmem:[#allocation5 + $0xd0] sm:$0xff]
        %v1315 = vld [vmem:[#allocation5 + $0xd8] sm:$0xff]
        %v1316 = vld [vmem:[#allocation5 + $0xe0] sm:$0xff]
        %v1317 = vld [vmem:[#allocation5 + $0xe8] sm:$0xff]
        %v1318 = vld [vmem:[#allocation5 + $0xf0] sm:$0xff]
        %v1319 = vld [vmem:[#allocation5 + $0xf8] sm:$0xff]
        %v1320 = vld [vmem:[#allocation5 + $0x100] sm:$0xff]
        %v1321 = vld [vmem:[#allocation5 + $0x108] sm:$0xff]
        %v1322 = vld [vmem:[#allocation5 + $0x110] sm:$0xff]
        %v1323 = vld [vmem:[#allocation5 + $0x118] sm:$0xff]
        %v1324 = vld [vmem:[#allocation5 + $0x120] sm:$0xff]
        %v1325 = vld [vmem:[#allocation5 + $0x128] sm:$0xff]
        %v1326 = vld [vmem:[#allocation5 + $0x130] sm:$0xff]
        %v1327 = vld [vmem:[#allocation5 + $0x138] sm:$0xff]
        %v1328 = vld [vmem:[#allocation5 + $0x140] sm:$0xff]
        %v1329 = vld [vmem:[#allocation5 + $0x148] sm:$0xff]
        %v1330 = vld [vmem:[#allocation5 + $0x150] sm:$0xff]
        %v1331 = vld [vmem:[#allocation5 + $0x158] sm:$0xff]
        %v1332 = vld [vmem:[#allocation5 + $0x160] sm:$0xff]
        %v1333 = vld [vmem:[#allocation5 + $0x168] sm:$0xff]
        %v1334 = vld [vmem:[#allocation5 + $0x170] sm:$0xff]
        %v1335 = vld [vmem:[#allocation5 + $0x178] sm:$0xff]
        %v1336 = vld [vmem:[#allocation5 + $0x180] sm:$0xff]
        %v1337 = vld [vmem:[#allocation5 + $0x188] sm:$0xff]
        %v1338 = vld [vmem:[#allocation5 + $0x190] sm:$0xff]
        %v1339 = vld [vmem:[#allocation5 + $0x198] sm:$0xff]
        %v1340 = vld [vmem:[#allocation5 + $0x1a0] sm:$0xff]
        %v1341 = vld [vmem:[#allocation5 + $0x1a8] sm:$0xff]
        %v1342 = vld [vmem:[#allocation5 + $0x1b0] sm:$0xff]
        %v1343 = vld [vmem:[#allocation5 + $0x1b8] sm:$0xff]
        %v1344 = vld [vmem:[#allocation5 + $0x1c0] sm:$0xff]
        %v1345 = vld [vmem:[#allocation5 + $0x1c8] sm:$0xff]
        %v1346 = vld [vmem:[#allocation5 + $0x1d0] sm:$0xff]
        %v1347 = vld [vmem:[#allocation5 + $0x1d8] sm:$0xff]
        %v1348 = vld [vmem:[#allocation5 + $0x1e0] sm:$0xff]
        %v1349 = vld [vmem:[#allocation5 + $0x1e8] sm:$0xff]
        %v1350 = vld [vmem:[#allocation5 + $0x1f0] sm:$0xff]
        %v1351 = vld [vmem:[#allocation5 + $0x1f8] sm:$0xff]
        %v1416 = vunpack.c.l.b16 %v1288
        %v1417 = vunpack.c.h.b16 %v1288
        %v1418 = vunpack.c.l.b16 %v1289
        %v1419 = vunpack.c.h.b16 %v1289
        %v1420 = vunpack.c.l.b16 %v1290
        %v1421 = vunpack.c.h.b16 %v1290
        %v1422 = vunpack.c.l.b16 %v1291
        %v1423 = vunpack.c.h.b16 %v1291
        %v1424 = vunpack.c.l.b16 %v1292
        %v1425 = vunpack.c.h.b16 %v1292
        %v1426 = vunpack.c.l.b16 %v1293
        %v1427 = vunpack.c.h.b16 %v1293
        %v1428 = vunpack.c.l.b16 %v1294
        %v1429 = vunpack.c.h.b16 %v1294
        %v1430 = vunpack.c.l.b16 %v1295
        %v1431 = vunpack.c.h.b16 %v1295
        %v1432 = vunpack.c.l.b16 %v1296
        %v1433 = vunpack.c.h.b16 %v1296
        %v1434 = vunpack.c.l.b16 %v1297
        %v1435 = vunpack.c.h.b16 %v1297
        %v1436 = vunpack.c.l.b16 %v1298
        %v1437 = vunpack.c.h.b16 %v1298
        %v1438 = vunpack.c.l.b16 %v1299
        %v1439 = vunpack.c.h.b16 %v1299
        %v1440 = vunpack.c.l.b16 %v1300
        %v1441 = vunpack.c.h.b16 %v1300
        %v1442 = vunpack.c.l.b16 %v1301
        %v1443 = vunpack.c.h.b16 %v1301
        %v1444 = vunpack.c.l.b16 %v1302
        %v1445 = vunpack.c.h.b16 %v1302
        %v1446 = vunpack.c.l.b16 %v1303
        %v1447 = vunpack.c.h.b16 %v1303
        %v1448 = vunpack.c.l.b16 %v1304
        %v1449 = vunpack.c.h.b16 %v1304
        %v1450 = vunpack.c.l.b16 %v1305
        %v1451 = vunpack.c.h.b16 %v1305
        %v1452 = vunpack.c.l.b16 %v1306
        %v1453 = vunpack.c.h.b16 %v1306
        %v1454 = vunpack.c.l.b16 %v1307
        %v1455 = vunpack.c.h.b16 %v1307
        %v1456 = vunpack.c.l.b16 %v1308
        %v1457 = vunpack.c.h.b16 %v1308
        %v1458 = vunpack.c.l.b16 %v1309
        %v1459 = vunpack.c.h.b16 %v1309
        %v1460 = vunpack.c.l.b16 %v1310
        %v1461 = vunpack.c.h.b16 %v1310
        %v1462 = vunpack.c.l.b16 %v1311
        %v1463 = vunpack.c.h.b16 %v1311
        %v1464 = vunpack.c.l.b16 %v1312
        %v1465 = vunpack.c.h.b16 %v1312
        %v1466 = vunpack.c.l.b16 %v1313
        %v1467 = vunpack.c.h.b16 %v1313
        %v1468 = vunpack.c.l.b16 %v1314
        %v1469 = vunpack.c.h.b16 %v1314
        %v1470 = vunpack.c.l.b16 %v1315
        %v1471 = vunpack.c.h.b16 %v1315
        %v1472 = vunpack.c.l.b16 %v1316
        %v1473 = vunpack.c.h.b16 %v1316
        %v1474 = vunpack.c.l.b16 %v1317
        %v1475 = vunpack.c.h.b16 %v1317
        %v1476 = vunpack.c.l.b16 %v1318
        %v1477 = vunpack.c.h.b16 %v1318
        %v1478 = vunpack.c.l.b16 %v1319
        %v1479 = vunpack.c.h.b16 %v1319
        %v1480 = vunpack.c.l.b16 %v1320
        %v1481 = vunpack.c.h.b16 %v1320
        %v1482 = vunpack.c.l.b16 %v1321
        %v1483 = vunpack.c.h.b16 %v1321
        %v1484 = vunpack.c.l.b16 %v1322
        %v1485 = vunpack.c.h.b16 %v1322
        %v1486 = vunpack.c.l.b16 %v1323
        %v1487 = vunpack.c.h.b16 %v1323
        %v1488 = vunpack.c.l.b16 %v1324
        %v1489 = vunpack.c.h.b16 %v1324
        %v1490 = vunpack.c.l.b16 %v1325
        %v1491 = vunpack.c.h.b16 %v1325
        %v1492 = vunpack.c.l.b16 %v1326
        %v1493 = vunpack.c.h.b16 %v1326
        %v1494 = vunpack.c.l.b16 %v1327
        %v1495 = vunpack.c.h.b16 %v1327
        %v1496 = vunpack.c.l.b16 %v1328
        %v1497 = vunpack.c.h.b16 %v1328
        %v1498 = vunpack.c.l.b16 %v1329
        %v1499 = vunpack.c.h.b16 %v1329
        %v1500 = vunpack.c.l.b16 %v1330
        %v1501 = vunpack.c.h.b16 %v1330
        %v1502 = vunpack.c.l.b16 %v1331
        %v1503 = vunpack.c.h.b16 %v1331
        %v1504 = vunpack.c.l.b16 %v1332
        %v1505 = vunpack.c.h.b16 %v1332
        %v1506 = vunpack.c.l.b16 %v1333
        %v1507 = vunpack.c.h.b16 %v1333
        %v1508 = vunpack.c.l.b16 %v1334
        %v1509 = vunpack.c.h.b16 %v1334
        %v1510 = vunpack.c.l.b16 %v1335
        %v1511 = vunpack.c.h.b16 %v1335
        %v1512 = vunpack.c.l.b16 %v1336
        %v1513 = vunpack.c.h.b16 %v1336
        %v1514 = vunpack.c.l.b16 %v1337
        %v1515 = vunpack.c.h.b16 %v1337
        %v1516 = vunpack.c.l.b16 %v1338
        %v1517 = vunpack.c.h.b16 %v1338
        %v1518 = vunpack.c.l.b16 %v1339
        %v1519 = vunpack.c.h.b16 %v1339
        %v1520 = vunpack.c.l.b16 %v1340
        %v1521 = vunpack.c.h.b16 %v1340
        %v1522 = vunpack.c.l.b16 %v1341
        %v1523 = vunpack.c.h.b16 %v1341
        %v1524 = vunpack.c.l.b16 %v1342
        %v1525 = vunpack.c.h.b16 %v1342
        %v1526 = vunpack.c.l.b16 %v1343
        %v1527 = vunpack.c.h.b16 %v1343
        %v1528 = vunpack.c.l.b16 %v1344
        %v1529 = vunpack.c.h.b16 %v1344
        %v1530 = vunpack.c.l.b16 %v1345
        %v1531 = vunpack.c.h.b16 %v1345
        %v1532 = vunpack.c.l.b16 %v1346
        %v1533 = vunpack.c.h.b16 %v1346
        %v1534 = vunpack.c.l.b16 %v1347
        %v1535 = vunpack.c.h.b16 %v1347
        %v1536 = vunpack.c.l.b16 %v1348
        %v1537 = vunpack.c.h.b16 %v1348
        %v1538 = vunpack.c.l.b16 %v1349
        %v1539 = vunpack.c.h.b16 %v1349
        %v1540 = vunpack.c.l.b16 %v1350
        %v1541 = vunpack.c.h.b16 %v1350
        %v1542 = vunpack.c.l.b16 %v1351
        %v1543 = vunpack.c.h.b16 %v1351
        %v1544 = vpack.c.b16 %v1420, %v1416
        %v1545 = vpack.c.b16 %v1421, %v1417
        %v1546 = vpack.c.b16 %v1422, %v1418
        %v1547 = vpack.c.b16 %v1423, %v1419
        %v1548 = vpack.c.b16 %v1428, %v1424
        %v1549 = vpack.c.b16 %v1429, %v1425
        %v1550 = vpack.c.b16 %v1430, %v1426
        %v1551 = vpack.c.b16 %v1431, %v1427
        %v1552 = vpack.c.b16 %v1436, %v1432
        %v1553 = vpack.c.b16 %v1437, %v1433
        %v1554 = vpack.c.b16 %v1438, %v1434
        %v1555 = vpack.c.b16 %v1439, %v1435
        %v1556 = vpack.c.b16 %v1444, %v1440
        %v1557 = vpack.c.b16 %v1445, %v1441
        %v1558 = vpack.c.b16 %v1446, %v1442
        %v1559 = vpack.c.b16 %v1447, %v1443
        %v1560 = vpack.c.b16 %v1452, %v1448
        %v1561 = vpack.c.b16 %v1453, %v1449
        %v1562 = vpack.c.b16 %v1454, %v1450
        %v1563 = vpack.c.b16 %v1455, %v1451
        %v1564 = vpack.c.b16 %v1460, %v1456
        %v1565 = vpack.c.b16 %v1461, %v1457
        %v1566 = vpack.c.b16 %v1462, %v1458
        %v1567 = vpack.c.b16 %v1463, %v1459
        %v1568 = vpack.c.b16 %v1468, %v1464
        %v1569 = vpack.c.b16 %v1469, %v1465
        %v1570 = vpack.c.b16 %v1470, %v1466
        %v1571 = vpack.c.b16 %v1471, %v1467
        %v1572 = vpack.c.b16 %v1476, %v1472
        %v1573 = vpack.c.b16 %v1477, %v1473
        %v1574 = vpack.c.b16 %v1478, %v1474
        %v1575 = vpack.c.b16 %v1479, %v1475
        %v1576 = vpack.c.b16 %v1484, %v1480
        %v1577 = vpack.c.b16 %v1485, %v1481
        %v1578 = vpack.c.b16 %v1486, %v1482
        %v1579 = vpack.c.b16 %v1487, %v1483
        %v1580 = vpack.c.b16 %v1492, %v1488
        %v1581 = vpack.c.b16 %v1493, %v1489
        %v1582 = vpack.c.b16 %v1494, %v1490
        %v1583 = vpack.c.b16 %v1495, %v1491
        %v1584 = vpack.c.b16 %v1500, %v1496
        %v1585 = vpack.c.b16 %v1501, %v1497
        %v1586 = vpack.c.b16 %v1502, %v1498
        %v1587 = vpack.c.b16 %v1503, %v1499
        %v1588 = vpack.c.b16 %v1508, %v1504
        %v1589 = vpack.c.b16 %v1509, %v1505
        %v1590 = vpack.c.b16 %v1510, %v1506
        %v1591 = vpack.c.b16 %v1511, %v1507
        %v1592 = vpack.c.b16 %v1516, %v1512
        %v1593 = vpack.c.b16 %v1517, %v1513
        %v1594 = vpack.c.b16 %v1518, %v1514
        %v1595 = vpack.c.b16 %v1519, %v1515
        %v1596 = vpack.c.b16 %v1524, %v1520
        %v1597 = vpack.c.b16 %v1525, %v1521
        %v1598 = vpack.c.b16 %v1526, %v1522
        %v1599 = vpack.c.b16 %v1527, %v1523
        %v1600 = vpack.c.b16 %v1532, %v1528
        %v1601 = vpack.c.b16 %v1533, %v1529
        %v1602 = vpack.c.b16 %v1534, %v1530
        %v1603 = vpack.c.b16 %v1535, %v1531
        %v1604 = vpack.c.b16 %v1540, %v1536
        %v1605 = vpack.c.b16 %v1541, %v1537
        %v1606 = vpack.c.b16 %v1542, %v1538
        %v1607 = vpack.c.b16 %v1543, %v1539
        %1672 = vmatpush.bf16.msra.mxu0 %v1572
        %1673 = vmatpush.bf16.msra.mxu0 %v1568
        %1674 = vmatpush.bf16.msra.mxu0 %v1564
        %1675 = vmatpush.bf16.msra.mxu0 %v1560
        %1676 = vmatpush.bf16.msra.mxu0 %v1556
        %1677 = vmatpush.bf16.msra.mxu0 %v1552
        %1678 = vmatpush.bf16.msra.mxu0 %v1548
        %1679 = vmatpush.bf16.msra.mxu0 %v1544
        %1680 = vmatmul.bf16.gmra.mxu0 %v1280
        %v1681 = vpop.f32.mrf.mxu0
        %v1682 = vadd.f32 0.0, %v1681
        %v1683 = vpop.f32.mrf.mxu0
        %v1684 = vadd.f32 0.0, %v1683
        %1685 = vmatmul.bf16.gmra.mxu0 %v1282
        %v1686 = vpop.f32.mrf.mxu0
        %v1687 = vadd.f32 0.0, %v1686
        %v1688 = vpop.f32.mrf.mxu0
        %v1689 = vadd.f32 0.0, %v1688
        %1690 = vmatmul.bf16.gmra.mxu0 %v1284
        %v1691 = vpop.f32.mrf.mxu0
        %v1692 = vadd.f32 0.0, %v1691
        %v1693 = vpop.f32.mrf.mxu0
        %v1694 = vadd.f32 0.0, %v1693
        %1695 = vmatmul.bf16.gmra.mxu0 %v1286
        %v1696 = vpop.f32.mrf.mxu0
        %v1697 = vadd.f32 0.0, %v1696
        %v1698 = vpop.f32.mrf.mxu0
        %v1699 = vadd.f32 0.0, %v1698
        %1700 = vdwg.mxu0
        %1701 = vmatpush.bf16.msra.mxu0 %v1604
        %1702 = vmatpush.bf16.msra.mxu0 %v1600
        %1703 = vmatpush.bf16.msra.mxu0 %v1596
        %1704 = vmatpush.bf16.msra.mxu0 %v1592
        %1705 = vmatpush.bf16.msra.mxu0 %v1588
        %1706 = vmatpush.bf16.msra.mxu0 %v1584
        %1707 = vmatpush.bf16.msra.mxu0 %v1580
        %1708 = vmatpush.bf16.msra.mxu0 %v1576
        %1709 = vmatmul.bf16.gmra.mxu0 %v1281
        %v1710 = vpop.f32.mrf.mxu0
        %v1711 = vadd.f32 %v1682, %v1710
        %v1712 = vpop.f32.mrf.mxu0
        %v1713 = vadd.f32 %v1684, %v1712
        %1714 = vmatmul.bf16.gmra.mxu0 %v1283
        %v1715 = vpop.f32.mrf.mxu0
        %v1716 = vadd.f32 %v1687, %v1715
        %v1717 = vpop.f32.mrf.mxu0
        %v1718 = vadd.f32 %v1689, %v1717
        %1719 = vmatmul.bf16.gmra.mxu0 %v1285
        %v1720 = vpop.f32.mrf.mxu0
        %v1721 = vadd.f32 %v1692, %v1720
        %v1722 = vpop.f32.mrf.mxu0
        %v1723 = vadd.f32 %v1694, %v1722
        %1724 = vmatmul.bf16.gmra.mxu0 %v1287
        %v1725 = vpop.f32.mrf.mxu0
        %v1726 = vadd.f32 %v1697, %v1725
        %v1727 = vpop.f32.mrf.mxu0
        %v1728 = vadd.f32 %v1699, %v1727
        %1729 = vdwg.mxu0
        %1730 = vmatpush.bf16.msra.mxu0 %v1573
        %1731 = vmatpush.bf16.msra.mxu0 %v1569
        %1732 = vmatpush.bf16.msra.mxu0 %v1565
        %1733 = vmatpush.bf16.msra.mxu0 %v1561
        %1734 = vmatpush.bf16.msra.mxu0 %v1557
        %1735 = vmatpush.bf16.msra.mxu0 %v1553
        %1736 = vmatpush.bf16.msra.mxu0 %v1549
        %1737 = vmatpush.bf16.msra.mxu0 %v1545
        %1738 = vmatmul.bf16.gmra.mxu0 %v1280
        %v1739 = vpop.f32.mrf.mxu0
        %v1740 = vadd.f32 0.0, %v1739
        %v1741 = vpop.f32.mrf.mxu0
        %v1742 = vadd.f32 0.0, %v1741
        %1743 = vmatmul.bf16.gmra.mxu0 %v1282
        %v1744 = vpop.f32.mrf.mxu0
        %v1745 = vadd.f32 0.0, %v1744
        %v1746 = vpop.f32.mrf.mxu0
        %v1747 = vadd.f32 0.0, %v1746
        %1748 = vmatmul.bf16.gmra.mxu0 %v1284
        %v1749 = vpop.f32.mrf.mxu0
        %v1750 = vadd.f32 0.0, %v1749
        %v1751 = vpop.f32.mrf.mxu0
        %v1752 = vadd.f32 0.0, %v1751
        %1753 = vmatmul.bf16.gmra.mxu0 %v1286
        %v1754 = vpop.f32.mrf.mxu0
        %v1755 = vadd.f32 0.0, %v1754
        %v1756 = vpop.f32.mrf.mxu0
        %v1757 = vadd.f32 0.0, %v1756
        %1758 = vdwg.mxu0
        %1759 = vmatpush.bf16.msra.mxu0 %v1605
        %1760 = vmatpush.bf16.msra.mxu0 %v1601
        %1761 = vmatpush.bf16.msra.mxu0 %v1597
        %1762 = vmatpush.bf16.msra.mxu0 %v1593
        %1763 = vmatpush.bf16.msra.mxu0 %v1589
        %1764 = vmatpush.bf16.msra.mxu0 %v1585
        %1765 = vmatpush.bf16.msra.mxu0 %v1581
        %1766 = vmatpush.bf16.msra.mxu0 %v1577
        %1767 = vmatmul.bf16.gmra.mxu0 %v1281
        %v1768 = vpop.f32.mrf.mxu0
        %v1769 = vadd.f32 %v1740, %v1768
        %v1770 = vpop.f32.mrf.mxu0
        %v1771 = vadd.f32 %v1742, %v1770
        %1772 = vmatmul.bf16.gmra.mxu0 %v1283
        %v1773 = vpop.f32.mrf.mxu0
        %v1774 = vadd.f32 %v1745, %v1773
        %v1775 = vpop.f32.mrf.mxu0
        %v1776 = vadd.f32 %v1747, %v1775
        %1777 = vmatmul.bf16.gmra.mxu0 %v1285
        %v1778 = vpop.f32.mrf.mxu0
        %v1779 = vadd.f32 %v1750, %v1778
        %v1780 = vpop.f32.mrf.mxu0
        %v1781 = vadd.f32 %v1752, %v1780
        %1782 = vmatmul.bf16.gmra.mxu0 %v1287
        %v1783 = vpop.f32.mrf.mxu0
        %v1784 = vadd.f32 %v1755, %v1783
        %v1785 = vpop.f32.mrf.mxu0
        %v1786 = vadd.f32 %v1757, %v1785
        %1787 = vdwg.mxu0
        %1788 = vmatpush.bf16.msra.mxu0 %v1574
        %1789 = vmatpush.bf16.msra.mxu0 %v1570
        %1790 = vmatpush.bf16.msra.mxu0 %v1566
        %1791 = vmatpush.bf16.msra.mxu0 %v1562
        %1792 = vmatpush.bf16.msra.mxu0 %v1558
        %1793 = vmatpush.bf16.msra.mxu0 %v1554
        %1794 = vmatpush.bf16.msra.mxu0 %v1550
        %1795 = vmatpush.bf16.msra.mxu0 %v1546
        %1796 = vmatmul.bf16.gmra.mxu0 %v1280
        %v1797 = vpop.f32.mrf.mxu0
        %v1798 = vadd.f32 0.0, %v1797
        %v1799 = vpop.f32.mrf.mxu0
        %v1800 = vadd.f32 0.0, %v1799
        %1801 = vmatmul.bf16.gmra.mxu0 %v1282
        %v1802 = vpop.f32.mrf.mxu0
        %v1803 = vadd.f32 0.0, %v1802
        %v1804 = vpop.f32.mrf.mxu0
        %v1805 = vadd.f32 0.0, %v1804
        %1806 = vmatmul.bf16.gmra.mxu0 %v1284
        %v1807 = vpop.f32.mrf.mxu0
        %v1808 = vadd.f32 0.0, %v1807
        %v1809 = vpop.f32.mrf.mxu0
        %v1810 = vadd.f32 0.0, %v1809
        %1811 = vmatmul.bf16.gmra.mxu0 %v1286
        %v1812 = vpop.f32.mrf.mxu0
        %v1813 = vadd.f32 0.0, %v1812
        %v1814 = vpop.f32.mrf.mxu0
        %v1815 = vadd.f32 0.0, %v1814
        %1816 = vdwg.mxu0
        %1817 = vmatpush.bf16.msra.mxu0 %v1606
        %1818 = vmatpush.bf16.msra.mxu0 %v1602
        %1819 = vmatpush.bf16.msra.mxu0 %v1598
        %1820 = vmatpush.bf16.msra.mxu0 %v1594
        %1821 = vmatpush.bf16.msra.mxu0 %v1590
        %1822 = vmatpush.bf16.msra.mxu0 %v1586
        %1823 = vmatpush.bf16.msra.mxu0 %v1582
        %1824 = vmatpush.bf16.msra.mxu0 %v1578
        %1825 = vmatmul.bf16.gmra.mxu0 %v1281
        %v1826 = vpop.f32.mrf.mxu0
        %v1827 = vadd.f32 %v1798, %v1826
        %v1828 = vpop.f32.mrf.mxu0
        %v1829 = vadd.f32 %v1800, %v1828
        %1830 = vmatmul.bf16.gmra.mxu0 %v1283
        %v1831 = vpop.f32.mrf.mxu0
        %v1832 = vadd.f32 %v1803, %v1831
        %v1833 = vpop.f32.mrf.mxu0
        %v1834 = vadd.f32 %v1805, %v1833
        %1835 = vmatmul.bf16.gmra.mxu0 %v1285
        %v1836 = vpop.f32.mrf.mxu0
        %v1837 = vadd.f32 %v1808, %v1836
        %v1838 = vpop.f32.mrf.mxu0
        %v1839 = vadd.f32 %v1810, %v1838
        %1840 = vmatmul.bf16.gmra.mxu0 %v1287
        %v1841 = vpop.f32.mrf.mxu0
        %v1842 = vadd.f32 %v1813, %v1841
        %v1843 = vpop.f32.mrf.mxu0
        %v1844 = vadd.f32 %v1815, %v1843
        %1845 = vdwg.mxu0
        %1846 = vmatpush.bf16.msra.mxu0 %v1575
        %1847 = vmatpush.bf16.msra.mxu0 %v1571
        %1848 = vmatpush.bf16.msra.mxu0 %v1567
        %1849 = vmatpush.bf16.msra.mxu0 %v1563
        %1850 = vmatpush.bf16.msra.mxu0 %v1559
        %1851 = vmatpush.bf16.msra.mxu0 %v1555
        %1852 = vmatpush.bf16.msra.mxu0 %v1551
        %1853 = vmatpush.bf16.msra.mxu0 %v1547
        %1854 = vmatmul.bf16.gmra.mxu0 %v1280
        %v1855 = vpop.f32.mrf.mxu0
        %v1856 = vadd.f32 0.0, %v1855
        %v1857 = vpop.f32.mrf.mxu0
        %v1858 = vadd.f32 0.0, %v1857
        %1859 = vmatmul.bf16.gmra.mxu0 %v1282
        %v1860 = vpop.f32.mrf.mxu0
        %v1861 = vadd.f32 0.0, %v1860
        %v1862 = vpop.f32.mrf.mxu0
        %v1863 = vadd.f32 0.0, %v1862
        %1864 = vmatmul.bf16.gmra.mxu0 %v1284
        %v1865 = vpop.f32.mrf.mxu0
        %v1866 = vadd.f32 0.0, %v1865
        %v1867 = vpop.f32.mrf.mxu0
        %v1868 = vadd.f32 0.0, %v1867
        %1869 = vmatmul.bf16.gmra.mxu0 %v1286
        %v1870 = vpop.f32.mrf.mxu0
        %v1871 = vadd.f32 0.0, %v1870
        %v1872 = vpop.f32.mrf.mxu0
        %v1873 = vadd.f32 0.0, %v1872
        %1874 = vdwg.mxu0
        %1875 = vmatpush.bf16.msra.mxu0 %v1607
        %1876 = vmatpush.bf16.msra.mxu0 %v1603
        %1877 = vmatpush.bf16.msra.mxu0 %v1599
        %1878 = vmatpush.bf16.msra.mxu0 %v1595
        %1879 = vmatpush.bf16.msra.mxu0 %v1591
        %1880 = vmatpush.bf16.msra.mxu0 %v1587
        %1881 = vmatpush.bf16.msra.mxu0 %v1583
        %1882 = vmatpush.bf16.msra.mxu0 %v1579
        %1883 = vmatmul.bf16.gmra.mxu0 %v1281
        %v1884 = vpop.f32.mrf.mxu0
        %v1885 = vadd.f32 %v1856, %v1884
        %v1886 = vpop.f32.mrf.mxu0
        %v1887 = vadd.f32 %v1858, %v1886
        %1888 = vmatmul.bf16.gmra.mxu0 %v1283
        %v1889 = vpop.f32.mrf.mxu0
        %v1890 = vadd.f32 %v1861, %v1889
        %v1891 = vpop.f32.mrf.mxu0
        %v1892 = vadd.f32 %v1863, %v1891
        %1893 = vmatmul.bf16.gmra.mxu0 %v1285
        %v1894 = vpop.f32.mrf.mxu0
        %v1895 = vadd.f32 %v1866, %v1894
        %v1896 = vpop.f32.mrf.mxu0
        %v1897 = vadd.f32 %v1868, %v1896
        %1898 = vmatmul.bf16.gmra.mxu0 %v1287
        %v1899 = vpop.f32.mrf.mxu0
        %v1900 = vadd.f32 %v1871, %v1899
        %v1901 = vpop.f32.mrf.mxu0
        %v1902 = vadd.f32 %v1873, %v1901
        %1903 = vdwg.mxu0
        %v1908 = vrot.slane %v1225, 7
        %v1909 = vrot.slane %v1251, 6
        %v1910 = vrot.slane %v1277, 5
        %vm1911 = vcmask 1040384
        %v1912 = vsel %vm1911, %v1199, %v1908
        %v1913 = vsel %vm833, %v1909, %v1910
        %vm1914 = vcmask 1041408
        %v1915 = vsel %vm1914, %v1912, %v1913
        %v1916 = vsel %vm831, %v1199, %v1908
        %v1917 = vsel %vm835, %v1909, %v1910
        %vm1918 = vcmask 1042433
        %v1919 = vsel %vm1918, %v1916, %v1917
        %v1920 = vrot.slane %v1919, 1
        %v1921 = vsel %vm833, %v1199, %v1908
        %v1922 = vsel %vm837, %v1909, %v1910
        %vm1923 = vcmask 1043458
        %v1924 = vsel %vm1923, %v1921, %v1922
        %v1925 = vrot.slane %v1924, 2
        %v1926 = vsel %vm835, %v1199, %v1908
        %v1927 = vsel %vm839, %v1909, %v1910
        %vm1928 = vcmask 1044483
        %v1929 = vsel %vm1928, %v1926, %v1927
        %v1930 = vrot.slane %v1929, 3
        %v1931 = vsel %vm837, %v1199, %v1908
        %v1932 = vsel %vm841, %v1909, %v1910
        %vm1933 = vcmask 1045508
        %v1934 = vsel %vm1933, %v1931, %v1932
        %v1935 = vrot.slane %v1934, 4
        %v1936 = vsel %vm839, %v1199, %v1908
        %vm1937 = vcmask 1046528
        %v1938 = vsel %vm1937, %v1910, %v1909
        %vm1939 = vcmask 1046533
        %v1940 = vsel %vm1939, %v1936, %v1938
        %v1941 = vrot.slane %v1940, 5
        %v1942 = vsel %vm841, %v1199, %v1908
        %v1943 = vsel %vm1911, %v1909, %v1910
        %vm1944 = vcmask 1045504
        %v1945 = vsel %vm1944, %v1943, %v1942
        %v1946 = vrot.slane %v1945, 6
        %v1947 = vsel %vm1937, %v1908, %v1199
        %v1948 = vsel %vm831, %v1909, %v1910
        %vm1949 = vcmask 1046529
        %v1950 = vsel %vm1949, %v1948, %v1947
        %v1951 = vrot.slane %v1950, 7
        %v1952 = vperm.slane %v1915, 0
        %v1953 = vperm.slane %v1915, 1
        %v1954 = vperm.slane %v1915, 2
        %v1955 = vperm.slane %v1915, 3
        %v1956 = vperm.slane %v1920, 0
        %v1957 = vperm.slane %v1920, 1
        %v1958 = vperm.slane %v1920, 2
        %v1959 = vperm.slane %v1920, 3
        %v1960 = vperm.slane %v1925, 0
        %v1961 = vperm.slane %v1925, 1
        %v1962 = vperm.slane %v1925, 2
        %v1963 = vperm.slane %v1925, 3
        %v1964 = vperm.slane %v1930, 0
        %v1965 = vperm.slane %v1930, 1
        %v1966 = vperm.slane %v1930, 2
        %v1967 = vperm.slane %v1930, 3
        %v1968 = vperm.slane %v1935, 0
        %v1969 = vperm.slane %v1935, 1
        %v1970 = vperm.slane %v1935, 2
        %v1971 = vperm.slane %v1935, 3
        %v1972 = vperm.slane %v1941, 0
        %v1973 = vperm.slane %v1941, 1
        %v1974 = vperm.slane %v1941, 2
        %v1975 = vperm.slane %v1941, 3
        %v1976 = vperm.slane %v1946, 0
        %v1977 = vperm.slane %v1946, 1
        %v1978 = vperm.slane %v1946, 2
        %v1979 = vperm.slane %v1946, 3
        %v1980 = vperm.slane %v1951, 0
        %v1981 = vperm.slane %v1951, 1
        %v1982 = vperm.slane %v1951, 2
        %v1983 = vperm.slane %v1951, 3
        %v2016 = vadd.f32 %v1711, %v1952
        %v2017 = vadd.f32 %v1769, %v1953
        %v2018 = vadd.f32 %v1827, %v1954
        %v2019 = vadd.f32 %v1885, %v1955
        %v2020 = vadd.f32 %v1713, %v1956
        %v2021 = vadd.f32 %v1771, %v1957
        %v2022 = vadd.f32 %v1829, %v1958
        %v2023 = vadd.f32 %v1887, %v1959
        %v2024 = vadd.f32 %v1716, %v1960
        %v2025 = vadd.f32 %v1774, %v1961
        %v2026 = vadd.f32 %v1832, %v1962
        %v2027 = vadd.f32 %v1890, %v1963
        %v2028 = vadd.f32 %v1718, %v1964
        %v2029 = vadd.f32 %v1776, %v1965
        %v2030 = vadd.f32 %v1834, %v1966
        %v2031 = vadd.f32 %v1892, %v1967
        %v2032 = vadd.f32 %v1721, %v1968
        %v2033 = vadd.f32 %v1779, %v1969
        %v2034 = vadd.f32 %v1837, %v1970
        %v2035 = vadd.f32 %v1895, %v1971
        %v2036 = vadd.f32 %v1723, %v1972
        %v2037 = vadd.f32 %v1781, %v1973
        %v2038 = vadd.f32 %v1839, %v1974
        %v2039 = vadd.f32 %v1897, %v1975
        %v2040 = vadd.f32 %v1726, %v1976
        %v2041 = vadd.f32 %v1784, %v1977
        %v2042 = vadd.f32 %v1842, %v1978
        %v2043 = vadd.f32 %v1900, %v1979
        %v2044 = vadd.f32 %v1728, %v1980
        %v2045 = vadd.f32 %v1786, %v1981
        %v2046 = vadd.f32 %v1844, %v1982
        %v2047 = vadd.f32 %v1902, %v1983
        %v2048 = vmax.f32 %v2016, 0.0
        %v2049 = vmax.f32 %v2017, 0.0
        %v2050 = vmax.f32 %v2018, 0.0
        %v2051 = vmax.f32 %v2019, 0.0
        %v2052 = vmax.f32 %v2020, 0.0
        %v2053 = vmax.f32 %v2021, 0.0
        %v2054 = vmax.f32 %v2022, 0.0
        %v2055 = vmax.f32 %v2023, 0.0
        %v2056 = vmax.f32 %v2024, 0.0
        %v2057 = vmax.f32 %v2025, 0.0
        %v2058 = vmax.f32 %v2026, 0.0
        %v2059 = vmax.f32 %v2027, 0.0
        %v2060 = vmax.f32 %v2028, 0.0
        %v2061 = vmax.f32 %v2029, 0.0
        %v2062 = vmax.f32 %v2030, 0.0
        %v2063 = vmax.f32 %v2031, 0.0
        %v2064 = vmax.f32 %v2032, 0.0
        %v2065 = vmax.f32 %v2033, 0.0
        %v2066 = vmax.f32 %v2034, 0.0
        %v2067 = vmax.f32 %v2035, 0.0
        %v2068 = vmax.f32 %v2036, 0.0
        %v2069 = vmax.f32 %v2037, 0.0
        %v2070 = vmax.f32 %v2038, 0.0
        %v2071 = vmax.f32 %v2039, 0.0
        %v2072 = vmax.f32 %v2040, 0.0
        %v2073 = vmax.f32 %v2041, 0.0
        %v2074 = vmax.f32 %v2042, 0.0
        %v2075 = vmax.f32 %v2043, 0.0
        %v2076 = vmax.f32 %v2044, 0.0
        %v2077 = vmax.f32 %v2045, 0.0
        %v2078 = vmax.f32 %v2046, 0.0
        %v2079 = vmax.f32 %v2047, 0.0
        %v2080 = vpack.c.bf16 %v2049, %v2048
        %v2081 = vpack.c.bf16 %v2051, %v2050
        %v2082 = vpack.c.bf16 %v2053, %v2052
        %v2083 = vpack.c.bf16 %v2055, %v2054
        %v2084 = vpack.c.bf16 %v2057, %v2056
        %v2085 = vpack.c.bf16 %v2059, %v2058
        %v2086 = vpack.c.bf16 %v2061, %v2060
        %v2087 = vpack.c.bf16 %v2063, %v2062
        %v2088 = vpack.c.bf16 %v2065, %v2064
        %v2089 = vpack.c.bf16 %v2067, %v2066
        %v2090 = vpack.c.bf16 %v2069, %v2068
        %v2091 = vpack.c.bf16 %v2071, %v2070
        %v2092 = vpack.c.bf16 %v2073, %v2072
        %v2093 = vpack.c.bf16 %v2075, %v2074
        %v2094 = vpack.c.bf16 %v2077, %v2076
        %v2095 = vpack.c.bf16 %v2079, %v2078
        %v2096 = vld [vmem:[#allocation7] sm:$0xf]
        %v2097 = vld [vmem:[#allocation7 + $0x4] sm:$0xf]
        %v2098 = vld [vmem:[#allocation7 + $0x8] sm:$0xf]
        %v2099 = vld [vmem:[#allocation7 + $0xc] sm:$0xf]
        %v2100 = vld [vmem:[#allocation7 + $0x10] sm:$0xf]
        %v2101 = vld [vmem:[#allocation7 + $0x14] sm:$0xf]
        %v2102 = vld [vmem:[#allocation7 + $0x18] sm:$0xf]
        %v2103 = vld [vmem:[#allocation7 + $0x1c] sm:$0xf]
        %v2104 = vld [vmem:[#allocation7 + $0x20] sm:$0xf]
        %v2105 = vld [vmem:[#allocation7 + $0x24] sm:$0xf]
        %v2106 = vld [vmem:[#allocation7 + $0x28] sm:$0xf]
        %v2107 = vld [vmem:[#allocation7 + $0x2c] sm:$0xf]
        %v2108 = vld [vmem:[#allocation7 + $0x30] sm:$0xf]
        %v2109 = vld [vmem:[#allocation7 + $0x34] sm:$0xf]
        %v2110 = vld [vmem:[#allocation7 + $0x38] sm:$0xf]
        %v2111 = vld [vmem:[#allocation7 + $0x3c] sm:$0xf]
        %v2112 = vld [vmem:[#allocation7 + $0x40] sm:$0xf]
        %v2113 = vld [vmem:[#allocation7 + $0x44] sm:$0xf]
        %v2114 = vld [vmem:[#allocation7 + $0x48] sm:$0xf]
        %v2115 = vld [vmem:[#allocation7 + $0x4c] sm:$0xf]
        %v2116 = vld [vmem:[#allocation7 + $0x50] sm:$0xf]
        %v2117 = vld [vmem:[#allocation7 + $0x54] sm:$0xf]
        %v2118 = vld [vmem:[#allocation7 + $0x58] sm:$0xf]
        %v2119 = vld [vmem:[#allocation7 + $0x5c] sm:$0xf]
        %v2120 = vld [vmem:[#allocation7 + $0x60] sm:$0xf]
        %v2121 = vld [vmem:[#allocation7 + $0x64] sm:$0xf]
        %v2122 = vld [vmem:[#allocation7 + $0x68] sm:$0xf]
        %v2123 = vld [vmem:[#allocation7 + $0x6c] sm:$0xf]
        %v2124 = vld [vmem:[#allocation7 + $0x70] sm:$0xf]
        %v2125 = vld [vmem:[#allocation7 + $0x74] sm:$0xf]
        %v2126 = vld [vmem:[#allocation7 + $0x78] sm:$0xf]
        %v2127 = vld [vmem:[#allocation7 + $0x7c] sm:$0xf]
        %v2128 = vld [vmem:[#allocation7 + $0x80] sm:$0xf]
        %v2129 = vld [vmem:[#allocation7 + $0x84] sm:$0xf]
        %v2130 = vld [vmem:[#allocation7 + $0x88] sm:$0xf]
        %v2131 = vld [vmem:[#allocation7 + $0x8c] sm:$0xf]
        %v2132 = vld [vmem:[#allocation7 + $0x90] sm:$0xf]
        %v2133 = vld [vmem:[#allocation7 + $0x94] sm:$0xf]
        %v2134 = vld [vmem:[#allocation7 + $0x98] sm:$0xf]
        %v2135 = vld [vmem:[#allocation7 + $0x9c] sm:$0xf]
        %v2136 = vld [vmem:[#allocation7 + $0xa0] sm:$0xf]
        %v2137 = vld [vmem:[#allocation7 + $0xa4] sm:$0xf]
        %v2138 = vld [vmem:[#allocation7 + $0xa8] sm:$0xf]
        %v2139 = vld [vmem:[#allocation7 + $0xac] sm:$0xf]
        %v2140 = vld [vmem:[#allocation7 + $0xb0] sm:$0xf]
        %v2141 = vld [vmem:[#allocation7 + $0xb4] sm:$0xf]
        %v2142 = vld [vmem:[#allocation7 + $0xb8] sm:$0xf]
        %v2143 = vld [vmem:[#allocation7 + $0xbc] sm:$0xf]
        %v2144 = vld [vmem:[#allocation7 + $0xc0] sm:$0xf]
        %v2145 = vld [vmem:[#allocation7 + $0xc4] sm:$0xf]
        %v2146 = vld [vmem:[#allocation7 + $0xc8] sm:$0xf]
        %v2147 = vld [vmem:[#allocation7 + $0xcc] sm:$0xf]
        %v2148 = vld [vmem:[#allocation7 + $0xd0] sm:$0xf]
        %v2149 = vld [vmem:[#allocation7 + $0xd4] sm:$0xf]
        %v2150 = vld [vmem:[#allocation7 + $0xd8] sm:$0xf]
        %v2151 = vld [vmem:[#allocation7 + $0xdc] sm:$0xf]
        %v2152 = vld [vmem:[#allocation7 + $0xe0] sm:$0xf]
        %v2153 = vld [vmem:[#allocation7 + $0xe4] sm:$0xf]
        %v2154 = vld [vmem:[#allocation7 + $0xe8] sm:$0xf]
        %v2155 = vld [vmem:[#allocation7 + $0xec] sm:$0xf]
        %v2156 = vld [vmem:[#allocation7 + $0xf0] sm:$0xf]
        %v2157 = vld [vmem:[#allocation7 + $0xf4] sm:$0xf]
        %v2158 = vld [vmem:[#allocation7 + $0xf8] sm:$0xf]
        %v2159 = vld [vmem:[#allocation7 + $0xfc] sm:$0xf]
        %v2176 = vunpack.c.l.b16 %v2080
        %v2177 = vunpack.c.h.b16 %v2080
        %v2178 = vunpack.c.l.b16 %v2081
        %v2179 = vunpack.c.h.b16 %v2081
        %v2180 = vunpack.c.l.b16 %v2082
        %v2181 = vunpack.c.h.b16 %v2082
        %v2182 = vunpack.c.l.b16 %v2083
        %v2183 = vunpack.c.h.b16 %v2083
        %v2184 = vunpack.c.l.b16 %v2084
        %v2185 = vunpack.c.h.b16 %v2084
        %v2186 = vunpack.c.l.b16 %v2085
        %v2187 = vunpack.c.h.b16 %v2085
        %v2188 = vunpack.c.l.b16 %v2086
        %v2189 = vunpack.c.h.b16 %v2086
        %v2190 = vunpack.c.l.b16 %v2087
        %v2191 = vunpack.c.h.b16 %v2087
        %v2192 = vunpack.c.l.b16 %v2088
        %v2193 = vunpack.c.h.b16 %v2088
        %v2194 = vunpack.c.l.b16 %v2089
        %v2195 = vunpack.c.h.b16 %v2089
        %v2196 = vunpack.c.l.b16 %v2090
        %v2197 = vunpack.c.h.b16 %v2090
        %v2198 = vunpack.c.l.b16 %v2091
        %v2199 = vunpack.c.h.b16 %v2091
        %v2200 = vunpack.c.l.b16 %v2092
        %v2201 = vunpack.c.h.b16 %v2092
        %v2202 = vunpack.c.l.b16 %v2093
        %v2203 = vunpack.c.h.b16 %v2093
        %v2204 = vunpack.c.l.b16 %v2094
        %v2205 = vunpack.c.h.b16 %v2094
        %v2206 = vunpack.c.l.b16 %v2095
        %v2207 = vunpack.c.h.b16 %v2095
        %v2208 = vpack.c.b16 %v2180, %v2176
        %v2209 = vpack.c.b16 %v2181, %v2177
        %v2210 = vpack.c.b16 %v2182, %v2178
        %v2211 = vpack.c.b16 %v2183, %v2179
        %v2212 = vpack.c.b16 %v2188, %v2184
        %v2213 = vpack.c.b16 %v2189, %v2185
        %v2214 = vpack.c.b16 %v2190, %v2186
        %v2215 = vpack.c.b16 %v2191, %v2187
        %v2216 = vpack.c.b16 %v2196, %v2192
        %v2217 = vpack.c.b16 %v2197, %v2193
        %v2218 = vpack.c.b16 %v2198, %v2194
        %v2219 = vpack.c.b16 %v2199, %v2195
        %v2220 = vpack.c.b16 %v2204, %v2200
        %v2221 = vpack.c.b16 %v2205, %v2201
        %v2222 = vpack.c.b16 %v2206, %v2202
        %v2223 = vpack.c.b16 %v2207, %v2203
        %v2304 = vunpack.c.l.b16 %v2096
        %v2305 = vunpack.c.l.b16 %v2097
        %v2306 = vunpack.c.l.b16 %v2098
        %v2307 = vunpack.c.l.b16 %v2099
        %v2308 = vunpack.c.l.b16 %v2100
        %v2309 = vunpack.c.l.b16 %v2101
        %v2310 = vunpack.c.l.b16 %v2102
        %v2311 = vunpack.c.l.b16 %v2103
        %v2312 = vunpack.c.l.b16 %v2104
        %v2313 = vunpack.c.l.b16 %v2105
        %v2314 = vunpack.c.l.b16 %v2106
        %v2315 = vunpack.c.l.b16 %v2107
        %v2316 = vunpack.c.l.b16 %v2108
        %v2317 = vunpack.c.l.b16 %v2109
        %v2318 = vunpack.c.l.b16 %v2110
        %v2319 = vunpack.c.l.b16 %v2111
        %v2320 = vunpack.c.l.b16 %v2112
        %v2321 = vunpack.c.l.b16 %v2113
        %v2322 = vunpack.c.l.b16 %v2114
        %v2323 = vunpack.c.l.b16 %v2115
        %v2324 = vunpack.c.l.b16 %v2116
        %v2325 = vunpack.c.l.b16 %v2117
        %v2326 = vunpack.c.l.b16 %v2118
        %v2327 = vunpack.c.l.b16 %v2119
        %v2328 = vunpack.c.l.b16 %v2120
        %v2329 = vunpack.c.l.b16 %v2121
        %v2330 = vunpack.c.l.b16 %v2122
        %v2331 = vunpack.c.l.b16 %v2123
        %v2332 = vunpack.c.l.b16 %v2124
        %v2333 = vunpack.c.l.b16 %v2125
        %v2334 = vunpack.c.l.b16 %v2126
        %v2335 = vunpack.c.l.b16 %v2127
        %v2336 = vunpack.c.l.b16 %v2128
        %v2337 = vunpack.c.l.b16 %v2129
        %v2338 = vunpack.c.l.b16 %v2130
        %v2339 = vunpack.c.l.b16 %v2131
        %v2340 = vunpack.c.l.b16 %v2132
        %v2341 = vunpack.c.l.b16 %v2133
        %v2342 = vunpack.c.l.b16 %v2134
        %v2343 = vunpack.c.l.b16 %v2135
        %v2344 = vunpack.c.l.b16 %v2136
        %v2345 = vunpack.c.l.b16 %v2137
        %v2346 = vunpack.c.l.b16 %v2138
        %v2347 = vunpack.c.l.b16 %v2139
        %v2348 = vunpack.c.l.b16 %v2140
        %v2349 = vunpack.c.l.b16 %v2141
        %v2350 = vunpack.c.l.b16 %v2142
        %v2351 = vunpack.c.l.b16 %v2143
        %v2352 = vunpack.c.l.b16 %v2144
        %v2353 = vunpack.c.l.b16 %v2145
        %v2354 = vunpack.c.l.b16 %v2146
        %v2355 = vunpack.c.l.b16 %v2147
        %v2356 = vunpack.c.l.b16 %v2148
        %v2357 = vunpack.c.l.b16 %v2149
        %v2358 = vunpack.c.l.b16 %v2150
        %v2359 = vunpack.c.l.b16 %v2151
        %v2360 = vunpack.c.l.b16 %v2152
        %v2361 = vunpack.c.l.b16 %v2153
        %v2362 = vunpack.c.l.b16 %v2154
        %v2363 = vunpack.c.l.b16 %v2155
        %v2364 = vunpack.c.l.b16 %v2156
        %v2365 = vunpack.c.l.b16 %v2157
        %v2366 = vunpack.c.l.b16 %v2158
        %v2367 = vunpack.c.l.b16 %v2159
        %v2368 = vpack.c.b16 %v2305, %v2304
        %v2369 = vpack.c.b16 %v2307, %v2306
        %v2370 = vpack.c.b16 %v2309, %v2308
        %v2371 = vpack.c.b16 %v2311, %v2310
        %v2372 = vpack.c.b16 %v2313, %v2312
        %v2373 = vpack.c.b16 %v2315, %v2314
        %v2374 = vpack.c.b16 %v2317, %v2316
        %v2375 = vpack.c.b16 %v2319, %v2318
        %v2376 = vpack.c.b16 %v2321, %v2320
        %v2377 = vpack.c.b16 %v2323, %v2322
        %v2378 = vpack.c.b16 %v2325, %v2324
        %v2379 = vpack.c.b16 %v2327, %v2326
        %v2380 = vpack.c.b16 %v2329, %v2328
        %v2381 = vpack.c.b16 %v2331, %v2330
        %v2382 = vpack.c.b16 %v2333, %v2332
        %v2383 = vpack.c.b16 %v2335, %v2334
        %v2384 = vpack.c.b16 %v2337, %v2336
        %v2385 = vpack.c.b16 %v2339, %v2338
        %v2386 = vpack.c.b16 %v2341, %v2340
        %v2387 = vpack.c.b16 %v2343, %v2342
        %v2388 = vpack.c.b16 %v2345, %v2344
        %v2389 = vpack.c.b16 %v2347, %v2346
        %v2390 = vpack.c.b16 %v2349, %v2348
        %v2391 = vpack.c.b16 %v2351, %v2350
        %v2392 = vpack.c.b16 %v2353, %v2352
        %v2393 = vpack.c.b16 %v2355, %v2354
        %v2394 = vpack.c.b16 %v2357, %v2356
        %v2395 = vpack.c.b16 %v2359, %v2358
        %v2396 = vpack.c.b16 %v2361, %v2360
        %v2397 = vpack.c.b16 %v2363, %v2362
        %v2398 = vpack.c.b16 %v2365, %v2364
        %v2399 = vpack.c.b16 %v2367, %v2366
        %2432 = vmatpush.bf16.msra.mxu0 %v2375
        %2433 = vmatpush.bf16.msra.mxu0 %v2374
        %2434 = vmatpush.bf16.msra.mxu0 %v2373
        %2435 = vmatpush.bf16.msra.mxu0 %v2372
        %2436 = vmatpush.bf16.msra.mxu0 %v2371
        %2437 = vmatpush.bf16.msra.mxu0 %v2370
        %2438 = vmatpush.bf16.msra.mxu0 %v2369
        %2439 = vmatpush.bf16.msra.mxu0 %v2368
        %2440 = vmatmul.bf16.gmra.mxu0 %v2208
        %v2441 = vpop.f32.mrf.mxu0
        %v2442 = vadd.f32 0.0, %v2441
        %v2443 = vpop.f32.mrf.mxu0
        %v2444 = vadd.f32 0.0, %v2443
        %2445 = vmatmul.bf16.gmra.mxu0 %v2212
        %v2446 = vpop.f32.mrf.mxu0
        %v2447 = vadd.f32 0.0, %v2446
        %v2448 = vpop.f32.mrf.mxu0
        %v2449 = vadd.f32 0.0, %v2448
        %2450 = vmatmul.bf16.gmra.mxu0 %v2216
        %v2451 = vpop.f32.mrf.mxu0
        %v2452 = vadd.f32 0.0, %v2451
        %v2453 = vpop.f32.mrf.mxu0
        %v2454 = vadd.f32 0.0, %v2453
        %2455 = vmatmul.bf16.gmra.mxu0 %v2220
        %v2456 = vpop.f32.mrf.mxu0
        %v2457 = vadd.f32 0.0, %v2456
        %v2458 = vpop.f32.mrf.mxu0
        %v2459 = vadd.f32 0.0, %v2458
        %2460 = vdwg.mxu0
        %2461 = vmatpush.bf16.msra.mxu0 %v2383
        %2462 = vmatpush.bf16.msra.mxu0 %v2382
        %2463 = vmatpush.bf16.msra.mxu0 %v2381
        %2464 = vmatpush.bf16.msra.mxu0 %v2380
        %2465 = vmatpush.bf16.msra.mxu0 %v2379
        %2466 = vmatpush.bf16.msra.mxu0 %v2378
        %2467 = vmatpush.bf16.msra.mxu0 %v2377
        %2468 = vmatpush.bf16.msra.mxu0 %v2376
        %2469 = vmatmul.bf16.gmra.mxu0 %v2209
        %v2470 = vpop.f32.mrf.mxu0
        %v2471 = vadd.f32 %v2442, %v2470
        %v2472 = vpop.f32.mrf.mxu0
        %v2473 = vadd.f32 %v2444, %v2472
        %2474 = vmatmul.bf16.gmra.mxu0 %v2213
        %v2475 = vpop.f32.mrf.mxu0
        %v2476 = vadd.f32 %v2447, %v2475
        %v2477 = vpop.f32.mrf.mxu0
        %v2478 = vadd.f32 %v2449, %v2477
        %2479 = vmatmul.bf16.gmra.mxu0 %v2217
        %v2480 = vpop.f32.mrf.mxu0
        %v2481 = vadd.f32 %v2452, %v2480
        %v2482 = vpop.f32.mrf.mxu0
        %v2483 = vadd.f32 %v2454, %v2482
        %2484 = vmatmul.bf16.gmra.mxu0 %v2221
        %v2485 = vpop.f32.mrf.mxu0
        %v2486 = vadd.f32 %v2457, %v2485
        %v2487 = vpop.f32.mrf.mxu0
        %v2488 = vadd.f32 %v2459, %v2487
        %2489 = vdwg.mxu0
        %2490 = vmatpush.bf16.msra.mxu0 %v2391
        %2491 = vmatpush.bf16.msra.mxu0 %v2390
        %2492 = vmatpush.bf16.msra.mxu0 %v2389
        %2493 = vmatpush.bf16.msra.mxu0 %v2388
        %2494 = vmatpush.bf16.msra.mxu0 %v2387
        %2495 = vmatpush.bf16.msra.mxu0 %v2386
        %2496 = vmatpush.bf16.msra.mxu0 %v2385
        %2497 = vmatpush.bf16.msra.mxu0 %v2384
        %2498 = vmatmul.bf16.gmra.mxu0 %v2210
        %v2499 = vpop.f32.mrf.mxu0
        %v2500 = vadd.f32 %v2471, %v2499
        %v2501 = vpop.f32.mrf.mxu0
        %v2502 = vadd.f32 %v2473, %v2501
        %2503 = vmatmul.bf16.gmra.mxu0 %v2214
        %v2504 = vpop.f32.mrf.mxu0
        %v2505 = vadd.f32 %v2476, %v2504
        %v2506 = vpop.f32.mrf.mxu0
        %v2507 = vadd.f32 %v2478, %v2506
        %2508 = vmatmul.bf16.gmra.mxu0 %v2218
        %v2509 = vpop.f32.mrf.mxu0
        %v2510 = vadd.f32 %v2481, %v2509
        %v2511 = vpop.f32.mrf.mxu0
        %v2512 = vadd.f32 %v2483, %v2511
        %2513 = vmatmul.bf16.gmra.mxu0 %v2222
        %v2514 = vpop.f32.mrf.mxu0
        %v2515 = vadd.f32 %v2486, %v2514
        %v2516 = vpop.f32.mrf.mxu0
        %v2517 = vadd.f32 %v2488, %v2516
        %2518 = vdwg.mxu0
        %2519 = vmatpush.bf16.msra.mxu0 %v2399
        %2520 = vmatpush.bf16.msra.mxu0 %v2398
        %2521 = vmatpush.bf16.msra.mxu0 %v2397
        %2522 = vmatpush.bf16.msra.mxu0 %v2396
        %2523 = vmatpush.bf16.msra.mxu0 %v2395
        %2524 = vmatpush.bf16.msra.mxu0 %v2394
        %2525 = vmatpush.bf16.msra.mxu0 %v2393
        %2526 = vmatpush.bf16.msra.mxu0 %v2392
        %2527 = vmatmul.bf16.gmra.mxu0 %v2211
        %v2528 = vpop.f32.mrf.mxu0
        %v2529 = vadd.f32 %v2500, %v2528
        %v2530 = vpop.f32.mrf.mxu0
        %v2531 = vadd.f32 %v2502, %v2530
        %2532 = vmatmul.bf16.gmra.mxu0 %v2215
        %v2533 = vpop.f32.mrf.mxu0
        %v2534 = vadd.f32 %v2505, %v2533
        %v2535 = vpop.f32.mrf.mxu0
        %v2536 = vadd.f32 %v2507, %v2535
        %2537 = vmatmul.bf16.gmra.mxu0 %v2219
        %v2538 = vpop.f32.mrf.mxu0
        %v2539 = vadd.f32 %v2510, %v2538
        %v2540 = vpop.f32.mrf.mxu0
        %v2541 = vadd.f32 %v2512, %v2540
        %2542 = vmatmul.bf16.gmra.mxu0 %v2223
        %v2543 = vpop.f32.mrf.mxu0
        %v2544 = vadd.f32 %v2515, %v2543
        %v2545 = vpop.f32.mrf.mxu0
        %v2546 = vadd.f32 %v2517, %v2545
        %2547 = vdwg.mxu0
        %v2548 = vrot.slane %v2529, 4
        %v2549 = vmax.f32 %v2529, %v2548
        %v2550 = vrot.slane %v2549, 2
        %v2551 = vmax.f32 %v2549, %v2550
        %v2552 = vrot.slane %v2551, 1
        %v2553 = vmax.f32 %v2551, %v2552
        %v2554 = vrot.slane %v2531, 4
        %v2555 = vmax.f32 %v2531, %v2554
        %v2556 = vrot.slane %v2555, 2
        %v2557 = vmax.f32 %v2555, %v2556
        %v2558 = vrot.slane %v2557, 1
        %v2559 = vmax.f32 %v2557, %v2558
        %v2560 = vrot.slane %v2534, 4
        %v2561 = vmax.f32 %v2534, %v2560
        %v2562 = vrot.slane %v2561, 2
        %v2563 = vmax.f32 %v2561, %v2562
        %v2564 = vrot.slane %v2563, 1
        %v2565 = vmax.f32 %v2563, %v2564
        %v2566 = vrot.slane %v2536, 4
        %v2567 = vmax.f32 %v2536, %v2566
        %v2568 = vrot.slane %v2567, 2
        %v2569 = vmax.f32 %v2567, %v2568
        %v2570 = vrot.slane %v2569, 1
        %v2571 = vmax.f32 %v2569, %v2570
        %v2572 = vrot.slane %v2539, 4
        %v2573 = vmax.f32 %v2539, %v2572
        %v2574 = vrot.slane %v2573, 2
        %v2575 = vmax.f32 %v2573, %v2574
        %v2576 = vrot.slane %v2575, 1
        %v2577 = vmax.f32 %v2575, %v2576
        %v2578 = vrot.slane %v2541, 4
        %v2579 = vmax.f32 %v2541, %v2578
        %v2580 = vrot.slane %v2579, 2
        %v2581 = vmax.f32 %v2579, %v2580
        %v2582 = vrot.slane %v2581, 1
        %v2583 = vmax.f32 %v2581, %v2582
        %v2584 = vrot.slane %v2544, 4
        %v2585 = vmax.f32 %v2544, %v2584
        %v2586 = vrot.slane %v2585, 2
        %v2587 = vmax.f32 %v2585, %v2586
        %v2588 = vrot.slane %v2587, 1
        %v2589 = vmax.f32 %v2587, %v2588
        %v2590 = vrot.slane %v2546, 4
        %v2591 = vmax.f32 %v2546, %v2590
        %v2592 = vrot.slane %v2591, 2
        %v2593 = vmax.f32 %v2591, %v2592
        %v2594 = vrot.slane %v2593, 1
        %v2595 = vmax.f32 %v2593, %v2594
        %v2596 = vld [vmem:[%s8] sm:$0x1]
        %v2598 = vperm.slane %v2596, 0
        %v2600 = vadd.f32 %v2553, %v2598
        %v2601 = vadd.f32 %v2559, %v2598
        %v2602 = vadd.f32 %v2565, %v2598
        %v2603 = vadd.f32 %v2571, %v2598
        %v2604 = vadd.f32 %v2577, %v2598
        %v2605 = vadd.f32 %v2583, %v2598
        %v2606 = vadd.f32 %v2589, %v2598
        %v2607 = vadd.f32 %v2595, %v2598
        %v2616 = vrot.slane %v2601, 7
        %v2617 = vsel %vm831, %v2616, %v2600
        %v2618 = vrot.slane %v2602, 6
        %v2619 = vsel %vm833, %v2618, %v2617
        %v2620 = vrot.slane %v2603, 5
        %v2621 = vsel %vm835, %v2620, %v2619
        %v2622 = vrot.slane %v2604, 4
        %v2623 = vsel %vm837, %v2622, %v2621
        %v2624 = vrot.slane %v2605, 3
        %v2625 = vsel %vm839, %v2624, %v2623
        %v2626 = vrot.slane %v2606, 2
        %v2627 = vsel %vm841, %v2626, %v2625
        %v2628 = vrot.slane %v2607, 1
        %v2629 = vsel %vm843, %v2628, %v2627
        %2631 = vst [vmem:[%s376] sm:$0xff] %v2629
        %s2632 = sand.u32 %s227, 1
        %s2633 = scalar_lea.sflag [#allocation4], %s2632
        %s2634 = sand.u32 %s227, 1
        %s2635 = smul.addr %s2634, 8
        %s2636 = scalar_lea.vmem [#allocation8], %s2635
        // Predicated region
        $region69: #{tpu_custom_call.1} parent=55 // pred_check
          %p2637 = pneg %p237
        $region70: #{tpu_custom_call.1} parent=55 // pred_check_branch
          %2639 = sbr.rel (%p2637) target = $region72
        $region71: #{tpu_custom_call.1} parent=55 // pred_region
          %2641 = vsyncadd %s2633, 0
          %s2642 = smul.addr %s25, 8
          %s2643 = scalar_lea.hbm %s9, %s2642
          %s2645 = sshll.u32 %s2636, 4
          %s2646 = int_to_ptr.vmem [resolvable:$true] %s2645
          %s2647 = sshll.u32 %s2643, 4
          %s2648 = int_to_ptr.hbm [resolvable:$true] %s2647
          %2650 = dma.vmem_to_hbm [thread:$0]  %s2646, 128, %s2648, %s2633
        $region72: #{tpu_custom_call.1} parent=55 // pred_fallthru
          _
      $region56: #{tpu_custom_call.1} parent=5 // pred_fallthru
        _
      %p2651 = scmp.le.s32.totalorder 2, %s20
      // Predicated region
      $region73: #{tpu_custom_call.1} parent=5 // pred_check
        %p2652 = pneg %p2651
      $region74: #{tpu_custom_call.1} parent=5 // pred_check_branch
        %2654 = sbr.rel (%p2652) target = $region76
      $region75: #{tpu_custom_call.1} parent=5 // pred_region
        %s2655 = ssub.s32 %s20, 2
        // Predicated region
        $region77: #{tpu_custom_call.1} parent=75 // pred_check
          %p2656 = pneg %p243
        $region78: #{tpu_custom_call.1} parent=75 // pred_check_branch
          %2658 = sbr.rel (%p2656) target = $region80
        $region79: #{tpu_custom_call.1} parent=75 // pred_region
          %s2659 = sand.u32 %s228, 1
          %s2660 = scalar_lea.sflag [#allocation4], %s2659
          %s2661 = sand.u32 %s228, 1
          %s2662 = smul.addr %s2661, 8
          %s2663 = scalar_lea.vmem [#allocation8], %s2662
          %2665 = dma.done %s2660, 128
        $region80: #{tpu_custom_call.1} parent=75 // pred_fallthru
          _
      $region76: #{tpu_custom_call.1} parent=5 // pred_fallthru
        _
    $region6: #{tpu_custom_call.1} parent=1 // loop_footer
      %s24 = sadd.s32 1, %s20
    $region7: #{tpu_custom_call.1} parent=1 // loop_footer_branch
      %19 = sbr.rel target = $region3
    $region8: #{tpu_custom_call.1} parent=1 // loop_exit
      _
    %2666 = vsyncpa [#allocation3], 1
    %s2667 = scalar_lea.sflag [#allocation3], 1
    %2668 = vsyncpa %s2667, 1
    %2669 = vsyncpa [#allocation6], 1
    %2670 = vsyncpa [#allocation4], 1
    %s2671 = scalar_lea.sflag [#allocation4], 1
    %2672 = vsyncpa %s2671, 1

// kernel: tpu_custom_call.1
$region0: #{tpu_custom_call.1}
  #allocation0 [shape = 'u32[]', space=smem, size = 0x4, offset = 0x4, fixed_abs, tag = 'smem constant byte address 0x4 - core index']
  #allocation1 [shape = 'u32[72,128]{1,0:T(1,128)}', space=vmem, size = 0x9000, scoped, tag = 'internal scratch']
  %s0 = inlined_call_operand.vmem [shape: f32[128,6], index: 0, kind: input, shape index: {}]
  %s1 = inlined_call_operand.vmem [shape: bf16[6,128], index: 1, kind: input, shape index: {}]
  %s2 = inlined_call_operand.vmem [shape: f32[1,128], index: 2, kind: input, shape index: {}]
  %s3 = inlined_call_operand.vmem [shape: bf16[128,256], index: 3, kind: input, shape index: {}]
  %s4 = inlined_call_operand.hbm [shape: bf16[256,512], index: 4, kind: input, shape index: {}]
  %s5 = inlined_call_operand.hbm [shape: bf16[256,512], index: 5, kind: input, shape index: {}]
  %s6 = inlined_call_operand.vmem [shape: f32[1,512], index: 6, kind: input, shape index: {}]
  %s7 = inlined_call_operand.hbm [shape: bf16[512,128], index: 7, kind: input, shape index: {}]
  %s8 = inlined_call_operand.vmem [shape: f32[1,128], index: 8, kind: input, shape index: {}]
  %s9 = inlined_call_operand.hbm [shape: f32[16,128], index: 9, kind: output, shape index: {}]
  %s10 = sld [smem:[#allocation0]]
  $region81: #{tpu_custom_call.1} parent=0
    _
  %s12 = ssub.s32 1, %s10
  %s13 = scalar_select 0, %s12, %s10
  $region1: #{tpu_custom_call.1} parent=0
    #allocation2 [shape = 'u8[262144]{0}', space=vmem, size = 0x40000, scoped, tag = 'input window, operand 4, single buffered']
    #allocation3 [shape = 's32[2]{0}', space=sflag, size = 0x8, scoped, tag = 'scoped memory for tpu_custom_call.1']
    #allocation4 [shape = 's32[2]{0}', space=sflag, size = 0x8, scoped, tag = 'scoped memory for tpu_custom_call.1']
    #allocation5 [shape = 'u8[262144]{0}', space=vmem, size = 0x40000, scoped, tag = 'input window, operand 5, single buffered']
    #allocation6 [shape = 's32[1]{0}', space=sflag, size = 0x4, scoped, tag = 'scoped memory for tpu_custom_call.1']
    #allocation7 [shape = 'u8[131072]{0}', space=vmem, size = 0x20000, scoped, tag = 'input window, operand 7, single buffered']
    #allocation8 [shape = 'u8[8192]{0}', space=vmem, size = 0x2000, scoped, tag = 'output window, operand 0']
    %14 = vsyncpa [#allocation3], 0
    %15 = vsyncpa [#allocation6], 0
    %16 = vsyncpa [#allocation4], 0
    %s17 = scalar_lea.sflag [#allocation4], 1
    %18 = vsyncpa %s17, 0
    loop: start=0, step=1, limit=4
    $region2: #{tpu_custom_call.1} parent=1 // loop_pre_header
      _
    $region3: #{tpu_custom_call.1} parent=1 // loop_header
      %s20 = sphi 0, %s24
      %p21 = scmp.ge.s32.totalorder %s20, 4
      %s30 = sphi 0, %s32
      %s33 = sphi 0, %s30
      %s34 = sphi 0, %s33
      %s50 = sphi 0, %s34
      %s54 = sphi 0, %s54
      %s56 = sphi 0, %s54
      %s57 = sphi 0, %s56
      %s71 = sphi 0, %s57
      %s75 = sphi 0, %s75
      %s77 = sphi 0, %s75
      %s78 = sphi 0, %s77
      %s92 = sphi 0, %s78
      %s96 = sphi 0, %s96
      %s98 = sphi 0, %s96
      %s99 = sphi 0, %s98
      %s113 = sphi 0, %s99
      %s117 = sphi 0, %s117
      %s119 = sphi 0, %s117
      %s120 = sphi 0, %s119
      %s134 = sphi 0, %s120
      %s138 = sphi 0, %s138
      %s140 = sphi 0, %s138
      %s141 = sphi 0, %s140
      %s155 = sphi 0, %s141
      %s159 = sphi 0, %s159
      %s161 = sphi 0, %s159
      %s162 = sphi 0, %s161
      %s176 = sphi 0, %s162
      %s180 = sphi 0, %s180
      %s182 = sphi 0, %s180
      %s183 = sphi 0, %s182
      %s197 = sphi 0, %s183
      %s201 = sphi 0, %s201
      %s203 = sphi 0, %s201
      %s204 = sphi 0, %s203
      %s218 = sphi 0, %s204
      %s224 = sphi 0, %s226
      %s227 = sphi 0, %s224
      %s228 = sphi 0, %s227
      %s244 = sphi 0, %s228
    $region4: #{tpu_custom_call.1} parent=1 // loop_header_branch
      %23 = sbr.rel (%p21) target = $region8
    $region5: #{tpu_custom_call.1} parent=1 // loop_body
      %s25 = ssub.s32 %s20, 1
      %s26 = ssub.s32 %s20, 2
      %s27 = sadd.s32 %s20, 1
      %s28 = ssub.s32 %s20, %s27
      %p29 = scmp.eq.s32.totalorder %s28, 0
      %s31 = sadd.s32 %s30, 1
      %s32 = scalar_select %p29, %s30, %s31
      %p35 = pneg %p29
      %p36 = scmp.eq.s32.totalorder %s20, 1
      %p37 = por %p35, %p36
      %p38 = scmp.ne.s32.totalorder %s30, %s33
      %p39 = scmp.eq.s32.totalorder %s20, 0
      %p40 = por %p38, %p39
      %p41 = scmp.ne.s32.totalorder %s30, %s33
      %p42 = scmp.eq.s32.totalorder %s25, 1
      %p43 = por %p41, %p42
      %p44 = scmp.ne.s32.totalorder %s33, %s34
      %p45 = scmp.eq.s32.totalorder %s25, 0
      %p46 = por %p44, %p45
      %p47 = scmp.ne.s32.totalorder %s33, %s34
      %p48 = scmp.eq.s32.totalorder %s26, 1
      %p49 = por %p47, %p48
      %p51 = scmp.ne.s32.totalorder %s34, %s50
      %p52 = scmp.eq.s32.totalorder %s26, 0
      %p53 = por %p51, %p52
      %s55 = sadd.s32 %s54, 1
      %p58 = scmp.eq.s32.totalorder %s20, 1
      %p59 = scmp.ne.s32.totalorder %s54, %s56
      %p60 = scmp.eq.s32.totalorder %s20, 0
      %p61 = por %p59, %p60
      %p62 = scmp.ne.s32.totalorder %s54, %s56
      %p63 = scmp.eq.s32.totalorder %s25, 1
      %p64 = por %p62, %p63
      %p65 = scmp.ne.s32.totalorder %s56, %s57
      %p66 = scmp.eq.s32.totalorder %s25, 0
      %p67 = por %p65, %p66
      %p68 = scmp.ne.s32.totalorder %s56, %s57
      %p69 = scmp.eq.s32.totalorder %s26, 1
      %p70 = por %p68, %p69
      %p72 = scmp.ne.s32.totalorder %s57, %s71
      %p73 = scmp.eq.s32.totalorder %s26, 0
      %p74 = por %p72, %p73
      %s76 = sadd.s32 %s75, 1
      %p79 = scmp.eq.s32.totalorder %s20, 1
      %p80 = scmp.ne.s32.totalorder %s75, %s77
      %p81 = scmp.eq.s32.totalorder %s20, 0
      %p82 = por %p80, %p81
      %p83 = scmp.ne.s32.totalorder %s75, %s77
      %p84 = scmp.eq.s32.totalorder %s25, 1
      %p85 = por %p83, %p84
      %p86 = scmp.ne.s32.totalorder %s77, %s78
      %p87 = scmp.eq.s32.totalorder %s25, 0
      %p88 = por %p86, %p87
      %p89 = scmp.ne.s32.totalorder %s77, %s78
      %p90 = scmp.eq.s32.totalorder %s26, 1
      %p91 = por %p89, %p90
      %p93 = scmp.ne.s32.totalorder %s78, %s92
      %p94 = scmp.eq.s32.totalorder %s26, 0
      %p95 = por %p93, %p94
      %s97 = sadd.s32 %s96, 1
      %p100 = scmp.eq.s32.totalorder %s20, 1
      %p101 = scmp.ne.s32.totalorder %s96, %s98
      %p102 = scmp.eq.s32.totalorder %s20, 0
      %p103 = por %p101, %p102
      %p104 = scmp.ne.s32.totalorder %s96, %s98
      %p105 = scmp.eq.s32.totalorder %s25, 1
      %p106 = por %p104, %p105
      %p107 = scmp.ne.s32.totalorder %s98, %s99
      %p108 = scmp.eq.s32.totalorder %s25, 0
      %p109 = por %p107, %p108
      %p110 = scmp.ne.s32.totalorder %s98, %s99
      %p111 = scmp.eq.s32.totalorder %s26, 1
      %p112 = por %p110, %p111
      %p114 = scmp.ne.s32.totalorder %s99, %s113
      %p115 = scmp.eq.s32.totalorder %s26, 0
      %p116 = por %p114, %p115
      %s118 = sadd.s32 %s117, 1
      %p121 = scmp.eq.s32.totalorder %s20, 1
      %p122 = scmp.ne.s32.totalorder %s117, %s119
      %p123 = scmp.eq.s32.totalorder %s20, 0
      %p124 = por %p122, %p123
      %p125 = scmp.ne.s32.totalorder %s117, %s119
      %p126 = scmp.eq.s32.totalorder %s25, 1
      %p127 = por %p125, %p126
      %p128 = scmp.ne.s32.totalorder %s119, %s120
      %p129 = scmp.eq.s32.totalorder %s25, 0
      %p130 = por %p128, %p129
      %p131 = scmp.ne.s32.totalorder %s119, %s120
      %p132 = scmp.eq.s32.totalorder %s26, 1
      %p133 = por %p131, %p132
      %p135 = scmp.ne.s32.totalorder %s120, %s134
      %p136 = scmp.eq.s32.totalorder %s26, 0
      %p137 = por %p135, %p136
      %s139 = sadd.s32 %s138, 1
      %p142 = scmp.eq.s32.totalorder %s20, 1
      %p143 = scmp.ne.s32.totalorder %s138, %s140
      %p144 = scmp.eq.s32.totalorder %s20, 0
      %p145 = por %p143, %p144
      %p146 = scmp.ne.s32.totalorder %s138, %s140
      %p147 = scmp.eq.s32.totalorder %s25, 1
      %p148 = por %p146, %p147
      %p149 = scmp.ne.s32.totalorder %s140, %s141
      %p150 = scmp.eq.s32.totalorder %s25, 0
      %p151 = por %p149, %p150
      %p152 = scmp.ne.s32.totalorder %s140, %s141
      %p153 = scmp.eq.s32.totalorder %s26, 1
      %p154 = por %p152, %p153
      %p156 = scmp.ne.s32.totalorder %s141, %s155
      %p157 = scmp.eq.s32.totalorder %s26, 0
      %p158 = por %p156, %p157
      %s160 = sadd.s32 %s159, 1
      %p163 = scmp.eq.s32.totalorder %s20, 1
      %p164 = scmp.ne.s32.totalorder %s159, %s161
      %p165 = scmp.eq.s32.totalorder %s20, 0
      %p166 = por %p164, %p165
      %p167 = scmp.ne.s32.totalorder %s159, %s161
      %p168 = scmp.eq.s32.totalorder %s25, 1
      %p169 = por %p167, %p168
      %p170 = scmp.ne.s32.totalorder %s161, %s162
      %p171 = scmp.eq.s32.totalorder %s25, 0
      %p172 = por %p170, %p171
      %p173 = scmp.ne.s32.totalorder %s161, %s162
      %p174 = scmp.eq.s32.totalorder %s26, 1
      %p175 = por %p173, %p174
      %p177 = scmp.ne.s32.totalorder %s162, %s176
      %p178 = scmp.eq.s32.totalorder %s26, 0
      %p179 = por %p177, %p178
      %s181 = sadd.s32 %s180, 1
      %p184 = scmp.eq.s32.totalorder %s20, 1
      %p185 = scmp.ne.s32.totalorder %s180, %s182
      %p186 = scmp.eq.s32.totalorder %s20, 0
      %p187 = por %p185, %p186
      %p188 = scmp.ne.s32.totalorder %s180, %s182
      %p189 = scmp.eq.s32.totalorder %s25, 1
      %p190 = por %p188, %p189
      %p191 = scmp.ne.s32.totalorder %s182, %s183
      %p192 = scmp.eq.s32.totalorder %s25, 0
      %p193 = por %p191, %p192
      %p194 = scmp.ne.s32.totalorder %s182, %s183
      %p195 = scmp.eq.s32.totalorder %s26, 1
      %p196 = por %p194, %p195
      %p198 = scmp.ne.s32.totalorder %s183, %s197
      %p199 = scmp.eq.s32.totalorder %s26, 0
      %p200 = por %p198, %p199
      %s202 = sadd.s32 %s201, 1
      %p205 = scmp.eq.s32.totalorder %s20, 1
      %p206 = scmp.ne.s32.totalorder %s201, %s203
      %p207 = scmp.eq.s32.totalorder %s20, 0
      %p208 = por %p206, %p207
      %p209 = scmp.ne.s32.totalorder %s201, %s203
      %p210 = scmp.eq.s32.totalorder %s25, 1
      %p211 = por %p209, %p210
      %p212 = scmp.ne.s32.totalorder %s203, %s204
      %p213 = scmp.eq.s32.totalorder %s25, 0
      %p214 = por %p212, %p213
      %p215 = scmp.ne.s32.totalorder %s203, %s204
      %p216 = scmp.eq.s32.totalorder %s26, 1
      %p217 = por %p215, %p216
      %p219 = scmp.ne.s32.totalorder %s204, %s218
      %p220 = scmp.eq.s32.totalorder %s26, 0
      %p221 = por %p219, %p220
      %s222 = ssub.s32 %s20, %s27
      %p223 = scmp.eq.s32.totalorder %s222, 0
      %s225 = sadd.s32 %s224, 1
      %s226 = scalar_select %p223, %s224, %s225
      %p229 = pneg %p223
      %p230 = scmp.eq.s32.totalorder %s20, 1
      %p231 = por %p229, %p230
      %p232 = scmp.ne.s32.totalorder %s224, %s227
      %p233 = scmp.eq.s32.totalorder %s20, 0
      %p234 = por %p232, %p233
      %p235 = scmp.ne.s32.totalorder %s224, %s227
      %p236 = scmp.eq.s32.totalorder %s25, 1
      %p237 = por %p235, %p236
      %p238 = scmp.ne.s32.totalorder %s227, %s228
      %p239 = scmp.eq.s32.totalorder %s25, 0
      %p240 = por %p238, %p239
      %p241 = scmp.ne.s32.totalorder %s227, %s228
      %p242 = scmp.eq.s32.totalorder %s26, 1
      %p243 = por %p241, %p242
      %p245 = scmp.ne.s32.totalorder %s228, %s244
      %p246 = scmp.eq.s32.totalorder %s26, 0
      %p247 = por %p245, %p246
      %p248 = scmp.le.s32.totalorder 1, %s20
      %p249 = scmp.lt.s32.totalorder %s20, 3
      %p250 = pnand %p248, %p249
      %p251 = pneg %p250
      // Predicated region
      $region9: #{tpu_custom_call.1} parent=5 // pred_check
        _
      $region10: #{tpu_custom_call.1} parent=5 // pred_check_branch
        %253 = sbr.rel (%p250) target = $region12
      $region11: #{tpu_custom_call.1} parent=5 // pred_region
        %s254 = ssub.s32 %s20, 1
        // Predicated region
        $region13: #{tpu_custom_call.1} parent=11 // pred_check
          %p255 = pneg %p67
        $region14: #{tpu_custom_call.1} parent=11 // pred_check_branch
          %257 = sbr.rel (%p255) target = $region16
        $region15: #{tpu_custom_call.1} parent=11 // pred_region
          _
        $region16: #{tpu_custom_call.1} parent=11 // pred_fallthru
          _
        // Predicated region
        $region17: #{tpu_custom_call.1} parent=11 // pred_check
          %p258 = pneg %p88
        $region18: #{tpu_custom_call.1} parent=11 // pred_check_branch
          %260 = sbr.rel (%p258) target = $region20
        $region19: #{tpu_custom_call.1} parent=11 // pred_region
          _
        $region20: #{tpu_custom_call.1} parent=11 // pred_fallthru
          _
        // Predicated region
        $region21: #{tpu_custom_call.1} parent=11 // pred_check
          %p261 = pneg %p109
        $region22: #{tpu_custom_call.1} parent=11 // pred_check_branch
          %263 = sbr.rel (%p261) target = $region24
        $region23: #{tpu_custom_call.1} parent=11 // pred_region
          _
        $region24: #{tpu_custom_call.1} parent=11 // pred_fallthru
          _
        // Predicated region
        $region25: #{tpu_custom_call.1} parent=11 // pred_check
          %p264 = pneg %p130
        $region26: #{tpu_custom_call.1} parent=11 // pred_check_branch
          %266 = sbr.rel (%p264) target = $region28
        $region27: #{tpu_custom_call.1} parent=11 // pred_region
          %268 = vsyncadd [#allocation3], 0
          %s269 = sshll.u32 %s4, 4
          %s270 = int_to_ptr.hbm [resolvable:$true] %s269
          %s271 = sshll.u32 [#allocation2], 4
          %s272 = int_to_ptr.vmem [resolvable:$true] %s271
          %277 = dma.hbm_to_vmem [thread:$0]  %s270, 8192, %s272, [#allocation3], 256, 256, 16
        $region28: #{tpu_custom_call.1} parent=11 // pred_fallthru
          _
        // Predicated region
        $region29: #{tpu_custom_call.1} parent=11 // pred_check
          %p278 = pneg %p151
        $region30: #{tpu_custom_call.1} parent=11 // pred_check_branch
          %280 = sbr.rel (%p278) target = $region32
        $region31: #{tpu_custom_call.1} parent=11 // pred_region
          %282 = vsyncadd [#allocation6], 0
          %s283 = sshll.u32 %s5, 4
          %s284 = int_to_ptr.hbm [resolvable:$true] %s283
          %s285 = sshll.u32 [#allocation5], 4
          %s286 = int_to_ptr.vmem [resolvable:$true] %s285
          %291 = dma.hbm_to_vmem [thread:$0]  %s284, 8192, %s286, [#allocation6], 256, 256, 16
        $region32: #{tpu_custom_call.1} parent=11 // pred_fallthru
          _
        // Predicated region
        $region33: #{tpu_custom_call.1} parent=11 // pred_check
          %p292 = pneg %p172
        $region34: #{tpu_custom_call.1} parent=11 // pred_check_branch
          %294 = sbr.rel (%p292) target = $region36
        $region35: #{tpu_custom_call.1} parent=11 // pred_region
          _
        $region36: #{tpu_custom_call.1} parent=11 // pred_fallthru
          _
        // Predicated region
        $region37: #{tpu_custom_call.1} parent=11 // pred_check
          %p295 = pneg %p193
        $region38: #{tpu_custom_call.1} parent=11 // pred_check_branch
          %297 = sbr.rel (%p295) target = $region40
        $region39: #{tpu_custom_call.1} parent=11 // pred_region
          %299 = vsyncadd [#allocation6], 0
          %s300 = sshll.u32 %s7, 4
          %s301 = int_to_ptr.hbm [resolvable:$true] %s300
          %s302 = sshll.u32 [#allocation7], 4
          %s303 = int_to_ptr.vmem [resolvable:$true] %s302
          %308 = dma.hbm_to_vmem [thread:$0]  %s301, 4096, %s303, [#allocation6], 64, 64, 4
        $region40: #{tpu_custom_call.1} parent=11 // pred_fallthru
          _
        // Predicated region
        $region41: #{tpu_custom_call.1} parent=11 // pred_check
          %p309 = pneg %p214
        $region42: #{tpu_custom_call.1} parent=11 // pred_check_branch
          %311 = sbr.rel (%p309) target = $region44
        $region43: #{tpu_custom_call.1} parent=11 // pred_region
          _
        $region44: #{tpu_custom_call.1} parent=11 // pred_fallthru
          _
      $region12: #{tpu_custom_call.1} parent=5 // pred_fallthru
        _
      %p312 = scmp.lt.s32.totalorder %s20, 2
      // Predicated region
      $region45: #{tpu_custom_call.1} parent=5 // pred_check
        %p313 = pneg %p312
      $region46: #{tpu_custom_call.1} parent=5 // pred_check_branch
        %315 = sbr.rel (%p313) target = $region48
      $region47: #{tpu_custom_call.1} parent=5 // pred_region
        // Predicated region
        $region49: #{tpu_custom_call.1} parent=47 // pred_check
          %p316 = pneg %p40
        $region50: #{tpu_custom_call.1} parent=47 // pred_check_branch
          %318 = sbr.rel (%p316) target = $region52
        $region51: #{tpu_custom_call.1} parent=47 // pred_region
          %s319 = smul.u32 8, %s20
          %p320 = scmp.lt.s32.totalorder %s319, 15
          %s321 = scalar_select %p320, %s319, 15
          %s322 = smul.addr %s321, 8
          %s323 = scalar_lea.vmem %s0, %s322
          %s324 = smul.u32 8, %s20
        $region52: #{tpu_custom_call.1} parent=47 // pred_fallthru
          _
      $region48: #{tpu_custom_call.1} parent=5 // pred_fallthru
        _
      %p325 = scmp.le.s32.totalorder 1, %s20
      %p326 = scmp.lt.s32.totalorder %s20, 3
      %p327 = pnand %p325, %p326
      %p328 = pneg %p327
      // Predicated region
      $region53: #{tpu_custom_call.1} parent=5 // pred_check
        _
      $region54: #{tpu_custom_call.1} parent=5 // pred_check_branch
        %330 = sbr.rel (%p327) target = $region56
      $region55: #{tpu_custom_call.1} parent=5 // pred_region
        %s331 = ssub.s32 %s20, 1
        // Predicated region
        $region57: #{tpu_custom_call.1} parent=55 // pred_check
          %p332 = pneg %p130
        $region58: #{tpu_custom_call.1} parent=55 // pred_check_branch
          %334 = sbr.rel (%p332) target = $region60
        $region59: #{tpu_custom_call.1} parent=55 // pred_region
          %336 = dma.done [#allocation3], 8192
        $region60: #{tpu_custom_call.1} parent=55 // pred_fallthru
          _
        // Predicated region
        $region61: #{tpu_custom_call.1} parent=55 // pred_check
          %p337 = pneg %p151
        $region62: #{tpu_custom_call.1} parent=55 // pred_check_branch
          %339 = sbr.rel (%p337) target = $region64
        $region63: #{tpu_custom_call.1} parent=55 // pred_region
          %341 = dma.done [#allocation6], 8192
        $region64: #{tpu_custom_call.1} parent=55 // pred_fallthru
          _
        // Predicated region
        $region65: #{tpu_custom_call.1} parent=55 // pred_check
          %p342 = pneg %p193
        $region66: #{tpu_custom_call.1} parent=55 // pred_check_branch
          %344 = sbr.rel (%p342) target = $region68
        $region67: #{tpu_custom_call.1} parent=55 // pred_region
          %346 = dma.done [#allocation6], 4096
        $region68: #{tpu_custom_call.1} parent=55 // pred_fallthru
          _
        %s347 = smul.u32 8, %s25
        %p348 = scmp.lt.s32.totalorder %s347, 15
        %s349 = scalar_select %p348, %s347, 15
        %s350 = smul.addr %s349, 8
        %s351 = scalar_lea.vmem %s0, %s350
        %p352 = pneg %p46
        %p353 = pneg %p43
        %p354 = pneg %p67
        %p355 = pneg %p64
        %p356 = pneg %p88
        %p357 = pneg %p85
        %p358 = pneg %p109
        %p359 = pneg %p106
        %p360 = pneg %p130
        %p361 = pneg %p127
        %p362 = pneg %p151
        %p363 = pneg %p148
        %p364 = pneg %p172
        %p365 = pneg %p169
        %p366 = pneg %p193
        %p367 = pneg %p190
        %p368 = pneg %p214
        %p369 = pneg %p211
        %p370 = pneg %p240
        %p371 = pneg %p237
        %s372 = sand.u32 %s227, 1
        %s373 = scalar_lea.sflag [#allocation4], %s372
        %s374 = sand.u32 %s227, 1
        %s375 = smul.addr %s374, 8
        %s376 = scalar_lea.vmem [#allocation8], %s375
        %s377 = smul.u32 8, %s25
        %p378 = scmp.lt.s32.totalorder %s377, 15
        %s379 = scalar_select %p378, %s377, 15
        %s380 = smul.addr %s379, 8
        %s381 = scalar_lea.vmem %s0, %s380
        %s382 = smul.u32 8, %s25
        %v384 = vld [vmem:[%s381] sm:$0xff]
        %v385 = vld [vmem:[%s381 + $0x8] sm:$0xff]
        %v386 = vld [vmem:[%s381 + $0x10] sm:$0xff]
        %v387 = vld [vmem:[%s381 + $0x18] sm:$0xff]
        %v388 = vld [vmem:[%s381 + $0x20] sm:$0xff]
        %v389 = vld [vmem:[%s381 + $0x28] sm:$0xff]
        %v390 = vld [vmem:[%s381 + $0x30] sm:$0xff]
        %v391 = vld [vmem:[%s381 + $0x38] sm:$0xff]
        %v392 = vpack.c.bf16 %v385, %v384
        %v393 = vpack.c.bf16 %v387, %v386
        %v394 = vpack.c.bf16 %v389, %v388
        %v395 = vpack.c.bf16 %v391, %v390
        %v396 = vld [vmem:[%s1] sm:$0x7]
        %v397 = vld [vmem:[%s2] sm:$0x1]
        %v399 = vperm.slane %v397, 0
        %vm401 = vcmask 48128
        %v403 = vsel %vm401, %v392, 0
        %v406 = vsel %vm401, %v393, 0
        %v409 = vsel %vm401, %v394, 0
        %v412 = vsel %vm401, %v395, 0
        %vm414 = vcmask 1042432
        %v416 = vsel %vm414, %v396, 0
        %418 = vmatpush.bf16.msra.mxu0 0
        %419 = vmatpush.bf16.msra.mxu0 0
        %420 = vmatpush.bf16.msra.mxu0 0
        %421 = vmatpush.bf16.msra.mxu0 0
        %422 = vmatpush.bf16.msra.mxu0 0
        %423 = vmatpush.bf16.msra.mxu0 0
        %424 = vmatpush.bf16.msra.mxu0 0
        %425 = vmatpush.bf16.msra.mxu0 %v416
        %426 = vmatmul.bf16.gmra.mxu0 %v403
        %v427 = vpop.f32.mrf.mxu0
        %v428 = vadd.f32 %v399, %v427
        %v429 = vpop.f32.mrf.mxu0
        %v430 = vadd.f32 %v399, %v429
        %431 = vmatmul.bf16.gmra.mxu0 %v406
        %v432 = vpop.f32.mrf.mxu0
        %v433 = vadd.f32 %v399, %v432
        %v434 = vpop.f32.mrf.mxu0
        %v435 = vadd.f32 %v399, %v434
        %436 = vmatmul.bf16.gmra.mxu0 %v409
        %v437 = vpop.f32.mrf.mxu0
        %v438 = vadd.f32 %v399, %v437
        %v439 = vpop.f32.mrf.mxu0
        %v440 = vadd.f32 %v399, %v439
        %441 = vmatmul.bf16.gmra.mxu0 %v412
        %v442 = vpop.f32.mrf.mxu0
        %v443 = vadd.f32 %v399, %v442
        %v444 = vpop.f32.mrf.mxu0
        %v445 = vadd.f32 %v399, %v444
        %446 = vdwg.mxu0
        %v447 = vmax.f32 %v428, 0.0
        %v448 = vmax.f32 %v430, 0.0
        %v449 = vmax.f32 %v433, 0.0
        %v450 = vmax.f32 %v435, 0.0
        %v451 = vmax.f32 %v438, 0.0
        %v452 = vmax.f32 %v440, 0.0
        %v453 = vmax.f32 %v443, 0.0
        %v454 = vmax.f32 %v445, 0.0
        %v455 = vpack.c.bf16 %v448, %v447
        %v456 = vpack.c.bf16 %v450, %v449
        %v457 = vpack.c.bf16 %v452, %v451
        %v458 = vpack.c.bf16 %v454, %v453
        %v459 = vld [vmem:[%s3] sm:$0xff]
        %v460 = vld [vmem:[%s3 + $0x8] sm:$0xff]
        %v461 = vld [vmem:[%s3 + $0x10] sm:$0xff]
        %v462 = vld [vmem:[%s3 + $0x18] sm:$0xff]
        %v463 = vld [vmem:[%s3 + $0x20] sm:$0xff]
        %v464 = vld [vmem:[%s3 + $0x28] sm:$0xff]
        %v465 = vld [vmem:[%s3 + $0x30] sm:$0xff]
        %v466 = vld [vmem:[%s3 + $0x38] sm:$0xff]
        %v467 = vld [vmem:[%s3 + $0x40] sm:$0xff]
        %v468 = vld [vmem:[%s3 + $0x48] sm:$0xff]
        %v469 = vld [vmem:[%s3 + $0x50] sm:$0xff]
        %v470 = vld [vmem:[%s3 + $0x58] sm:$0xff]
        %v471 = vld [vmem:[%s3 + $0x60] sm:$0xff]
        %v472 = vld [vmem:[%s3 + $0x68] sm:$0xff]
        %v473 = vld [vmem:[%s3 + $0x70] sm:$0xff]
        %v474 = vld [vmem:[%s3 + $0x78] sm:$0xff]
        %v491 = vunpack.c.l.b16 %v459
        %v492 = vunpack.c.h.b16 %v459
        %v493 = vunpack.c.l.b16 %v460
        %v494 = vunpack.c.h.b16 %v460
        %v495 = vunpack.c.l.b16 %v461
        %v496 = vunpack.c.h.b16 %v461
        %v497 = vunpack.c.l.b16 %v462
        %v498 = vunpack.c.h.b16 %v462
        %v499 = vunpack.c.l.b16 %v463
        %v500 = vunpack.c.h.b16 %v463
        %v501 = vunpack.c.l.b16 %v464
        %v502 = vunpack.c.h.b16 %v464
        %v503 = vunpack.c.l.b16 %v465
        %v504 = vunpack.c.h.b16 %v465
        %v505 = vunpack.c.l.b16 %v466
        %v506 = vunpack.c.h.b16 %v466
        %v507 = vunpack.c.l.b16 %v467
        %v508 = vunpack.c.h.b16 %v467
        %v509 = vunpack.c.l.b16 %v468
        %v510 = vunpack.c.h.b16 %v468
        %v511 = vunpack.c.l.b16 %v469
        %v512 = vunpack.c.h.b16 %v469
        %v513 = vunpack.c.l.b16 %v470
        %v514 = vunpack.c.h.b16 %v470
        %v515 = vunpack.c.l.b16 %v471
        %v516 = vunpack.c.h.b16 %v471
        %v517 = vunpack.c.l.b16 %v472
        %v518 = vunpack.c.h.b16 %v472
        %v519 = vunpack.c.l.b16 %v473
        %v520 = vunpack.c.h.b16 %v473
        %v521 = vunpack.c.l.b16 %v474
        %v522 = vunpack.c.h.b16 %v474
        %v523 = vpack.c.b16 %v493, %v491
        %v524 = vpack.c.b16 %v494, %v492
        %v525 = vpack.c.b16 %v497, %v495
        %v526 = vpack.c.b16 %v498, %v496
        %v527 = vpack.c.b16 %v501, %v499
        %v528 = vpack.c.b16 %v502, %v500
        %v529 = vpack.c.b16 %v505, %v503
        %v530 = vpack.c.b16 %v506, %v504
        %v531 = vpack.c.b16 %v509, %v507
        %v532 = vpack.c.b16 %v510, %v508
        %v533 = vpack.c.b16 %v513, %v511
        %v534 = vpack.c.b16 %v514, %v512
        %v535 = vpack.c.b16 %v517, %v515
        %v536 = vpack.c.b16 %v518, %v516
        %v537 = vpack.c.b16 %v521, %v519
        %v538 = vpack.c.b16 %v522, %v520
        %555 = vmatpush.bf16.msra.mxu0 %v537
        %556 = vmatpush.bf16.msra.mxu0 %v535
        %557 = vmatpush.bf16.msra.mxu0 %v533
        %558 = vmatpush.bf16.msra.mxu0 %v531
        %559 = vmatpush.bf16.msra.mxu0 %v529
        %560 = vmatpush.bf16.msra.mxu0 %v527
        %561 = vmatpush.bf16.msra.mxu0 %v525
        %562 = vmatpush.bf16.msra.mxu0 %v523
        %563 = vmatmul.bf16.gmra.mxu0 %v455
        %v564 = vpop.f32.mrf.mxu0
        %v565 = vadd.f32 0.0, %v564
        %v566 = vpop.f32.mrf.mxu0
        %v567 = vadd.f32 0.0, %v566
        %568 = vmatmul.bf16.gmra.mxu0 %v456
        %v569 = vpop.f32.mrf.mxu0
        %v570 = vadd.f32 0.0, %v569
        %v571 = vpop.f32.mrf.mxu0
        %v572 = vadd.f32 0.0, %v571
        %573 = vmatmul.bf16.gmra.mxu0 %v457
        %v574 = vpop.f32.mrf.mxu0
        %v575 = vadd.f32 0.0, %v574
        %v576 = vpop.f32.mrf.mxu0
        %v577 = vadd.f32 0.0, %v576
        %578 = vmatmul.bf16.gmra.mxu0 %v458
        %v579 = vpop.f32.mrf.mxu0
        %v580 = vadd.f32 0.0, %v579
        %v581 = vpop.f32.mrf.mxu0
        %v582 = vadd.f32 0.0, %v581
        %583 = vdwg.mxu0
        %584 = vmatpush.bf16.msra.mxu0 %v538
        %585 = vmatpush.bf16.msra.mxu0 %v536
        %586 = vmatpush.bf16.msra.mxu0 %v534
        %587 = vmatpush.bf16.msra.mxu0 %v532
        %588 = vmatpush.bf16.msra.mxu0 %v530
        %589 = vmatpush.bf16.msra.mxu0 %v528
        %590 = vmatpush.bf16.msra.mxu0 %v526
        %591 = vmatpush.bf16.msra.mxu0 %v524
        %592 = vmatmul.bf16.gmra.mxu0 %v455
        %v593 = vpop.f32.mrf.mxu0
        %v594 = vadd.f32 0.0, %v593
        %v595 = vpop.f32.mrf.mxu0
        %v596 = vadd.f32 0.0, %v595
        %597 = vmatmul.bf16.gmra.mxu0 %v456
        %v598 = vpop.f32.mrf.mxu0
        %v599 = vadd.f32 0.0, %v598
        %v600 = vpop.f32.mrf.mxu0
        %v601 = vadd.f32 0.0, %v600
        %602 = vmatmul.bf16.gmra.mxu0 %v457
        %v603 = vpop.f32.mrf.mxu0
        %v604 = vadd.f32 0.0, %v603
        %v605 = vpop.f32.mrf.mxu0
        %v606 = vadd.f32 0.0, %v605
        %607 = vmatmul.bf16.gmra.mxu0 %v458
        %v608 = vpop.f32.mrf.mxu0
        %v609 = vadd.f32 0.0, %v608
        %v610 = vpop.f32.mrf.mxu0
        %v611 = vadd.f32 0.0, %v610
        %612 = vdwg.mxu0
        %v613 = vrot.slane %v565, 4
        %v614 = vmax.f32 %v565, %v613
        %v615 = vrot.slane %v614, 2
        %v616 = vmax.f32 %v614, %v615
        %v617 = vrot.slane %v616, 1
        %v618 = vmax.f32 %v616, %v617
        %v619 = vrot.slane %v594, 4
        %v620 = vmax.f32 %v594, %v619
        %v621 = vrot.slane %v620, 2
        %v622 = vmax.f32 %v620, %v621
        %v623 = vrot.slane %v622, 1
        %v624 = vmax.f32 %v622, %v623
        %v625 = vrot.slane %v567, 4
        %v626 = vmax.f32 %v567, %v625
        %v627 = vrot.slane %v626, 2
        %v628 = vmax.f32 %v626, %v627
        %v629 = vrot.slane %v628, 1
        %v630 = vmax.f32 %v628, %v629
        %v631 = vrot.slane %v596, 4
        %v632 = vmax.f32 %v596, %v631
        %v633 = vrot.slane %v632, 2
        %v634 = vmax.f32 %v632, %v633
        %v635 = vrot.slane %v634, 1
        %v636 = vmax.f32 %v634, %v635
        %v637 = vrot.slane %v570, 4
        %v638 = vmax.f32 %v570, %v637
        %v639 = vrot.slane %v638, 2
        %v640 = vmax.f32 %v638, %v639
        %v641 = vrot.slane %v640, 1
        %v642 = vmax.f32 %v640, %v641
        %v643 = vrot.slane %v599, 4
        %v644 = vmax.f32 %v599, %v643
        %v645 = vrot.slane %v644, 2
        %v646 = vmax.f32 %v644, %v645
        %v647 = vrot.slane %v646, 1
        %v648 = vmax.f32 %v646, %v647
        %v649 = vrot.slane %v572, 4
        %v650 = vmax.f32 %v572, %v649
        %v651 = vrot.slane %v650, 2
        %v652 = vmax.f32 %v650, %v651
        %v653 = vrot.slane %v652, 1
        %v654 = vmax.f32 %v652, %v653
        %v655 = vrot.slane %v601, 4
        %v656 = vmax.f32 %v601, %v655
        %v657 = vrot.slane %v656, 2
        %v658 = vmax.f32 %v656, %v657
        %v659 = vrot.slane %v658, 1
        %v660 = vmax.f32 %v658, %v659
        %v661 = vrot.slane %v575, 4
        %v662 = vmax.f32 %v575, %v661
        %v663 = vrot.slane %v662, 2
        %v664 = vmax.f32 %v662, %v663
        %v665 = vrot.slane %v664, 1
        %v666 = vmax.f32 %v664, %v665
        %v667 = vrot.slane %v604, 4
        %v668 = vmax.f32 %v604, %v667
        %v669 = vrot.slane %v668, 2
        %v670 = vmax.f32 %v668, %v669
        %v671 = vrot.slane %v670, 1
        %v672 = vmax.f32 %v670, %v671
        %v673 = vrot.slane %v577, 4
        %v674 = vmax.f32 %v577, %v673
        %v675 = vrot.slane %v674, 2
        %v676 = vmax.f32 %v674, %v675
        %v677 = vrot.slane %v676, 1
        %v678 = vmax.f32 %v676, %v677
        %v679 = vrot.slane %v606, 4
        %v680 = vmax.f32 %v606, %v679
        %v681 = vrot.slane %v680, 2
        %v682 = vmax.f32 %v680, %v681
        %v683 = vrot.slane %v682, 1
        %v684 = vmax.f32 %v682, %v683
        %v685 = vrot.slane %v580, 4
        %v686 = vmax.f32 %v580, %v685
        %v687 = vrot.slane %v686, 2
        %v688 = vmax.f32 %v686, %v687
        %v689 = vrot.slane %v688, 1
        %v690 = vmax.f32 %v688, %v689
        %v691 = vrot.slane %v609, 4
        %v692 = vmax.f32 %v609, %v691
        %v693 = vrot.slane %v692, 2
        %v694 = vmax.f32 %v692, %v693
        %v695 = vrot.slane %v694, 1
        %v696 = vmax.f32 %v694, %v695
        %v697 = vrot.slane %v582, 4
        %v698 = vmax.f32 %v582, %v697
        %v699 = vrot.slane %v698, 2
        %v700 = vmax.f32 %v698, %v699
        %v701 = vrot.slane %v700, 1
        %v702 = vmax.f32 %v700, %v701
        %v703 = vrot.slane %v611, 4
        %v704 = vmax.f32 %v611, %v703
        %v705 = vrot.slane %v704, 2
        %v706 = vmax.f32 %v704, %v705
        %v707 = vrot.slane %v706, 1
        %v708 = vmax.f32 %v706, %v707
        %v709 = vpack.c.bf16 %v618, %v618
        %v710 = vpack.c.bf16 %v624, %v624
        %v711 = vpack.c.bf16 %v630, %v630
        %v712 = vpack.c.bf16 %v636, %v636
        %v713 = vpack.c.bf16 %v642, %v642
        %v714 = vpack.c.bf16 %v648, %v648
        %v715 = vpack.c.bf16 %v654, %v654
        %v716 = vpack.c.bf16 %v660, %v660
        %v717 = vpack.c.bf16 %v666, %v666
        %v718 = vpack.c.bf16 %v672, %v672
        %v719 = vpack.c.bf16 %v678, %v678
        %v720 = vpack.c.bf16 %v684, %v684
        %v721 = vpack.c.bf16 %v690, %v690
        %v722 = vpack.c.bf16 %v696, %v696
        %v723 = vpack.c.bf16 %v702, %v702
        %v724 = vpack.c.bf16 %v708, %v708
        %v725 = vld [vmem:[#allocation2] sm:$0xff]
        %v726 = vld [vmem:[#allocation2 + $0x8] sm:$0xff]
        %v727 = vld [vmem:[#allocation2 + $0x10] sm:$0xff]
        %v728 = vld [vmem:[#allocation2 + $0x18] sm:$0xff]
        %v729 = vld [vmem:[#allocation2 + $0x20] sm:$0xff]
        %v730 = vld [vmem:[#allocation2 + $0x28] sm:$0xff]
        %v731 = vld [vmem:[#allocation2 + $0x30] sm:$0xff]
        %v732 = vld [vmem:[#allocation2 + $0x38] sm:$0xff]
        %v733 = vld [vmem:[#allocation2 + $0x40] sm:$0xff]
        %v734 = vld [vmem:[#allocation2 + $0x48] sm:$0xff]
        %v735 = vld [vmem:[#allocation2 + $0x50] sm:$0xff]
        %v736 = vld [vmem:[#allocation2 + $0x58] sm:$0xff]
        %v737 = vld [vmem:[#allocation2 + $0x60] sm:$0xff]
        %v738 = vld [vmem:[#allocation2 + $0x68] sm:$0xff]
        %v739 = vld [vmem:[#allocation2 + $0x70] sm:$0xff]
        %v740 = vld [vmem:[#allocation2 + $0x78] sm:$0xff]
        %v741 = vld [vmem:[#allocation2 + $0x80] sm:$0xff]
        %v742 = vld [vmem:[#allocation2 + $0x88] sm:$0xff]
        %v743 = vld [vmem:[#allocation2 + $0x90] sm:$0xff]
        %v744 = vld [vmem:[#allocation2 + $0x98] sm:$0xff]
        %v745 = vld [vmem:[#allocation2 + $0xa0] sm:$0xff]
        %v746 = vld [vmem:[#allocation2 + $0xa8] sm:$0xff]
        %v747 = vld [vmem:[#allocation2 + $0xb0] sm:$0xff]
        %v748 = vld [vmem:[#allocation2 + $0xb8] sm:$0xff]
        %v749 = vld [vmem:[#allocation2 + $0xc0] sm:$0xff]
        %v750 = vld [vmem:[#allocation2 + $0xc8] sm:$0xff]
        %v751 = vld [vmem:[#allocation2 + $0xd0] sm:$0xff]
        %v752 = vld [vmem:[#allocation2 + $0xd8] sm:$0xff]
        %v753 = vld [vmem:[#allocation2 + $0xe0] sm:$0xff]
        %v754 = vld [vmem:[#allocation2 + $0xe8] sm:$0xff]
        %v755 = vld [vmem:[#allocation2 + $0xf0] sm:$0xff]
        %v756 = vld [vmem:[#allocation2 + $0xf8] sm:$0xff]
        %v757 = vld [vmem:[#allocation2 + $0x100] sm:$0xff]
        %v758 = vld [vmem:[#allocation2 + $0x108] sm:$0xff]
        %v759 = vld [vmem:[#allocation2 + $0x110] sm:$0xff]
        %v760 = vld [vmem:[#allocation2 + $0x118] sm:$0xff]
        %v761 = vld [vmem:[#allocation2 + $0x120] sm:$0xff]
        %v762 = vld [vmem:[#allocation2 + $0x128] sm:$0xff]
        %v763 = vld [vmem:[#allocation2 + $0x130] sm:$0xff]
        %v764 = vld [vmem:[#allocation2 + $0x138] sm:$0xff]
        %v765 = vld [vmem:[#allocation2 + $0x140] sm:$0xff]
        %v766 = vld [vmem:[#allocation2 + $0x148] sm:$0xff]
        %v767 = vld [vmem:[#allocation2 + $0x150] sm:$0xff]
        %v768 = vld [vmem:[#allocation2 + $0x158] sm:$0xff]
        %v769 = vld [vmem:[#allocation2 + $0x160] sm:$0xff]
        %v770 = vld [vmem:[#allocation2 + $0x168] sm:$0xff]
        %v771 = vld [vmem:[#allocation2 + $0x170] sm:$0xff]
        %v772 = vld [vmem:[#allocation2 + $0x178] sm:$0xff]
        %v773 = vld [vmem:[#allocation2 + $0x180] sm:$0xff]
        %v774 = vld [vmem:[#allocation2 + $0x188] sm:$0xff]
        %v775 = vld [vmem:[#allocation2 + $0x190] sm:$0xff]
        %v776 = vld [vmem:[#allocation2 + $0x198] sm:$0xff]
        %v777 = vld [vmem:[#allocation2 + $0x1a0] sm:$0xff]
        %v778 = vld [vmem:[#allocation2 + $0x1a8] sm:$0xff]
        %v779 = vld [vmem:[#allocation2 + $0x1b0] sm:$0xff]
        %v780 = vld [vmem:[#allocation2 + $0x1b8] sm:$0xff]
        %v781 = vld [vmem:[#allocation2 + $0x1c0] sm:$0xff]
        %v782 = vld [vmem:[#allocation2 + $0x1c8] sm:$0xff]
        %v783 = vld [vmem:[#allocation2 + $0x1d0] sm:$0xff]
        %v784 = vld [vmem:[#allocation2 + $0x1d8] sm:$0xff]
        %v785 = vld [vmem:[#allocation2 + $0x1e0] sm:$0xff]
        %v786 = vld [vmem:[#allocation2 + $0x1e8] sm:$0xff]
        %v787 = vld [vmem:[#allocation2 + $0x1f0] sm:$0xff]
        %v788 = vld [vmem:[#allocation2 + $0x1f8] sm:$0xff]
        %v789 = vld [vmem:[%s6] sm:$0xf]
        %v791 = vperm.slane %v789, 0
        %v792 = vperm.slane %v789, 1
        %v793 = vperm.slane %v789, 2
        %v794 = vperm.slane %v789, 3
        %v815 = vunpack.c.l.b16 %v709
        %v816 = vunpack.c.l.b16 %v710
        %v817 = vunpack.c.l.b16 %v711
        %v818 = vunpack.c.l.b16 %v712
        %v819 = vunpack.c.l.b16 %v713
        %v820 = vunpack.c.l.b16 %v714
        %v821 = vunpack.c.l.b16 %v715
        %v822 = vunpack.c.l.b16 %v716
        %v823 = vunpack.c.l.b16 %v717
        %v824 = vunpack.c.l.b16 %v718
        %v825 = vunpack.c.l.b16 %v719
        %v826 = vunpack.c.l.b16 %v720
        %v827 = vunpack.c.l.b16 %v721
        %v828 = vunpack.c.l.b16 %v722
        %v829 = vunpack.c.l.b16 %v723
        %v830 = vunpack.c.l.b16 %v724
        %vm831 = vcmask 1041409
        %v832 = vsel %vm831, %v817, %v815
        %vm833 = vcmask 1042434
        %v834 = vsel %vm833, %v819, %v832
        %vm835 = vcmask 1043459
        %v836 = vsel %vm835, %v821, %v834
        %vm837 = vcmask 1044484
        %v838 = vsel %vm837, %v823, %v836
        %vm839 = vcmask 1045509
        %v840 = vsel %vm839, %v825, %v838
        %vm841 = vcmask 1046534
        %v842 = vsel %vm841, %v827, %v840
        %vm843 = vcmask 1047559
        %v844 = vsel %vm843, %v829, %v842
        %v845 = vsel %vm831, %v818, %v816
        %v846 = vsel %vm833, %v820, %v845
        %v847 = vsel %vm835, %v822, %v846
        %v848 = vsel %vm837, %v824, %v847
        %v849 = vsel %vm839, %v826, %v848
        %v850 = vsel %vm841, %v828, %v849
        %v851 = vsel %vm843, %v830, %v850
        %v852 = vpack.c.b16 %v844, %v844
        %v853 = vpack.c.b16 %v851, %v851
        %v920 = vunpack.c.l.b16 %v725
        %v921 = vunpack.c.h.b16 %v725
        %v922 = vunpack.c.l.b16 %v726
        %v923 = vunpack.c.h.b16 %v726
        %v924 = vunpack.c.l.b16 %v727
        %v925 = vunpack.c.h.b16 %v727
        %v926 = vunpack.c.l.b16 %v728
        %v927 = vunpack.c.h.b16 %v728
        %v928 = vunpack.c.l.b16 %v729
        %v929 = vunpack.c.h.b16 %v729
        %v930 = vunpack.c.l.b16 %v730
        %v931 = vunpack.c.h.b16 %v730
        %v932 = vunpack.c.l.b16 %v731
        %v933 = vunpack.c.h.b16 %v731
        %v934 = vunpack.c.l.b16 %v732
        %v935 = vunpack.c.h.b16 %v732
        %v936 = vunpack.c.l.b16 %v733
        %v937 = vunpack.c.h.b16 %v733
        %v938 = vunpack.c.l.b16 %v734
        %v939 = vunpack.c.h.b16 %v734
        %v940 = vunpack.c.l.b16 %v735
        %v941 = vunpack.c.h.b16 %v735
        %v942 = vunpack.c.l.b16 %v736
        %v943 = vunpack.c.h.b16 %v736
        %v944 = vunpack.c.l.b16 %v737
        %v945 = vunpack.c.h.b16 %v737
        %v946 = vunpack.c.l.b16 %v738
        %v947 = vunpack.c.h.b16 %v738
        %v948 = vunpack.c.l.b16 %v739
        %v949 = vunpack.c.h.b16 %v739
        %v950 = vunpack.c.l.b16 %v740
        %v951 = vunpack.c.h.b16 %v740
        %v952 = vunpack.c.l.b16 %v741
        %v953 = vunpack.c.h.b16 %v741
        %v954 = vunpack.c.l.b16 %v742
        %v955 = vunpack.c.h.b16 %v742
        %v956 = vunpack.c.l.b16 %v743
        %v957 = vunpack.c.h.b16 %v743
        %v958 = vunpack.c.l.b16 %v744
        %v959 = vunpack.c.h.b16 %v744
        %v960 = vunpack.c.l.b16 %v745
        %v961 = vunpack.c.h.b16 %v745
        %v962 = vunpack.c.l.b16 %v746
        %v963 = vunpack.c.h.b16 %v746
        %v964 = vunpack.c.l.b16 %v747
        %v965 = vunpack.c.h.b16 %v747
        %v966 = vunpack.c.l.b16 %v748
        %v967 = vunpack.c.h.b16 %v748
        %v968 = vunpack.c.l.b16 %v749
        %v969 = vunpack.c.h.b16 %v749
        %v970 = vunpack.c.l.b16 %v750
        %v971 = vunpack.c.h.b16 %v750
        %v972 = vunpack.c.l.b16 %v751
        %v973 = vunpack.c.h.b16 %v751
        %v974 = vunpack.c.l.b16 %v752
        %v975 = vunpack.c.h.b16 %v752
        %v976 = vunpack.c.l.b16 %v753
        %v977 = vunpack.c.h.b16 %v753
        %v978 = vunpack.c.l.b16 %v754
        %v979 = vunpack.c.h.b16 %v754
        %v980 = vunpack.c.l.b16 %v755
        %v981 = vunpack.c.h.b16 %v755
        %v982 = vunpack.c.l.b16 %v756
        %v983 = vunpack.c.h.b16 %v756
        %v984 = vunpack.c.l.b16 %v757
        %v985 = vunpack.c.h.b16 %v757
        %v986 = vunpack.c.l.b16 %v758
        %v987 = vunpack.c.h.b16 %v758
        %v988 = vunpack.c.l.b16 %v759
        %v989 = vunpack.c.h.b16 %v759
        %v990 = vunpack.c.l.b16 %v760
        %v991 = vunpack.c.h.b16 %v760
        %v992 = vunpack.c.l.b16 %v761
        %v993 = vunpack.c.h.b16 %v761
        %v994 = vunpack.c.l.b16 %v762
        %v995 = vunpack.c.h.b16 %v762
        %v996 = vunpack.c.l.b16 %v763
        %v997 = vunpack.c.h.b16 %v763
        %v998 = vunpack.c.l.b16 %v764
        %v999 = vunpack.c.h.b16 %v764
        %v1000 = vunpack.c.l.b16 %v765
        %v1001 = vunpack.c.h.b16 %v765
        %v1002 = vunpack.c.l.b16 %v766
        %v1003 = vunpack.c.h.b16 %v766
        %v1004 = vunpack.c.l.b16 %v767
        %v1005 = vunpack.c.h.b16 %v767
        %v1006 = vunpack.c.l.b16 %v768
        %v1007 = vunpack.c.h.b16 %v768
        %v1008 = vunpack.c.l.b16 %v769
        %v1009 = vunpack.c.h.b16 %v769
        %v1010 = vunpack.c.l.b16 %v770
        %v1011 = vunpack.c.h.b16 %v770
        %v1012 = vunpack.c.l.b16 %v771
        %v1013 = vunpack.c.h.b16 %v771
        %v1014 = vunpack.c.l.b16 %v772
        %v1015 = vunpack.c.h.b16 %v772
        %v1016 = vunpack.c.l.b16 %v773
        %v1017 = vunpack.c.h.b16 %v773
        %v1018 = vunpack.c.l.b16 %v774
        %v1019 = vunpack.c.h.b16 %v774
        %v1020 = vunpack.c.l.b16 %v775
        %v1021 = vunpack.c.h.b16 %v775
        %v1022 = vunpack.c.l.b16 %v776
        %v1023 = vunpack.c.h.b16 %v776
        %v1024 = vunpack.c.l.b16 %v777
        %v1025 = vunpack.c.h.b16 %v777
        %v1026 = vunpack.c.l.b16 %v778
        %v1027 = vunpack.c.h.b16 %v778
        %v1028 = vunpack.c.l.b16 %v779
        %v1029 = vunpack.c.h.b16 %v779
        %v1030 = vunpack.c.l.b16 %v780
        %v1031 = vunpack.c.h.b16 %v780
        %v1032 = vunpack.c.l.b16 %v781
        %v1033 = vunpack.c.h.b16 %v781
        %v1034 = vunpack.c.l.b16 %v782
        %v1035 = vunpack.c.h.b16 %v782
        %v1036 = vunpack.c.l.b16 %v783
        %v1037 = vunpack.c.h.b16 %v783
        %v1038 = vunpack.c.l.b16 %v784
        %v1039 = vunpack.c.h.b16 %v784
        %v1040 = vunpack.c.l.b16 %v785
        %v1041 = vunpack.c.h.b16 %v785
        %v1042 = vunpack.c.l.b16 %v786
        %v1043 = vunpack.c.h.b16 %v786
        %v1044 = vunpack.c.l.b16 %v787
        %v1045 = vunpack.c.h.b16 %v787
        %v1046 = vunpack.c.l.b16 %v788
        %v1047 = vunpack.c.h.b16 %v788
        %v1048 = vpack.c.b16 %v924, %v920
        %v1049 = vpack.c.b16 %v925, %v921
        %v1050 = vpack.c.b16 %v926, %v922
        %v1051 = vpack.c.b16 %v927, %v923
        %v1052 = vpack.c.b16 %v932, %v928
        %v1053 = vpack.c.b16 %v933, %v929
        %v1054 = vpack.c.b16 %v934, %v930
        %v1055 = vpack.c.b16 %v935, %v931
        %v1056 = vpack.c.b16 %v940, %v936
        %v1057 = vpack.c.b16 %v941, %v937
        %v1058 = vpack.c.b16 %v942, %v938
        %v1059 = vpack.c.b16 %v943, %v939
        %v1060 = vpack.c.b16 %v948, %v944
        %v1061 = vpack.c.b16 %v949, %v945
        %v1062 = vpack.c.b16 %v950, %v946
        %v1063 = vpack.c.b16 %v951, %v947
        %v1064 = vpack.c.b16 %v956, %v952
        %v1065 = vpack.c.b16 %v957, %v953
        %v1066 = vpack.c.b16 %v958, %v954
        %v1067 = vpack.c.b16 %v959, %v955
        %v1068 = vpack.c.b16 %v964, %v960
        %v1069 = vpack.c.b16 %v965, %v961
        %v1070 = vpack.c.b16 %v966, %v962
        %v1071 = vpack.c.b16 %v967, %v963
        %v1072 = vpack.c.b16 %v972, %v968
        %v1073 = vpack.c.b16 %v973, %v969
        %v1074 = vpack.c.b16 %v974, %v970
        %v1075 = vpack.c.b16 %v975, %v971
        %v1076 = vpack.c.b16 %v980, %v976
        %v1077 = vpack.c.b16 %v981, %v977
        %v1078 = vpack.c.b16 %v982, %v978
        %v1079 = vpack.c.b16 %v983, %v979
        %v1080 = vpack.c.b16 %v988, %v984
        %v1081 = vpack.c.b16 %v989, %v985
        %v1082 = vpack.c.b16 %v990, %v986
        %v1083 = vpack.c.b16 %v991, %v987
        %v1084 = vpack.c.b16 %v996, %v992
        %v1085 = vpack.c.b16 %v997, %v993
        %v1086 = vpack.c.b16 %v998, %v994
        %v1087 = vpack.c.b16 %v999, %v995
        %v1088 = vpack.c.b16 %v1004, %v1000
        %v1089 = vpack.c.b16 %v1005, %v1001
        %v1090 = vpack.c.b16 %v1006, %v1002
        %v1091 = vpack.c.b16 %v1007, %v1003
        %v1092 = vpack.c.b16 %v1012, %v1008
        %v1093 = vpack.c.b16 %v1013, %v1009
        %v1094 = vpack.c.b16 %v1014, %v1010
        %v1095 = vpack.c.b16 %v1015, %v1011
        %v1096 = vpack.c.b16 %v1020, %v1016
        %v1097 = vpack.c.b16 %v1021, %v1017
        %v1098 = vpack.c.b16 %v1022, %v1018
        %v1099 = vpack.c.b16 %v1023, %v1019
        %v1100 = vpack.c.b16 %v1028, %v1024
        %v1101 = vpack.c.b16 %v1029, %v1025
        %v1102 = vpack.c.b16 %v1030, %v1026
        %v1103 = vpack.c.b16 %v1031, %v1027
        %v1104 = vpack.c.b16 %v1036, %v1032
        %v1105 = vpack.c.b16 %v1037, %v1033
        %v1106 = vpack.c.b16 %v1038, %v1034
        %v1107 = vpack.c.b16 %v1039, %v1035
        %v1108 = vpack.c.b16 %v1044, %v1040
        %v1109 = vpack.c.b16 %v1045, %v1041
        %v1110 = vpack.c.b16 %v1046, %v1042
        %v1111 = vpack.c.b16 %v1047, %v1043
        %1176 = vmatpush.bf16.msra.mxu0 %v1076
        %1177 = vmatpush.bf16.msra.mxu0 %v1072
        %1178 = vmatpush.bf16.msra.mxu0 %v1068
        %1179 = vmatpush.bf16.msra.mxu0 %v1064
        %1180 = vmatpush.bf16.msra.mxu0 %v1060
        %1181 = vmatpush.bf16.msra.mxu0 %v1056
        %1182 = vmatpush.bf16.msra.mxu0 %v1052
        %1183 = vmatpush.bf16.msra.mxu0 %v1048
        %1184 = vmatmul.bf16.gmra.mxu0 %v852
        %v1185 = vpop.f32.mrf.mxu0
        %v1186 = vadd.f32 %v791, %v1185
        %v1187 = vpop.f32.mrf.mxu0
        %1188 = vdwg.mxu0
        %1189 = vmatpush.bf16.msra.mxu0 %v1108
        %1190 = vmatpush.bf16.msra.mxu0 %v1104
        %1191 = vmatpush.bf16.msra.mxu0 %v1100
        %1192 = vmatpush.bf16.msra.mxu0 %v1096
        %1193 = vmatpush.bf16.msra.mxu0 %v1092
        %1194 = vmatpush.bf16.msra.mxu0 %v1088
        %1195 = vmatpush.bf16.msra.mxu0 %v1084
        %1196 = vmatpush.bf16.msra.mxu0 %v1080
        %1197 = vmatmul.bf16.gmra.mxu0 %v853
        %v1198 = vpop.f32.mrf.mxu0
        %v1199 = vadd.f32 %v1186, %v1198
        %v1200 = vpop.f32.mrf.mxu0
        %1201 = vdwg.mxu0
        %1202 = vmatpush.bf16.msra.mxu0 %v1077
        %1203 = vmatpush.bf16.msra.mxu0 %v1073
        %1204 = vmatpush.bf16.msra.mxu0 %v1069
        %1205 = vmatpush.bf16.msra.mxu0 %v1065
        %1206 = vmatpush.bf16.msra.mxu0 %v1061
        %1207 = vmatpush.bf16.msra.mxu0 %v1057
        %1208 = vmatpush.bf16.msra.mxu0 %v1053
        %1209 = vmatpush.bf16.msra.mxu0 %v1049
        %1210 = vmatmul.bf16.gmra.mxu0 %v852
        %v1211 = vpop.f32.mrf.mxu0
        %v1212 = vadd.f32 %v792, %v1211
        %v1213 = vpop.f32.mrf.mxu0
        %1214 = vdwg.mxu0
        %1215 = vmatpush.bf16.msra.mxu0 %v1109
        %1216 = vmatpush.bf16.msra.mxu0 %v1105
        %1217 = vmatpush.bf16.msra.mxu0 %v1101
        %1218 = vmatpush.bf16.msra.mxu0 %v1097
        %1219 = vmatpush.bf16.msra.mxu0 %v1093
        %1220 = vmatpush.bf16.msra.mxu0 %v1089
        %1221 = vmatpush.bf16.msra.mxu0 %v1085
        %1222 = vmatpush.bf16.msra.mxu0 %v1081
        %1223 = vmatmul.bf16.gmra.mxu0 %v853
        %v1224 = vpop.f32.mrf.mxu0
        %v1225 = vadd.f32 %v1212, %v1224
        %v1226 = vpop.f32.mrf.mxu0
        %1227 = vdwg.mxu0
        %1228 = vmatpush.bf16.msra.mxu0 %v1078
        %1229 = vmatpush.bf16.msra.mxu0 %v1074
        %1230 = vmatpush.bf16.msra.mxu0 %v1070
        %1231 = vmatpush.bf16.msra.mxu0 %v1066
        %1232 = vmatpush.bf16.msra.mxu0 %v1062
        %1233 = vmatpush.bf16.msra.mxu0 %v1058
        %1234 = vmatpush.bf16.msra.mxu0 %v1054
        %1235 = vmatpush.bf16.msra.mxu0 %v1050
        %1236 = vmatmul.bf16.gmra.mxu0 %v852
        %v1237 = vpop.f32.mrf.mxu0
        %v1238 = vadd.f32 %v793, %v1237
        %v1239 = vpop.f32.mrf.mxu0
        %1240 = vdwg.mxu0
        %1241 = vmatpush.bf16.msra.mxu0 %v1110
        %1242 = vmatpush.bf16.msra.mxu0 %v1106
        %1243 = vmatpush.bf16.msra.mxu0 %v1102
        %1244 = vmatpush.bf16.msra.mxu0 %v1098
        %1245 = vmatpush.bf16.msra.mxu0 %v1094
        %1246 = vmatpush.bf16.msra.mxu0 %v1090
        %1247 = vmatpush.bf16.msra.mxu0 %v1086
        %1248 = vmatpush.bf16.msra.mxu0 %v1082
        %1249 = vmatmul.bf16.gmra.mxu0 %v853
        %v1250 = vpop.f32.mrf.mxu0
        %v1251 = vadd.f32 %v1238, %v1250
        %v1252 = vpop.f32.mrf.mxu0
        %1253 = vdwg.mxu0
        %1254 = vmatpush.bf16.msra.mxu0 %v1079
        %1255 = vmatpush.bf16.msra.mxu0 %v1075
        %1256 = vmatpush.bf16.msra.mxu0 %v1071
        %1257 = vmatpush.bf16.msra.mxu0 %v1067
        %1258 = vmatpush.bf16.msra.mxu0 %v1063
        %1259 = vmatpush.bf16.msra.mxu0 %v1059
        %1260 = vmatpush.bf16.msra.mxu0 %v1055
        %1261 = vmatpush.bf16.msra.mxu0 %v1051
        %1262 = vmatmul.bf16.gmra.mxu0 %v852
        %v1263 = vpop.f32.mrf.mxu0
        %v1264 = vadd.f32 %v794, %v1263
        %v1265 = vpop.f32.mrf.mxu0
        %1266 = vdwg.mxu0
        %1267 = vmatpush.bf16.msra.mxu0 %v1111
        %1268 = vmatpush.bf16.msra.mxu0 %v1107
        %1269 = vmatpush.bf16.msra.mxu0 %v1103
        %1270 = vmatpush.bf16.msra.mxu0 %v1099
        %1271 = vmatpush.bf16.msra.mxu0 %v1095
        %1272 = vmatpush.bf16.msra.mxu0 %v1091
        %1273 = vmatpush.bf16.msra.mxu0 %v1087
        %1274 = vmatpush.bf16.msra.mxu0 %v1083
        %1275 = vmatmul.bf16.gmra.mxu0 %v853
        %v1276 = vpop.f32.mrf.mxu0
        %v1277 = vadd.f32 %v1264, %v1276
        %v1278 = vpop.f32.mrf.mxu0
        %1279 = vdwg.mxu0
        %v1280 = vpack.c.bf16 %v567, %v565
        %v1281 = vpack.c.bf16 %v596, %v594
        %v1282 = vpack.c.bf16 %v572, %v570
        %v1283 = vpack.c.bf16 %v601, %v599
        %v1284 = vpack.c.bf16 %v577, %v575
        %v1285 = vpack.c.bf16 %v606, %v604
        %v1286 = vpack.c.bf16 %v582, %v580
        %v1287 = vpack.c.bf16 %v611, %v609
        %v1288 = vld [vmem:[#allocation5] sm:$0xff]
        %v1289 = vld [vmem:[#allocation5 + $0x8] sm:$0xff]
        %v1290 = vld [vmem:[#allocation5 + $0x10] sm:$0xff]
        %v1291 = vld [vmem:[#allocation5 + $0x18] sm:$0xff]
        %v1292 = vld [vmem:[#allocation5 + $0x20] sm:$0xff]
        %v1293 = vld [vmem:[#allocation5 + $0x28] sm:$0xff]
        %v1294 = vld [vmem:[#allocation5 + $0x30] sm:$0xff]
        %v1295 = vld [vmem:[#allocation5 + $0x38] sm:$0xff]
        %v1296 = vld [vmem:[#allocation5 + $0x40] sm:$0xff]
        %v1297 = vld [vmem:[#allocation5 + $0x48] sm:$0xff]
        %v1298 = vld [vmem:[#allocation5 + $0x50] sm:$0xff]
        %v1299 = vld [vmem:[#allocation5 + $0x58] sm:$0xff]
        %v1300 = vld [vmem:[#allocation5 + $0x60] sm:$0xff]
        %v1301 = vld [vmem:[#allocation5 + $0x68] sm:$0xff]
        %v1302 = vld [vmem:[#allocation5 + $0x70] sm:$0xff]
        %v1303 = vld [vmem:[#allocation5 + $0x78] sm:$0xff]
        %v1304 = vld [vmem:[#allocation5 + $0x80] sm:$0xff]
        %v1305 = vld [vmem:[#allocation5 + $0x88] sm:$0xff]
        %v1306 = vld [vmem:[#allocation5 + $0x90] sm:$0xff]
        %v1307 = vld [vmem:[#allocation5 + $0x98] sm:$0xff]
        %v1308 = vld [vmem:[#allocation5 + $0xa0] sm:$0xff]
        %v1309 = vld [vmem:[#allocation5 + $0xa8] sm:$0xff]
        %v1310 = vld [vmem:[#allocation5 + $0xb0] sm:$0xff]
        %v1311 = vld [vmem:[#allocation5 + $0xb8] sm:$0xff]
        %v1312 = vld [vmem:[#allocation5 + $0xc0] sm:$0xff]
        %v1313 = vld [vmem:[#allocation5 + $0xc8] sm:$0xff]
        %v1314 = vld [vmem:[#allocation5 + $0xd0] sm:$0xff]
        %v1315 = vld [vmem:[#allocation5 + $0xd8] sm:$0xff]
        %v1316 = vld [vmem:[#allocation5 + $0xe0] sm:$0xff]
        %v1317 = vld [vmem:[#allocation5 + $0xe8] sm:$0xff]
        %v1318 = vld [vmem:[#allocation5 + $0xf0] sm:$0xff]
        %v1319 = vld [vmem:[#allocation5 + $0xf8] sm:$0xff]
        %v1320 = vld [vmem:[#allocation5 + $0x100] sm:$0xff]
        %v1321 = vld [vmem:[#allocation5 + $0x108] sm:$0xff]
        %v1322 = vld [vmem:[#allocation5 + $0x110] sm:$0xff]
        %v1323 = vld [vmem:[#allocation5 + $0x118] sm:$0xff]
        %v1324 = vld [vmem:[#allocation5 + $0x120] sm:$0xff]
        %v1325 = vld [vmem:[#allocation5 + $0x128] sm:$0xff]
        %v1326 = vld [vmem:[#allocation5 + $0x130] sm:$0xff]
        %v1327 = vld [vmem:[#allocation5 + $0x138] sm:$0xff]
        %v1328 = vld [vmem:[#allocation5 + $0x140] sm:$0xff]
        %v1329 = vld [vmem:[#allocation5 + $0x148] sm:$0xff]
        %v1330 = vld [vmem:[#allocation5 + $0x150] sm:$0xff]
        %v1331 = vld [vmem:[#allocation5 + $0x158] sm:$0xff]
        %v1332 = vld [vmem:[#allocation5 + $0x160] sm:$0xff]
        %v1333 = vld [vmem:[#allocation5 + $0x168] sm:$0xff]
        %v1334 = vld [vmem:[#allocation5 + $0x170] sm:$0xff]
        %v1335 = vld [vmem:[#allocation5 + $0x178] sm:$0xff]
        %v1336 = vld [vmem:[#allocation5 + $0x180] sm:$0xff]
        %v1337 = vld [vmem:[#allocation5 + $0x188] sm:$0xff]
        %v1338 = vld [vmem:[#allocation5 + $0x190] sm:$0xff]
        %v1339 = vld [vmem:[#allocation5 + $0x198] sm:$0xff]
        %v1340 = vld [vmem:[#allocation5 + $0x1a0] sm:$0xff]
        %v1341 = vld [vmem:[#allocation5 + $0x1a8] sm:$0xff]
        %v1342 = vld [vmem:[#allocation5 + $0x1b0] sm:$0xff]
        %v1343 = vld [vmem:[#allocation5 + $0x1b8] sm:$0xff]
        %v1344 = vld [vmem:[#allocation5 + $0x1c0] sm:$0xff]
        %v1345 = vld [vmem:[#allocation5 + $0x1c8] sm:$0xff]
        %v1346 = vld [vmem:[#allocation5 + $0x1d0] sm:$0xff]
        %v1347 = vld [vmem:[#allocation5 + $0x1d8] sm:$0xff]
        %v1348 = vld [vmem:[#allocation5 + $0x1e0] sm:$0xff]
        %v1349 = vld [vmem:[#allocation5 + $0x1e8] sm:$0xff]
        %v1350 = vld [vmem:[#allocation5 + $0x1f0] sm:$0xff]
        %v1351 = vld [vmem:[#allocation5 + $0x1f8] sm:$0xff]
        %v1416 = vunpack.c.l.b16 %v1288
        %v1417 = vunpack.c.h.b16 %v1288
        %v1418 = vunpack.c.l.b16 %v1289
        %v1419 = vunpack.c.h.b16 %v1289
        %v1420 = vunpack.c.l.b16 %v1290
        %v1421 = vunpack.c.h.b16 %v1290
        %v1422 = vunpack.c.l.b16 %v1291
        %v1423 = vunpack.c.h.b16 %v1291
        %v1424 = vunpack.c.l.b16 %v1292
        %v1425 = vunpack.c.h.b16 %v1292
        %v1426 = vunpack.c.l.b16 %v1293
        %v1427 = vunpack.c.h.b16 %v1293
        %v1428 = vunpack.c.l.b16 %v1294
        %v1429 = vunpack.c.h.b16 %v1294
        %v1430 = vunpack.c.l.b16 %v1295
        %v1431 = vunpack.c.h.b16 %v1295
        %v1432 = vunpack.c.l.b16 %v1296
        %v1433 = vunpack.c.h.b16 %v1296
        %v1434 = vunpack.c.l.b16 %v1297
        %v1435 = vunpack.c.h.b16 %v1297
        %v1436 = vunpack.c.l.b16 %v1298
        %v1437 = vunpack.c.h.b16 %v1298
        %v1438 = vunpack.c.l.b16 %v1299
        %v1439 = vunpack.c.h.b16 %v1299
        %v1440 = vunpack.c.l.b16 %v1300
        %v1441 = vunpack.c.h.b16 %v1300
        %v1442 = vunpack.c.l.b16 %v1301
        %v1443 = vunpack.c.h.b16 %v1301
        %v1444 = vunpack.c.l.b16 %v1302
        %v1445 = vunpack.c.h.b16 %v1302
        %v1446 = vunpack.c.l.b16 %v1303
        %v1447 = vunpack.c.h.b16 %v1303
        %v1448 = vunpack.c.l.b16 %v1304
        %v1449 = vunpack.c.h.b16 %v1304
        %v1450 = vunpack.c.l.b16 %v1305
        %v1451 = vunpack.c.h.b16 %v1305
        %v1452 = vunpack.c.l.b16 %v1306
        %v1453 = vunpack.c.h.b16 %v1306
        %v1454 = vunpack.c.l.b16 %v1307
        %v1455 = vunpack.c.h.b16 %v1307
        %v1456 = vunpack.c.l.b16 %v1308
        %v1457 = vunpack.c.h.b16 %v1308
        %v1458 = vunpack.c.l.b16 %v1309
        %v1459 = vunpack.c.h.b16 %v1309
        %v1460 = vunpack.c.l.b16 %v1310
        %v1461 = vunpack.c.h.b16 %v1310
        %v1462 = vunpack.c.l.b16 %v1311
        %v1463 = vunpack.c.h.b16 %v1311
        %v1464 = vunpack.c.l.b16 %v1312
        %v1465 = vunpack.c.h.b16 %v1312
        %v1466 = vunpack.c.l.b16 %v1313
        %v1467 = vunpack.c.h.b16 %v1313
        %v1468 = vunpack.c.l.b16 %v1314
        %v1469 = vunpack.c.h.b16 %v1314
        %v1470 = vunpack.c.l.b16 %v1315
        %v1471 = vunpack.c.h.b16 %v1315
        %v1472 = vunpack.c.l.b16 %v1316
        %v1473 = vunpack.c.h.b16 %v1316
        %v1474 = vunpack.c.l.b16 %v1317
        %v1475 = vunpack.c.h.b16 %v1317
        %v1476 = vunpack.c.l.b16 %v1318
        %v1477 = vunpack.c.h.b16 %v1318
        %v1478 = vunpack.c.l.b16 %v1319
        %v1479 = vunpack.c.h.b16 %v1319
        %v1480 = vunpack.c.l.b16 %v1320
        %v1481 = vunpack.c.h.b16 %v1320
        %v1482 = vunpack.c.l.b16 %v1321
        %v1483 = vunpack.c.h.b16 %v1321
        %v1484 = vunpack.c.l.b16 %v1322
        %v1485 = vunpack.c.h.b16 %v1322
        %v1486 = vunpack.c.l.b16 %v1323
        %v1487 = vunpack.c.h.b16 %v1323
        %v1488 = vunpack.c.l.b16 %v1324
        %v1489 = vunpack.c.h.b16 %v1324
        %v1490 = vunpack.c.l.b16 %v1325
        %v1491 = vunpack.c.h.b16 %v1325
        %v1492 = vunpack.c.l.b16 %v1326
        %v1493 = vunpack.c.h.b16 %v1326
        %v1494 = vunpack.c.l.b16 %v1327
        %v1495 = vunpack.c.h.b16 %v1327
        %v1496 = vunpack.c.l.b16 %v1328
        %v1497 = vunpack.c.h.b16 %v1328
        %v1498 = vunpack.c.l.b16 %v1329
        %v1499 = vunpack.c.h.b16 %v1329
        %v1500 = vunpack.c.l.b16 %v1330
        %v1501 = vunpack.c.h.b16 %v1330
        %v1502 = vunpack.c.l.b16 %v1331
        %v1503 = vunpack.c.h.b16 %v1331
        %v1504 = vunpack.c.l.b16 %v1332
        %v1505 = vunpack.c.h.b16 %v1332
        %v1506 = vunpack.c.l.b16 %v1333
        %v1507 = vunpack.c.h.b16 %v1333
        %v1508 = vunpack.c.l.b16 %v1334
        %v1509 = vunpack.c.h.b16 %v1334
        %v1510 = vunpack.c.l.b16 %v1335
        %v1511 = vunpack.c.h.b16 %v1335
        %v1512 = vunpack.c.l.b16 %v1336
        %v1513 = vunpack.c.h.b16 %v1336
        %v1514 = vunpack.c.l.b16 %v1337
        %v1515 = vunpack.c.h.b16 %v1337
        %v1516 = vunpack.c.l.b16 %v1338
        %v1517 = vunpack.c.h.b16 %v1338
        %v1518 = vunpack.c.l.b16 %v1339
        %v1519 = vunpack.c.h.b16 %v1339
        %v1520 = vunpack.c.l.b16 %v1340
        %v1521 = vunpack.c.h.b16 %v1340
        %v1522 = vunpack.c.l.b16 %v1341
        %v1523 = vunpack.c.h.b16 %v1341
        %v1524 = vunpack.c.l.b16 %v1342
        %v1525 = vunpack.c.h.b16 %v1342
        %v1526 = vunpack.c.l.b16 %v1343
        %v1527 = vunpack.c.h.b16 %v1343
        %v1528 = vunpack.c.l.b16 %v1344
        %v1529 = vunpack.c.h.b16 %v1344
        %v1530 = vunpack.c.l.b16 %v1345
        %v1531 = vunpack.c.h.b16 %v1345
        %v1532 = vunpack.c.l.b16 %v1346
        %v1533 = vunpack.c.h.b16 %v1346
        %v1534 = vunpack.c.l.b16 %v1347
        %v1535 = vunpack.c.h.b16 %v1347
        %v1536 = vunpack.c.l.b16 %v1348
        %v1537 = vunpack.c.h.b16 %v1348
        %v1538 = vunpack.c.l.b16 %v1349
        %v1539 = vunpack.c.h.b16 %v1349
        %v1540 = vunpack.c.l.b16 %v1350
        %v1541 = vunpack.c.h.b16 %v1350
        %v1542 = vunpack.c.l.b16 %v1351
        %v1543 = vunpack.c.h.b16 %v1351
        %v1544 = vpack.c.b16 %v1420, %v1416
        %v1545 = vpack.c.b16 %v1421, %v1417
        %v1546 = vpack.c.b16 %v1422, %v1418
        %v1547 = vpack.c.b16 %v1423, %v1419
        %v1548 = vpack.c.b16 %v1428, %v1424
        %v1549 = vpack.c.b16 %v1429, %v1425
        %v1550 = vpack.c.b16 %v1430, %v1426
        %v1551 = vpack.c.b16 %v1431, %v1427
        %v1552 = vpack.c.b16 %v1436, %v1432
        %v1553 = vpack.c.b16 %v1437, %v1433
        %v1554 = vpack.c.b16 %v1438, %v1434
        %v1555 = vpack.c.b16 %v1439, %v1435
        %v1556 = vpack.c.b16 %v1444, %v1440
        %v1557 = vpack.c.b16 %v1445, %v1441
        %v1558 = vpack.c.b16 %v1446, %v1442
        %v1559 = vpack.c.b16 %v1447, %v1443
        %v1560 = vpack.c.b16 %v1452, %v1448
        %v1561 = vpack.c.b16 %v1453, %v1449
        %v1562 = vpack.c.b16 %v1454, %v1450
        %v1563 = vpack.c.b16 %v1455, %v1451
        %v1564 = vpack.c.b16 %v1460, %v1456
        %v1565 = vpack.c.b16 %v1461, %v1457
        %v1566 = vpack.c.b16 %v1462, %v1458
        %v1567 = vpack.c.b16 %v1463, %v1459
        %v1568 = vpack.c.b16 %v1468, %v1464
        %v1569 = vpack.c.b16 %v1469, %v1465
        %v1570 = vpack.c.b16 %v1470, %v1466
        %v1571 = vpack.c.b16 %v1471, %v1467
        %v1572 = vpack.c.b16 %v1476, %v1472
        %v1573 = vpack.c.b16 %v1477, %v1473
        %v1574 = vpack.c.b16 %v1478, %v1474
        %v1575 = vpack.c.b16 %v1479, %v1475
        %v1576 = vpack.c.b16 %v1484, %v1480
        %v1577 = vpack.c.b16 %v1485, %v1481
        %v1578 = vpack.c.b16 %v1486, %v1482
        %v1579 = vpack.c.b16 %v1487, %v1483
        %v1580 = vpack.c.b16 %v1492, %v1488
        %v1581 = vpack.c.b16 %v1493, %v1489
        %v1582 = vpack.c.b16 %v1494, %v1490
        %v1583 = vpack.c.b16 %v1495, %v1491
        %v1584 = vpack.c.b16 %v1500, %v1496
        %v1585 = vpack.c.b16 %v1501, %v1497
        %v1586 = vpack.c.b16 %v1502, %v1498
        %v1587 = vpack.c.b16 %v1503, %v1499
        %v1588 = vpack.c.b16 %v1508, %v1504
        %v1589 = vpack.c.b16 %v1509, %v1505
        %v1590 = vpack.c.b16 %v1510, %v1506
        %v1591 = vpack.c.b16 %v1511, %v1507
        %v1592 = vpack.c.b16 %v1516, %v1512
        %v1593 = vpack.c.b16 %v1517, %v1513
        %v1594 = vpack.c.b16 %v1518, %v1514
        %v1595 = vpack.c.b16 %v1519, %v1515
        %v1596 = vpack.c.b16 %v1524, %v1520
        %v1597 = vpack.c.b16 %v1525, %v1521
        %v1598 = vpack.c.b16 %v1526, %v1522
        %v1599 = vpack.c.b16 %v1527, %v1523
        %v1600 = vpack.c.b16 %v1532, %v1528
        %v1601 = vpack.c.b16 %v1533, %v1529
        %v1602 = vpack.c.b16 %v1534, %v1530
        %v1603 = vpack.c.b16 %v1535, %v1531
        %v1604 = vpack.c.b16 %v1540, %v1536
        %v1605 = vpack.c.b16 %v1541, %v1537
        %v1606 = vpack.c.b16 %v1542, %v1538
        %v1607 = vpack.c.b16 %v1543, %v1539
        %1672 = vmatpush.bf16.msra.mxu0 %v1572
        %1673 = vmatpush.bf16.msra.mxu0 %v1568
        %1674 = vmatpush.bf16.msra.mxu0 %v1564
        %1675 = vmatpush.bf16.msra.mxu0 %v1560
        %1676 = vmatpush.bf16.msra.mxu0 %v1556
        %1677 = vmatpush.bf16.msra.mxu0 %v1552
        %1678 = vmatpush.bf16.msra.mxu0 %v1548
        %1679 = vmatpush.bf16.msra.mxu0 %v1544
        %1680 = vmatmul.bf16.gmra.mxu0 %v1280
        %v1681 = vpop.f32.mrf.mxu0
        %v1682 = vadd.f32 0.0, %v1681
        %v1683 = vpop.f32.mrf.mxu0
        %v1684 = vadd.f32 0.0, %v1683
        %1685 = vmatmul.bf16.gmra.mxu0 %v1282
        %v1686 = vpop.f32.mrf.mxu0
        %v1687 = vadd.f32 0.0, %v1686
        %v1688 = vpop.f32.mrf.mxu0
        %v1689 = vadd.f32 0.0, %v1688
        %1690 = vmatmul.bf16.gmra.mxu0 %v1284
        %v1691 = vpop.f32.mrf.mxu0
        %v1692 = vadd.f32 0.0, %v1691
        %v1693 = vpop.f32.mrf.mxu0
        %v1694 = vadd.f32 0.0, %v1693
        %1695 = vmatmul.bf16.gmra.mxu0 %v1286
        %v1696 = vpop.f32.mrf.mxu0
        %v1697 = vadd.f32 0.0, %v1696
        %v1698 = vpop.f32.mrf.mxu0
        %v1699 = vadd.f32 0.0, %v1698
        %1700 = vdwg.mxu0
        %1701 = vmatpush.bf16.msra.mxu0 %v1604
        %1702 = vmatpush.bf16.msra.mxu0 %v1600
        %1703 = vmatpush.bf16.msra.mxu0 %v1596
        %1704 = vmatpush.bf16.msra.mxu0 %v1592
        %1705 = vmatpush.bf16.msra.mxu0 %v1588
        %1706 = vmatpush.bf16.msra.mxu0 %v1584
        %1707 = vmatpush.bf16.msra.mxu0 %v1580
        %1708 = vmatpush.bf16.msra.mxu0 %v1576
        %1709 = vmatmul.bf16.gmra.mxu0 %v1281
        %v1710 = vpop.f32.mrf.mxu0
        %v1711 = vadd.f32 %v1682, %v1710
        %v1712 = vpop.f32.mrf.mxu0
        %v1713 = vadd.f32 %v1684, %v1712
        %1714 = vmatmul.bf16.gmra.mxu0 %v1283
        %v1715 = vpop.f32.mrf.mxu0
        %v1716 = vadd.f32 %v1687, %v1715
        %v1717 = vpop.f32.mrf.mxu0
        %v1718 = vadd.f32 %v1689, %v1717
        %1719 = vmatmul.bf16.gmra.mxu0 %v1285
        %v1720 = vpop.f32.mrf.mxu0
        %v1721 = vadd.f32 %v1692, %v1720
        %v1722 = vpop.f32.mrf.mxu0
        %v1723 = vadd.f32 %v1694, %v1722
        %1724 = vmatmul.bf16.gmra.mxu0 %v1287
        %v1725 = vpop.f32.mrf.mxu0
        %v1726 = vadd.f32 %v1697, %v1725
        %v1727 = vpop.f32.mrf.mxu0
        %v1728 = vadd.f32 %v1699, %v1727
        %1729 = vdwg.mxu0
        %1730 = vmatpush.bf16.msra.mxu0 %v1573
        %1731 = vmatpush.bf16.msra.mxu0 %v1569
        %1732 = vmatpush.bf16.msra.mxu0 %v1565
        %1733 = vmatpush.bf16.msra.mxu0 %v1561
        %1734 = vmatpush.bf16.msra.mxu0 %v1557
        %1735 = vmatpush.bf16.msra.mxu0 %v1553
        %1736 = vmatpush.bf16.msra.mxu0 %v1549
        %1737 = vmatpush.bf16.msra.mxu0 %v1545
        %1738 = vmatmul.bf16.gmra.mxu0 %v1280
        %v1739 = vpop.f32.mrf.mxu0
        %v1740 = vadd.f32 0.0, %v1739
        %v1741 = vpop.f32.mrf.mxu0
        %v1742 = vadd.f32 0.0, %v1741
        %1743 = vmatmul.bf16.gmra.mxu0 %v1282
        %v1744 = vpop.f32.mrf.mxu0
        %v1745 = vadd.f32 0.0, %v1744
        %v1746 = vpop.f32.mrf.mxu0
        %v1747 = vadd.f32 0.0, %v1746
        %1748 = vmatmul.bf16.gmra.mxu0 %v1284
        %v1749 = vpop.f32.mrf.mxu0
        %v1750 = vadd.f32 0.0, %v1749
        %v1751 = vpop.f32.mrf.mxu0
        %v1752 = vadd.f32 0.0, %v1751
        %1753 = vmatmul.bf16.gmra.mxu0 %v1286
        %v1754 = vpop.f32.mrf.mxu0
        %v1755 = vadd.f32 0.0, %v1754
        %v1756 = vpop.f32.mrf.mxu0
        %v1757 = vadd.f32 0.0, %v1756
        %1758 = vdwg.mxu0
        %1759 = vmatpush.bf16.msra.mxu0 %v1605
        %1760 = vmatpush.bf16.msra.mxu0 %v1601
        %1761 = vmatpush.bf16.msra.mxu0 %v1597
        %1762 = vmatpush.bf16.msra.mxu0 %v1593
        %1763 = vmatpush.bf16.msra.mxu0 %v1589
        %1764 = vmatpush.bf16.msra.mxu0 %v1585
        %1765 = vmatpush.bf16.msra.mxu0 %v1581
        %1766 = vmatpush.bf16.msra.mxu0 %v1577
        %1767 = vmatmul.bf16.gmra.mxu0 %v1281
        %v1768 = vpop.f32.mrf.mxu0
        %v1769 = vadd.f32 %v1740, %v1768
        %v1770 = vpop.f32.mrf.mxu0
        %v1771 = vadd.f32 %v1742, %v1770
        %1772 = vmatmul.bf16.gmra.mxu0 %v1283
        %v1773 = vpop.f32.mrf.mxu0
        %v1774 = vadd.f32 %v1745, %v1773
        %v1775 = vpop.f32.mrf.mxu0
        %v1776 = vadd.f32 %v1747, %v1775
        %1777 = vmatmul.bf16.gmra.mxu0 %v1285
        %v1778 = vpop.f32.mrf.mxu0
        %v1779 = vadd.f32 %v1750, %v1778
        %v1780 = vpop.f32.mrf.mxu0
        %v1781 = vadd.f32 %v1752, %v1780
        %1782 = vmatmul.bf16.gmra.mxu0 %v1287
        %v1783 = vpop.f32.mrf.mxu0
        %v1784 = vadd.f32 %v1755, %v1783
        %v1785 = vpop.f32.mrf.mxu0
        %v1786 = vadd.f32 %v1757, %v1785
        %1787 = vdwg.mxu0
        %1788 = vmatpush.bf16.msra.mxu0 %v1574
        %1789 = vmatpush.bf16.msra.mxu0 %v1570
        %1790 = vmatpush.bf16.msra.mxu0 %v1566
        %1791 = vmatpush.bf16.msra.mxu0 %v1562
        %1792 = vmatpush.bf16.msra.mxu0 %v1558
        %1793 = vmatpush.bf16.msra.mxu0 %v1554
        %1794 = vmatpush.bf16.msra.mxu0 %v1550
        %1795 = vmatpush.bf16.msra.mxu0 %v1546
        %1796 = vmatmul.bf16.gmra.mxu0 %v1280
        %v1797 = vpop.f32.mrf.mxu0
        %v1798 = vadd.f32 0.0, %v1797
        %v1799 = vpop.f32.mrf.mxu0
        %v1800 = vadd.f32 0.0, %v1799
        %1801 = vmatmul.bf16.gmra.mxu0 %v1282
        %v1802 = vpop.f32.mrf.mxu0
        %v1803 = vadd.f32 0.0, %v1802
        %v1804 = vpop.f32.mrf.mxu0
        %v1805 = vadd.f32 0.0, %v1804
        %1806 = vmatmul.bf16.gmra.mxu0 %v1284
        %v1807 = vpop.f32.mrf.mxu0
        %v1808 = vadd.f32 0.0, %v1807
        %v1809 = vpop.f32.mrf.mxu0
        %v1810 = vadd.f32 0.0, %v1809
        %1811 = vmatmul.bf16.gmra.mxu0 %v1286
        %v1812 = vpop.f32.mrf.mxu0
        %v1813 = vadd.f32 0.0, %v1812
        %v1814 = vpop.f32.mrf.mxu0
        %v1815 = vadd.f32 0.0, %v1814
        %1816 = vdwg.mxu0
        %1817 = vmatpush.bf16.msra.mxu0 %v1606
        %1818 = vmatpush.bf16.msra.mxu0 %v1602
        %1819 = vmatpush.bf16.msra.mxu0 %v1598
        %1820 = vmatpush.bf16.msra.mxu0 %v1594
        %1821 = vmatpush.bf16.msra.mxu0 %v1590
        %1822 = vmatpush.bf16.msra.mxu0 %v1586
        %1823 = vmatpush.bf16.msra.mxu0 %v1582
        %1824 = vmatpush.bf16.msra.mxu0 %v1578
        %1825 = vmatmul.bf16.gmra.mxu0 %v1281
        %v1826 = vpop.f32.mrf.mxu0
        %v1827 = vadd.f32 %v1798, %v1826
        %v1828 = vpop.f32.mrf.mxu0
        %v1829 = vadd.f32 %v1800, %v1828
        %1830 = vmatmul.bf16.gmra.mxu0 %v1283
        %v1831 = vpop.f32.mrf.mxu0
        %v1832 = vadd.f32 %v1803, %v1831
        %v1833 = vpop.f32.mrf.mxu0
        %v1834 = vadd.f32 %v1805, %v1833
        %1835 = vmatmul.bf16.gmra.mxu0 %v1285
        %v1836 = vpop.f32.mrf.mxu0
        %v1837 = vadd.f32 %v1808, %v1836
        %v1838 = vpop.f32.mrf.mxu0
        %v1839 = vadd.f32 %v1810, %v1838
        %1840 = vmatmul.bf16.gmra.mxu0 %v1287
        %v1841 = vpop.f32.mrf.mxu0
        %v1842 = vadd.f32 %v1813, %v1841
        %v1843 = vpop.f32.mrf.mxu0
        %v1844 = vadd.f32 %v1815, %v1843
        %1845 = vdwg.mxu0
        %1846 = vmatpush.bf16.msra.mxu0 %v1575
        %1847 = vmatpush.bf16.msra.mxu0 %v1571
        %1848 = vmatpush.bf16.msra.mxu0 %v1567
        %1849 = vmatpush.bf16.msra.mxu0 %v1563
        %1850 = vmatpush.bf16.msra.mxu0 %v1559
        %1851 = vmatpush.bf16.msra.mxu0 %v1555
        %1852 = vmatpush.bf16.msra.mxu0 %v1551
        %1853 = vmatpush.bf16.msra.mxu0 %v1547
        %1854 = vmatmul.bf16.gmra.mxu0 %v1280
        %v1855 = vpop.f32.mrf.mxu0
        %v1856 = vadd.f32 0.0, %v1855
        %v1857 = vpop.f32.mrf.mxu0
        %v1858 = vadd.f32 0.0, %v1857
        %1859 = vmatmul.bf16.gmra.mxu0 %v1282
        %v1860 = vpop.f32.mrf.mxu0
        %v1861 = vadd.f32 0.0, %v1860
        %v1862 = vpop.f32.mrf.mxu0
        %v1863 = vadd.f32 0.0, %v1862
        %1864 = vmatmul.bf16.gmra.mxu0 %v1284
        %v1865 = vpop.f32.mrf.mxu0
        %v1866 = vadd.f32 0.0, %v1865
        %v1867 = vpop.f32.mrf.mxu0
        %v1868 = vadd.f32 0.0, %v1867
        %1869 = vmatmul.bf16.gmra.mxu0 %v1286
        %v1870 = vpop.f32.mrf.mxu0
        %v1871 = vadd.f32 0.0, %v1870
        %v1872 = vpop.f32.mrf.mxu0
        %v1873 = vadd.f32 0.0, %v1872
        %1874 = vdwg.mxu0
        %1875 = vmatpush.bf16.msra.mxu0 %v1607
        %1876 = vmatpush.bf16.msra.mxu0 %v1603
        %1877 = vmatpush.bf16.msra.mxu0 %v1599
        %1878 = vmatpush.bf16.msra.mxu0 %v1595
        %1879 = vmatpush.bf16.msra.mxu0 %v1591
        %1880 = vmatpush.bf16.msra.mxu0 %v1587
        %1881 = vmatpush.bf16.msra.mxu0 %v1583
        %1882 = vmatpush.bf16.msra.mxu0 %v1579
        %1883 = vmatmul.bf16.gmra.mxu0 %v1281
        %v1884 = vpop.f32.mrf.mxu0
        %v1885 = vadd.f32 %v1856, %v1884
        %v1886 = vpop.f32.mrf.mxu0
        %v1887 = vadd.f32 %v1858, %v1886
        %1888 = vmatmul.bf16.gmra.mxu0 %v1283
        %v1889 = vpop.f32.mrf.mxu0
        %v1890 = vadd.f32 %v1861, %v1889
        %v1891 = vpop.f32.mrf.mxu0
        %v1892 = vadd.f32 %v1863, %v1891
        %1893 = vmatmul.bf16.gmra.mxu0 %v1285
        %v1894 = vpop.f32.mrf.mxu0
        %v1895 = vadd.f32 %v1866, %v1894
        %v1896 = vpop.f32.mrf.mxu0
        %v1897 = vadd.f32 %v1868, %v1896
        %1898 = vmatmul.bf16.gmra.mxu0 %v1287
        %v1899 = vpop.f32.mrf.mxu0
        %v1900 = vadd.f32 %v1871, %v1899
        %v1901 = vpop.f32.mrf.mxu0
        %v1902 = vadd.f32 %v1873, %v1901
        %1903 = vdwg.mxu0
        %v1908 = vrot.slane %v1225, 7
        %v1909 = vrot.slane %v1251, 6
        %v1910 = vrot.slane %v1277, 5
        %vm1911 = vcmask 1040384
        %v1912 = vsel %vm1911, %v1199, %v1908
        %v1913 = vsel %vm833, %v1909, %v1910
        %vm1914 = vcmask 1041408
        %v1915 = vsel %vm1914, %v1912, %v1913
        %v1916 = vsel %vm831, %v1199, %v1908
        %v1917 = vsel %vm835, %v1909, %v1910
        %vm1918 = vcmask 1042433
        %v1919 = vsel %vm1918, %v1916, %v1917
        %v1920 = vrot.slane %v1919, 1
        %v1921 = vsel %vm833, %v1199, %v1908
        %v1922 = vsel %vm837, %v1909, %v1910
        %vm1923 = vcmask 1043458
        %v1924 = vsel %vm1923, %v1921, %v1922
        %v1925 = vrot.slane %v1924, 2
        %v1926 = vsel %vm835, %v1199, %v1908
        %v1927 = vsel %vm839, %v1909, %v1910
        %vm1928 = vcmask 1044483
        %v1929 = vsel %vm1928, %v1926, %v1927
        %v1930 = vrot.slane %v1929, 3
        %v1931 = vsel %vm837, %v1199, %v1908
        %v1932 = vsel %vm841, %v1909, %v1910
        %vm1933 = vcmask 1045508
        %v1934 = vsel %vm1933, %v1931, %v1932
        %v1935 = vrot.slane %v1934, 4
        %v1936 = vsel %vm839, %v1199, %v1908
        %vm1937 = vcmask 1046528
        %v1938 = vsel %vm1937, %v1910, %v1909
        %vm1939 = vcmask 1046533
        %v1940 = vsel %vm1939, %v1936, %v1938
        %v1941 = vrot.slane %v1940, 5
        %v1942 = vsel %vm841, %v1199, %v1908
        %v1943 = vsel %vm1911, %v1909, %v1910
        %vm1944 = vcmask 1045504
        %v1945 = vsel %vm1944, %v1943, %v1942
        %v1946 = vrot.slane %v1945, 6
        %v1947 = vsel %vm1937, %v1908, %v1199
        %v1948 = vsel %vm831, %v1909, %v1910
        %vm1949 = vcmask 1046529
        %v1950 = vsel %vm1949, %v1948, %v1947
        %v1951 = vrot.slane %v1950, 7
        %v1952 = vperm.slane %v1915, 0
        %v1953 = vperm.slane %v1915, 1
        %v1954 = vperm.slane %v1915, 2
        %v1955 = vperm.slane %v1915, 3
        %v1956 = vperm.slane %v1920, 0
        %v1957 = vperm.slane %v1920, 1
        %v1958 = vperm.slane %v1920, 2
        %v1959 = vperm.slane %v1920, 3
        %v1960 = vperm.slane %v1925, 0
        %v1961 = vperm.slane %v1925, 1
        %v1962 = vperm.slane %v1925, 2
        %v1963 = vperm.slane %v1925, 3
        %v1964 = vperm.slane %v1930, 0
        %v1965 = vperm.slane %v1930, 1
        %v1966 = vperm.slane %v1930, 2
        %v1967 = vperm.slane %v1930, 3
        %v1968 = vperm.slane %v1935, 0
        %v1969 = vperm.slane %v1935, 1
        %v1970 = vperm.slane %v1935, 2
        %v1971 = vperm.slane %v1935, 3
        %v1972 = vperm.slane %v1941, 0
        %v1973 = vperm.slane %v1941, 1
        %v1974 = vperm.slane %v1941, 2
        %v1975 = vperm.slane %v1941, 3
        %v1976 = vperm.slane %v1946, 0
        %v1977 = vperm.slane %v1946, 1
        %v1978 = vperm.slane %v1946, 2
        %v1979 = vperm.slane %v1946, 3
        %v1980 = vperm.slane %v1951, 0
        %v1981 = vperm.slane %v1951, 1
        %v1982 = vperm.slane %v1951, 2
        %v1983 = vperm.slane %v1951, 3
        %v2016 = vadd.f32 %v1711, %v1952
        %v2017 = vadd.f32 %v1769, %v1953
        %v2018 = vadd.f32 %v1827, %v1954
        %v2019 = vadd.f32 %v1885, %v1955
        %v2020 = vadd.f32 %v1713, %v1956
        %v2021 = vadd.f32 %v1771, %v1957
        %v2022 = vadd.f32 %v1829, %v1958
        %v2023 = vadd.f32 %v1887, %v1959
        %v2024 = vadd.f32 %v1716, %v1960
        %v2025 = vadd.f32 %v1774, %v1961
        %v2026 = vadd.f32 %v1832, %v1962
        %v2027 = vadd.f32 %v1890, %v1963
        %v2028 = vadd.f32 %v1718, %v1964
        %v2029 = vadd.f32 %v1776, %v1965
        %v2030 = vadd.f32 %v1834, %v1966
        %v2031 = vadd.f32 %v1892, %v1967
        %v2032 = vadd.f32 %v1721, %v1968
        %v2033 = vadd.f32 %v1779, %v1969
        %v2034 = vadd.f32 %v1837, %v1970
        %v2035 = vadd.f32 %v1895, %v1971
        %v2036 = vadd.f32 %v1723, %v1972
        %v2037 = vadd.f32 %v1781, %v1973
        %v2038 = vadd.f32 %v1839, %v1974
        %v2039 = vadd.f32 %v1897, %v1975
        %v2040 = vadd.f32 %v1726, %v1976
        %v2041 = vadd.f32 %v1784, %v1977
        %v2042 = vadd.f32 %v1842, %v1978
        %v2043 = vadd.f32 %v1900, %v1979
        %v2044 = vadd.f32 %v1728, %v1980
        %v2045 = vadd.f32 %v1786, %v1981
        %v2046 = vadd.f32 %v1844, %v1982
        %v2047 = vadd.f32 %v1902, %v1983
        %v2048 = vmax.f32 %v2016, 0.0
        %v2049 = vmax.f32 %v2017, 0.0
        %v2050 = vmax.f32 %v2018, 0.0
        %v2051 = vmax.f32 %v2019, 0.0
        %v2052 = vmax.f32 %v2020, 0.0
        %v2053 = vmax.f32 %v2021, 0.0
        %v2054 = vmax.f32 %v2022, 0.0
        %v2055 = vmax.f32 %v2023, 0.0
        %v2056 = vmax.f32 %v2024, 0.0
        %v2057 = vmax.f32 %v2025, 0.0
        %v2058 = vmax.f32 %v2026, 0.0
        %v2059 = vmax.f32 %v2027, 0.0
        %v2060 = vmax.f32 %v2028, 0.0
        %v2061 = vmax.f32 %v2029, 0.0
        %v2062 = vmax.f32 %v2030, 0.0
        %v2063 = vmax.f32 %v2031, 0.0
        %v2064 = vmax.f32 %v2032, 0.0
        %v2065 = vmax.f32 %v2033, 0.0
        %v2066 = vmax.f32 %v2034, 0.0
        %v2067 = vmax.f32 %v2035, 0.0
        %v2068 = vmax.f32 %v2036, 0.0
        %v2069 = vmax.f32 %v2037, 0.0
        %v2070 = vmax.f32 %v2038, 0.0
        %v2071 = vmax.f32 %v2039, 0.0
        %v2072 = vmax.f32 %v2040, 0.0
        %v2073 = vmax.f32 %v2041, 0.0
        %v2074 = vmax.f32 %v2042, 0.0
        %v2075 = vmax.f32 %v2043, 0.0
        %v2076 = vmax.f32 %v2044, 0.0
        %v2077 = vmax.f32 %v2045, 0.0
        %v2078 = vmax.f32 %v2046, 0.0
        %v2079 = vmax.f32 %v2047, 0.0
        %v2080 = vpack.c.bf16 %v2049, %v2048
        %v2081 = vpack.c.bf16 %v2051, %v2050
        %v2082 = vpack.c.bf16 %v2053, %v2052
        %v2083 = vpack.c.bf16 %v2055, %v2054
        %v2084 = vpack.c.bf16 %v2057, %v2056
        %v2085 = vpack.c.bf16 %v2059, %v2058
        %v2086 = vpack.c.bf16 %v2061, %v2060
        %v2087 = vpack.c.bf16 %v2063, %v2062
        %v2088 = vpack.c.bf16 %v2065, %v2064
        %v2089 = vpack.c.bf16 %v2067, %v2066
        %v2090 = vpack.c.bf16 %v2069, %v2068
        %v2091 = vpack.c.bf16 %v2071, %v2070
        %v2092 = vpack.c.bf16 %v2073, %v2072
        %v2093 = vpack.c.bf16 %v2075, %v2074
        %v2094 = vpack.c.bf16 %v2077, %v2076
        %v2095 = vpack.c.bf16 %v2079, %v2078
        %v2096 = vld [vmem:[#allocation7] sm:$0xf]
        %v2097 = vld [vmem:[#allocation7 + $0x4] sm:$0xf]
        %v2098 = vld [vmem:[#allocation7 + $0x8] sm:$0xf]
        %v2099 = vld [vmem:[#allocation7 + $0xc] sm:$0xf]
        %v2100 = vld [vmem:[#allocation7 + $0x10] sm:$0xf]
        %v2101 = vld [vmem:[#allocation7 + $0x14] sm:$0xf]
        %v2102 = vld [vmem:[#allocation7 + $0x18] sm:$0xf]
        %v2103 = vld [vmem:[#allocation7 + $0x1c] sm:$0xf]
        %v2104 = vld [vmem:[#allocation7 + $0x20] sm:$0xf]
        %v2105 = vld [vmem:[#allocation7 + $0x24] sm:$0xf]
        %v2106 = vld [vmem:[#allocation7 + $0x28] sm:$0xf]
        %v2107 = vld [vmem:[#allocation7 + $0x2c] sm:$0xf]
        %v2108 = vld [vmem:[#allocation7 + $0x30] sm:$0xf]
        %v2109 = vld [vmem:[#allocation7 + $0x34] sm:$0xf]
        %v2110 = vld [vmem:[#allocation7 + $0x38] sm:$0xf]
        %v2111 = vld [vmem:[#allocation7 + $0x3c] sm:$0xf]
        %v2112 = vld [vmem:[#allocation7 + $0x40] sm:$0xf]
        %v2113 = vld [vmem:[#allocation7 + $0x44] sm:$0xf]
        %v2114 = vld [vmem:[#allocation7 + $0x48] sm:$0xf]
        %v2115 = vld [vmem:[#allocation7 + $0x4c] sm:$0xf]
        %v2116 = vld [vmem:[#allocation7 + $0x50] sm:$0xf]
        %v2117 = vld [vmem:[#allocation7 + $0x54] sm:$0xf]
        %v2118 = vld [vmem:[#allocation7 + $0x58] sm:$0xf]
        %v2119 = vld [vmem:[#allocation7 + $0x5c] sm:$0xf]
        %v2120 = vld [vmem:[#allocation7 + $0x60] sm:$0xf]
        %v2121 = vld [vmem:[#allocation7 + $0x64] sm:$0xf]
        %v2122 = vld [vmem:[#allocation7 + $0x68] sm:$0xf]
        %v2123 = vld [vmem:[#allocation7 + $0x6c] sm:$0xf]
        %v2124 = vld [vmem:[#allocation7 + $0x70] sm:$0xf]
        %v2125 = vld [vmem:[#allocation7 + $0x74] sm:$0xf]
        %v2126 = vld [vmem:[#allocation7 + $0x78] sm:$0xf]
        %v2127 = vld [vmem:[#allocation7 + $0x7c] sm:$0xf]
        %v2128 = vld [vmem:[#allocation7 + $0x80] sm:$0xf]
        %v2129 = vld [vmem:[#allocation7 + $0x84] sm:$0xf]
        %v2130 = vld [vmem:[#allocation7 + $0x88] sm:$0xf]
        %v2131 = vld [vmem:[#allocation7 + $0x8c] sm:$0xf]
        %v2132 = vld [vmem:[#allocation7 + $0x90] sm:$0xf]
        %v2133 = vld [vmem:[#allocation7 + $0x94] sm:$0xf]
        %v2134 = vld [vmem:[#allocation7 + $0x98] sm:$0xf]
        %v2135 = vld [vmem:[#allocation7 + $0x9c] sm:$0xf]
        %v2136 = vld [vmem:[#allocation7 + $0xa0] sm:$0xf]
        %v2137 = vld [vmem:[#allocation7 + $0xa4] sm:$0xf]
        %v2138 = vld [vmem:[#allocation7 + $0xa8] sm:$0xf]
        %v2139 = vld [vmem:[#allocation7 + $0xac] sm:$0xf]
        %v2140 = vld [vmem:[#allocation7 + $0xb0] sm:$0xf]
        %v2141 = vld [vmem:[#allocation7 + $0xb4] sm:$0xf]
        %v2142 = vld [vmem:[#allocation7 + $0xb8] sm:$0xf]
        %v2143 = vld [vmem:[#allocation7 + $0xbc] sm:$0xf]
        %v2144 = vld [vmem:[#allocation7 + $0xc0] sm:$0xf]
        %v2145 = vld [vmem:[#allocation7 + $0xc4] sm:$0xf]
        %v2146 = vld [vmem:[#allocation7 + $0xc8] sm:$0xf]
        %v2147 = vld [vmem:[#allocation7 + $0xcc] sm:$0xf]
        %v2148 = vld [vmem:[#allocation7 + $0xd0] sm:$0xf]
        %v2149 = vld [vmem:[#allocation7 + $0xd4] sm:$0xf]
        %v2150 = vld [vmem:[#allocation7 + $0xd8] sm:$0xf]
        %v2151 = vld [vmem:[#allocation7 + $0xdc] sm:$0xf]
        %v2152 = vld [vmem:[#allocation7 + $0xe0] sm:$0xf]
        %v2153 = vld [vmem:[#allocation7 + $0xe4] sm:$0xf]
        %v2154 = vld [vmem:[#allocation7 + $0xe8] sm:$0xf]
        %v2155 = vld [vmem:[#allocation7 + $0xec] sm:$0xf]
        %v2156 = vld [vmem:[#allocation7 + $0xf0] sm:$0xf]
        %v2157 = vld [vmem:[#allocation7 + $0xf4] sm:$0xf]
        %v2158 = vld [vmem:[#allocation7 + $0xf8] sm:$0xf]
        %v2159 = vld [vmem:[#allocation7 + $0xfc] sm:$0xf]
        %v2176 = vunpack.c.l.b16 %v2080
        %v2177 = vunpack.c.h.b16 %v2080
        %v2178 = vunpack.c.l.b16 %v2081
        %v2179 = vunpack.c.h.b16 %v2081
        %v2180 = vunpack.c.l.b16 %v2082
        %v2181 = vunpack.c.h.b16 %v2082
        %v2182 = vunpack.c.l.b16 %v2083
        %v2183 = vunpack.c.h.b16 %v2083
        %v2184 = vunpack.c.l.b16 %v2084
        %v2185 = vunpack.c.h.b16 %v2084
        %v2186 = vunpack.c.l.b16 %v2085
        %v2187 = vunpack.c.h.b16 %v2085
        %v2188 = vunpack.c.l.b16 %v2086
        %v2189 = vunpack.c.h.b16 %v2086
        %v2190 = vunpack.c.l.b16 %v2087
        %v2191 = vunpack.c.h.b16 %v2087
        %v2192 = vunpack.c.l.b16 %v2088
        %v2193 = vunpack.c.h.b16 %v2088
        %v2194 = vunpack.c.l.b16 %v2089
        %v2195 = vunpack.c.h.b16 %v2089
        %v2196 = vunpack.c.l.b16 %v2090
        %v2197 = vunpack.c.h.b16 %v2090
        %v2198 = vunpack.c.l.b16 %v2091
        %v2199 = vunpack.c.h.b16 %v2091
        %v2200 = vunpack.c.l.b16 %v2092
        %v2201 = vunpack.c.h.b16 %v2092
        %v2202 = vunpack.c.l.b16 %v2093
        %v2203 = vunpack.c.h.b16 %v2093
        %v2204 = vunpack.c.l.b16 %v2094
        %v2205 = vunpack.c.h.b16 %v2094
        %v2206 = vunpack.c.l.b16 %v2095
        %v2207 = vunpack.c.h.b16 %v2095
        %v2208 = vpack.c.b16 %v2180, %v2176
        %v2209 = vpack.c.b16 %v2181, %v2177
        %v2210 = vpack.c.b16 %v2182, %v2178
        %v2211 = vpack.c.b16 %v2183, %v2179
        %v2212 = vpack.c.b16 %v2188, %v2184
        %v2213 = vpack.c.b16 %v2189, %v2185
        %v2214 = vpack.c.b16 %v2190, %v2186
        %v2215 = vpack.c.b16 %v2191, %v2187
        %v2216 = vpack.c.b16 %v2196, %v2192
        %v2217 = vpack.c.b16 %v2197, %v2193
        %v2218 = vpack.c.b16 %v2198, %v2194
        %v2219 = vpack.c.b16 %v2199, %v2195
        %v2220 = vpack.c.b16 %v2204, %v2200
        %v2221 = vpack.c.b16 %v2205, %v2201
        %v2222 = vpack.c.b16 %v2206, %v2202
        %v2223 = vpack.c.b16 %v2207, %v2203
        %v2304 = vunpack.c.l.b16 %v2096
        %v2305 = vunpack.c.l.b16 %v2097
        %v2306 = vunpack.c.l.b16 %v2098
        %v2307 = vunpack.c.l.b16 %v2099
        %v2308 = vunpack.c.l.b16 %v2100
        %v2309 = vunpack.c.l.b16 %v2101
        %v2310 = vunpack.c.l.b16 %v2102
        %v2311 = vunpack.c.l.b16 %v2103
        %v2312 = vunpack.c.l.b16 %v2104
        %v2313 = vunpack.c.l.b16 %v2105
        %v2314 = vunpack.c.l.b16 %v2106
        %v2315 = vunpack.c.l.b16 %v2107
        %v2316 = vunpack.c.l.b16 %v2108
        %v2317 = vunpack.c.l.b16 %v2109
        %v2318 = vunpack.c.l.b16 %v2110
        %v2319 = vunpack.c.l.b16 %v2111
        %v2320 = vunpack.c.l.b16 %v2112
        %v2321 = vunpack.c.l.b16 %v2113
        %v2322 = vunpack.c.l.b16 %v2114
        %v2323 = vunpack.c.l.b16 %v2115
        %v2324 = vunpack.c.l.b16 %v2116
        %v2325 = vunpack.c.l.b16 %v2117
        %v2326 = vunpack.c.l.b16 %v2118
        %v2327 = vunpack.c.l.b16 %v2119
        %v2328 = vunpack.c.l.b16 %v2120
        %v2329 = vunpack.c.l.b16 %v2121
        %v2330 = vunpack.c.l.b16 %v2122
        %v2331 = vunpack.c.l.b16 %v2123
        %v2332 = vunpack.c.l.b16 %v2124
        %v2333 = vunpack.c.l.b16 %v2125
        %v2334 = vunpack.c.l.b16 %v2126
        %v2335 = vunpack.c.l.b16 %v2127
        %v2336 = vunpack.c.l.b16 %v2128
        %v2337 = vunpack.c.l.b16 %v2129
        %v2338 = vunpack.c.l.b16 %v2130
        %v2339 = vunpack.c.l.b16 %v2131
        %v2340 = vunpack.c.l.b16 %v2132
        %v2341 = vunpack.c.l.b16 %v2133
        %v2342 = vunpack.c.l.b16 %v2134
        %v2343 = vunpack.c.l.b16 %v2135
        %v2344 = vunpack.c.l.b16 %v2136
        %v2345 = vunpack.c.l.b16 %v2137
        %v2346 = vunpack.c.l.b16 %v2138
        %v2347 = vunpack.c.l.b16 %v2139
        %v2348 = vunpack.c.l.b16 %v2140
        %v2349 = vunpack.c.l.b16 %v2141
        %v2350 = vunpack.c.l.b16 %v2142
        %v2351 = vunpack.c.l.b16 %v2143
        %v2352 = vunpack.c.l.b16 %v2144
        %v2353 = vunpack.c.l.b16 %v2145
        %v2354 = vunpack.c.l.b16 %v2146
        %v2355 = vunpack.c.l.b16 %v2147
        %v2356 = vunpack.c.l.b16 %v2148
        %v2357 = vunpack.c.l.b16 %v2149
        %v2358 = vunpack.c.l.b16 %v2150
        %v2359 = vunpack.c.l.b16 %v2151
        %v2360 = vunpack.c.l.b16 %v2152
        %v2361 = vunpack.c.l.b16 %v2153
        %v2362 = vunpack.c.l.b16 %v2154
        %v2363 = vunpack.c.l.b16 %v2155
        %v2364 = vunpack.c.l.b16 %v2156
        %v2365 = vunpack.c.l.b16 %v2157
        %v2366 = vunpack.c.l.b16 %v2158
        %v2367 = vunpack.c.l.b16 %v2159
        %v2368 = vpack.c.b16 %v2305, %v2304
        %v2369 = vpack.c.b16 %v2307, %v2306
        %v2370 = vpack.c.b16 %v2309, %v2308
        %v2371 = vpack.c.b16 %v2311, %v2310
        %v2372 = vpack.c.b16 %v2313, %v2312
        %v2373 = vpack.c.b16 %v2315, %v2314
        %v2374 = vpack.c.b16 %v2317, %v2316
        %v2375 = vpack.c.b16 %v2319, %v2318
        %v2376 = vpack.c.b16 %v2321, %v2320
        %v2377 = vpack.c.b16 %v2323, %v2322
        %v2378 = vpack.c.b16 %v2325, %v2324
        %v2379 = vpack.c.b16 %v2327, %v2326
        %v2380 = vpack.c.b16 %v2329, %v2328
        %v2381 = vpack.c.b16 %v2331, %v2330
        %v2382 = vpack.c.b16 %v2333, %v2332
        %v2383 = vpack.c.b16 %v2335, %v2334
        %v2384 = vpack.c.b16 %v2337, %v2336
        %v2385 = vpack.c.b16 %v2339, %v2338
        %v2386 = vpack.c.b16 %v2341, %v2340
        %v2387 = vpack.c.b16 %v2343, %v2342
        %v2388 = vpack.c.b16 %v2345, %v2344
        %v2389 = vpack.c.b16 %v2347, %v2346
        %v2390 = vpack.c.b16 %v2349, %v2348
        %v2391 = vpack.c.b16 %v2351, %v2350
        %v2392 = vpack.c.b16 %v2353, %v2352
        %v2393 = vpack.c.b16 %v2355, %v2354
        %v2394 = vpack.c.b16 %v2357, %v2356
        %v2395 = vpack.c.b16 %v2359, %v2358
        %v2396 = vpack.c.b16 %v2361, %v2360
        %v2397 = vpack.c.b16 %v2363, %v2362
        %v2398 = vpack.c.b16 %v2365, %v2364
        %v2399 = vpack.c.b16 %v2367, %v2366
        %2432 = vmatpush.bf16.msra.mxu0 %v2375
        %2433 = vmatpush.bf16.msra.mxu0 %v2374
        %2434 = vmatpush.bf16.msra.mxu0 %v2373
        %2435 = vmatpush.bf16.msra.mxu0 %v2372
        %2436 = vmatpush.bf16.msra.mxu0 %v2371
        %2437 = vmatpush.bf16.msra.mxu0 %v2370
        %2438 = vmatpush.bf16.msra.mxu0 %v2369
        %2439 = vmatpush.bf16.msra.mxu0 %v2368
        %2440 = vmatmul.bf16.gmra.mxu0 %v2208
        %v2441 = vpop.f32.mrf.mxu0
        %v2442 = vadd.f32 0.0, %v2441
        %v2443 = vpop.f32.mrf.mxu0
        %v2444 = vadd.f32 0.0, %v2443
        %2445 = vmatmul.bf16.gmra.mxu0 %v2212
        %v2446 = vpop.f32.mrf.mxu0
        %v2447 = vadd.f32 0.0, %v2446
        %v2448 = vpop.f32.mrf.mxu0
        %v2449 = vadd.f32 0.0, %v2448
        %2450 = vmatmul.bf16.gmra.mxu0 %v2216
        %v2451 = vpop.f32.mrf.mxu0
        %v2452 = vadd.f32 0.0, %v2451
        %v2453 = vpop.f32.mrf.mxu0
        %v2454 = vadd.f32 0.0, %v2453
        %2455 = vmatmul.bf16.gmra.mxu0 %v2220
        %v2456 = vpop.f32.mrf.mxu0
        %v2457 = vadd.f32 0.0, %v2456
        %v2458 = vpop.f32.mrf.mxu0
        %v2459 = vadd.f32 0.0, %v2458
        %2460 = vdwg.mxu0
        %2461 = vmatpush.bf16.msra.mxu0 %v2383
        %2462 = vmatpush.bf16.msra.mxu0 %v2382
        %2463 = vmatpush.bf16.msra.mxu0 %v2381
        %2464 = vmatpush.bf16.msra.mxu0 %v2380
        %2465 = vmatpush.bf16.msra.mxu0 %v2379
        %2466 = vmatpush.bf16.msra.mxu0 %v2378
        %2467 = vmatpush.bf16.msra.mxu0 %v2377
        %2468 = vmatpush.bf16.msra.mxu0 %v2376
        %2469 = vmatmul.bf16.gmra.mxu0 %v2209
        %v2470 = vpop.f32.mrf.mxu0
        %v2471 = vadd.f32 %v2442, %v2470
        %v2472 = vpop.f32.mrf.mxu0
        %v2473 = vadd.f32 %v2444, %v2472
        %2474 = vmatmul.bf16.gmra.mxu0 %v2213
        %v2475 = vpop.f32.mrf.mxu0
        %v2476 = vadd.f32 %v2447, %v2475
        %v2477 = vpop.f32.mrf.mxu0
        %v2478 = vadd.f32 %v2449, %v2477
        %2479 = vmatmul.bf16.gmra.mxu0 %v2217
        %v2480 = vpop.f32.mrf.mxu0
        %v2481 = vadd.f32 %v2452, %v2480
        %v2482 = vpop.f32.mrf.mxu0
        %v2483 = vadd.f32 %v2454, %v2482
        %2484 = vmatmul.bf16.gmra.mxu0 %v2221
        %v2485 = vpop.f32.mrf.mxu0
        %v2486 = vadd.f32 %v2457, %v2485
        %v2487 = vpop.f32.mrf.mxu0
        %v2488 = vadd.f32 %v2459, %v2487
        %2489 = vdwg.mxu0
        %2490 = vmatpush.bf16.msra.mxu0 %v2391
        %2491 = vmatpush.bf16.msra.mxu0 %v2390
        %2492 = vmatpush.bf16.msra.mxu0 %v2389
        %2493 = vmatpush.bf16.msra.mxu0 %v2388
        %2494 = vmatpush.bf16.msra.mxu0 %v2387
        %2495 = vmatpush.bf16.msra.mxu0 %v2386
        %2496 = vmatpush.bf16.msra.mxu0 %v2385
        %2497 = vmatpush.bf16.msra.mxu0 %v2384
        %2498 = vmatmul.bf16.gmra.mxu0 %v2210
        %v2499 = vpop.f32.mrf.mxu0
        %v2500 = vadd.f32 %v2471, %v2499
        %v2501 = vpop.f32.mrf.mxu0
        %v2502 = vadd.f32 %v2473, %v2501
        %2503 = vmatmul.bf16.gmra.mxu0 %v2214
        %v2504 = vpop.f32.mrf.mxu0
        %v2505 = vadd.f32 %v2476, %v2504
        %v2506 = vpop.f32.mrf.mxu0
        %v2507 = vadd.f32 %v2478, %v2506
        %2508 = vmatmul.bf16.gmra.mxu0 %v2218
        %v2509 = vpop.f32.mrf.mxu0
        %v2510 = vadd.f32 %v2481, %v2509
        %v2511 = vpop.f32.mrf.mxu0
        %v2512 = vadd.f32 %v2483, %v2511
        %2513 = vmatmul.bf16.gmra.mxu0 %v2222
        %v2514 = vpop.f32.mrf.mxu0
        %v2515 = vadd.f32 %v2486, %v2514
        %v2516 = vpop.f32.mrf.mxu0
        %v2517 = vadd.f32 %v2488, %v2516
        %2518 = vdwg.mxu0
        %2519 = vmatpush.bf16.msra.mxu0 %v2399
        %2520 = vmatpush.bf16.msra.mxu0 %v2398
        %2521 = vmatpush.bf16.msra.mxu0 %v2397
        %2522 = vmatpush.bf16.msra.mxu0 %v2396
        %2523 = vmatpush.bf16.msra.mxu0 %v2395
        %2524 = vmatpush.bf16.msra.mxu0 %v2394
        %2525 = vmatpush.bf16.msra.mxu0 %v2393
        %2526 = vmatpush.bf16.msra.mxu0 %v2392
        %2527 = vmatmul.bf16.gmra.mxu0 %v2211
        %v2528 = vpop.f32.mrf.mxu0
        %v2529 = vadd.f32 %v2500, %v2528
        %v2530 = vpop.f32.mrf.mxu0
        %v2531 = vadd.f32 %v2502, %v2530
        %2532 = vmatmul.bf16.gmra.mxu0 %v2215
        %v2533 = vpop.f32.mrf.mxu0
        %v2534 = vadd.f32 %v2505, %v2533
        %v2535 = vpop.f32.mrf.mxu0
        %v2536 = vadd.f32 %v2507, %v2535
        %2537 = vmatmul.bf16.gmra.mxu0 %v2219
        %v2538 = vpop.f32.mrf.mxu0
        %v2539 = vadd.f32 %v2510, %v2538
        %v2540 = vpop.f32.mrf.mxu0
        %v2541 = vadd.f32 %v2512, %v2540
        %2542 = vmatmul.bf16.gmra.mxu0 %v2223
        %v2543 = vpop.f32.mrf.mxu0
        %v2544 = vadd.f32 %v2515, %v2543
        %v2545 = vpop.f32.mrf.mxu0
        %v2546 = vadd.f32 %v2517, %v2545
        %2547 = vdwg.mxu0
        %v2548 = vrot.slane %v2529, 4
        %v2549 = vmax.f32 %v2529, %v2548
        %v2550 = vrot.slane %v2549, 2
        %v2551 = vmax.f32 %v2549, %v2550
        %v2552 = vrot.slane %v2551, 1
        %v2553 = vmax.f32 %v2551, %v2552
        %v2554 = vrot.slane %v2531, 4
        %v2555 = vmax.f32 %v2531, %v2554
        %v2556 = vrot.slane %v2555, 2
        %v2557 = vmax.f32 %v2555, %v2556
        %v2558 = vrot.slane %v2557, 1
        %v2559 = vmax.f32 %v2557, %v2558
        %v2560 = vrot.slane %v2534, 4
        %v2561 = vmax.f32 %v2534, %v2560
        %v2562 = vrot.slane %v2561, 2
        %v2563 = vmax.f32 %v2561, %v2562
        %v2564 = vrot.slane %v2563, 1
        %v2565 = vmax.f32 %v2563, %v2564
        %v2566 = vrot.slane %v2536, 4
        %v2567 = vmax.f32 %v2536, %v2566
        %v2568 = vrot.slane %v2567, 2
        %v2569 = vmax.f32 %v2567, %v2568
        %v2570 = vrot.slane %v2569, 1
        %v2571 = vmax.f32 %v2569, %v2570
        %v2572 = vrot.slane %v2539, 4
        %v2573 = vmax.f32 %v2539, %v2572
        %v2574 = vrot.slane %v2573, 2
        %v2575 = vmax.f32 %v2573, %v2574
        %v2576 = vrot.slane %v2575, 1
        %v2577 = vmax.f32 %v2575, %v2576
        %v2578 = vrot.slane %v2541, 4
        %v2579 = vmax.f32 %v2541, %v2578
        %v2580 = vrot.slane %v2579, 2
        %v2581 = vmax.f32 %v2579, %v2580
        %v2582 = vrot.slane %v2581, 1
        %v2583 = vmax.f32 %v2581, %v2582
        %v2584 = vrot.slane %v2544, 4
        %v2585 = vmax.f32 %v2544, %v2584
        %v2586 = vrot.slane %v2585, 2
        %v2587 = vmax.f32 %v2585, %v2586
        %v2588 = vrot.slane %v2587, 1
        %v2589 = vmax.f32 %v2587, %v2588
        %v2590 = vrot.slane %v2546, 4
        %v2591 = vmax.f32 %v2546, %v2590
        %v2592 = vrot.slane %v2591, 2
        %v2593 = vmax.f32 %v2591, %v2592
        %v2594 = vrot.slane %v2593, 1
        %v2595 = vmax.f32 %v2593, %v2594
        %v2596 = vld [vmem:[%s8] sm:$0x1]
        %v2598 = vperm.slane %v2596, 0
        %v2600 = vadd.f32 %v2553, %v2598
        %v2601 = vadd.f32 %v2559, %v2598
        %v2602 = vadd.f32 %v2565, %v2598
        %v2603 = vadd.f32 %v2571, %v2598
        %v2604 = vadd.f32 %v2577, %v2598
        %v2605 = vadd.f32 %v2583, %v2598
        %v2606 = vadd.f32 %v2589, %v2598
        %v2607 = vadd.f32 %v2595, %v2598
        %v2616 = vrot.slane %v2601, 7
        %v2617 = vsel %vm831, %v2616, %v2600
        %v2618 = vrot.slane %v2602, 6
        %v2619 = vsel %vm833, %v2618, %v2617
        %v2620 = vrot.slane %v2603, 5
        %v2621 = vsel %vm835, %v2620, %v2619
        %v2622 = vrot.slane %v2604, 4
        %v2623 = vsel %vm837, %v2622, %v2621
        %v2624 = vrot.slane %v2605, 3
        %v2625 = vsel %vm839, %v2624, %v2623
        %v2626 = vrot.slane %v2606, 2
        %v2627 = vsel %vm841, %v2626, %v2625
        %v2628 = vrot.slane %v2607, 1
        %v2629 = vsel %vm843, %v2628, %v2627
        %2631 = vst [vmem:[%s376] sm:$0xff] %v2629
        %s2632 = sand.u32 %s227, 1
        %s2633 = scalar_lea.sflag [#allocation4], %s2632
        %s2634 = sand.u32 %s227, 1
        %s2635 = smul.addr %s2634, 8
        %s2636 = scalar_lea.vmem [#allocation8], %s2635
        // Predicated region
        $region69: #{tpu_custom_call.1} parent=55 // pred_check
          %p2637 = pneg %p237
        $region70: #{tpu_custom_call.1} parent=55 // pred_check_branch
          %2639 = sbr.rel (%p2637) target = $region72
        $region71: #{tpu_custom_call.1} parent=55 // pred_region
          %2641 = vsyncadd %s2633, 0
          %s2642 = smul.addr %s25, 8
          %s2643 = scalar_lea.hbm %s9, %s2642
          %s2645 = sshll.u32 %s2636, 4
          %s2646 = int_to_ptr.vmem [resolvable:$true] %s2645
          %s2647 = sshll.u32 %s2643, 4
          %s2648 = int_to_ptr.hbm [resolvable:$true] %s2647
          %2650 = dma.vmem_to_hbm [thread:$0]  %s2646, 128, %s2648, %s2633
        $region72: #{tpu_custom_call.1} parent=55 // pred_fallthru
          _
      $region56: #{tpu_custom_call.1} parent=5 // pred_fallthru
        _
      %p2651 = scmp.le.s32.totalorder 2, %s20
      // Predicated region
      $region73: #{tpu_custom_call.1} parent=5 // pred_check
        %p2652 = pneg %p2651
      $region74: #{tpu_custom_call.1} parent=5 // pred_check_branch
        %2654 = sbr.rel (%p2652) target = $region76
      $region75: #{tpu_custom_call.1} parent=5 // pred_region
        %s2655 = ssub.s32 %s20, 2
        // Predicated region
        $region77: #{tpu_custom_call.1} parent=75 // pred_check
          %p2656 = pneg %p243
        $region78: #{tpu_custom_call.1} parent=75 // pred_check_branch
          %2658 = sbr.rel (%p2656) target = $region80
        $region79: #{tpu_custom_call.1} parent=75 // pred_region
          %s2659 = sand.u32 %s228, 1
          %s2660 = scalar_lea.sflag [#allocation4], %s2659
          %s2661 = sand.u32 %s228, 1
          %s2662 = smul.addr %s2661, 8
          %s2663 = scalar_lea.vmem [#allocation8], %s2662
          %2665 = dma.done %s2660, 128
        $region80: #{tpu_custom_call.1} parent=75 // pred_fallthru
          _
      $region76: #{tpu_custom_call.1} parent=5 // pred_fallthru
        _
    $region6: #{tpu_custom_call.1} parent=1 // loop_footer
      %s24 = sadd.s32 1, %s20
    $region7: #{tpu_custom_call.1} parent=1 // loop_footer_branch
      %19 = sbr.rel target = $region3
    $region8: #{tpu_custom_call.1} parent=1 // loop_exit
      _
    %2666 = vsyncpa [#allocation3], 1
    %s2667 = scalar_lea.sflag [#allocation3], 1
    %2668 = vsyncpa %s2667, 1
    %2669 = vsyncpa [#allocation6], 1
    %2670 = vsyncpa [#allocation4], 1
    %s2671 = scalar_lea.sflag [#allocation4], 1
    %2672 = vsyncpa %s2671, 1

</llo_original>
